<compile_context>
chip_gen: v5e
topology: v5e:2x2
jax: 0.10.0
libtpu: 0.0.40
codegen_flags: <defaults>
</compile_context>

<pallas_src>
import functools

import jax
import jax.numpy as jnp
from jax.experimental import pallas as pl
from jax.experimental.pallas import tpu as pltpu

_SQRT_HALF = 0.7071067811865476
_MATMUL_DTYPE = jnp.bfloat16    # MXU operand dtype; accumulation stays f32
_DIRECT_MIN_CIN = 128           # cin >= this: 9 direct accumulating dots
_TAPS = tuple((dy, dx) for dy in range(3) for dx in range(3))


def _round_up(x, m):
    return (x + m - 1) // m * m


def _pad16(c):
    return _round_up(c, 16)


def _erf(x):
    # Abramowitz & Stegun 7.1.26 polynomial (|err| < 1.5e-7): matches PyTorch's
    # exact (erf-based) GELU to f32 tolerance and lowers cleanly on Mosaic.
    a1, a2, a3, a4, a5 = (0.254829592, -0.284496736, 1.421413741,
                          -1.453152027, 1.061405429)
    p = 0.3275911
    ax = jnp.abs(x)
    t = 1.0 / (1.0 + p * ax)
    poly = ((((a5 * t + a4) * t + a3) * t + a2) * t + a1) * t
    y = 1.0 - poly * jnp.exp(-ax * ax)
    return jnp.where(x >= 0, y, -y)


def _gelu(x):
    return 0.5 * x * (1.0 + _erf(x * _SQRT_HALF))


# ------------------------------ fused kernel -------------------------------
#
# Activation layout ("rowpad" form): (C, HWL) bf16 with Wp = W + 2 and
# HWL = round_up(H*Wp, 128); per spatial row y, lanes [y*Wp, y*Wp+W) hold data
# and the 2 trailing lanes per row plus the [H*Wp, HWL) tail are zero.
# Placing that block at the 128-aligned lane offset OFF (>= Wp+1) inside a
# border-zeroed (C, L) slab reproduces the fully zero-padded image flattened
# row-major, so tap (dy, dx) of the 3x3 conv is the contiguous lane slice
# starting at OFF - (Wp+1) + dy*Wp + dx.  Pad/tail lanes are masked out of the
# GroupNorm statistics and re-zeroed before the next stage.

def _up_block_kernel(H, W, Cs, Cu, M, O, HWL, OFF, L,
                     skip_ref, up_ref, mask_ref,
                     w1a_ref, g1a_ref, b1a_ref,
                     w1b_ref, g1b_ref, b1b_ref,
                     w2a_ref, g2a_ref, b2a_ref,
                     w2b_ref, g2b_ref,
                     bias2_ref, o_ref, xbuf_ref, *maybe_tbuf):
    C = Cs + Cu
    Wp = W + 2
    BASE = OFF - Wp - 1          # slab lane of padded-image flat index 0
    tbuf_ref = maybe_tbuf[0] if maybe_tbuf else None

    mask = mask_ref[...]         # (1, HWL) f32, 1 on valid output lanes

    # Zero only the slab BORDER lanes; the interior [OFF, OFF+HWL) is fully
    # rewritten by put() every stage.  Deliberately NOT gated on program_id
    # (on v7x megacore each core owns its own scratch / program-id subset).
    xbuf_ref[pl.ds(0, C), pl.ds(0, OFF)] = jnp.zeros((C, OFF), xbuf_ref.dtype)
    tail = L - OFF - HWL
    xbuf_ref[pl.ds(0, C), pl.ds(OFF + HWL, tail)] = jnp.zeros(
        (C, tail), xbuf_ref.dtype)

    def put(row0, value):
        rows = value.shape[0]
        xbuf_ref[pl.ds(row0, rows), pl.ds(OFF, HWL)] = value.astype(
            xbuf_ref.dtype)

    # In-kernel channel concat of [skip, upsampled x] (no xcat in HBM).
    put(0, skip_ref[0])
    put(Cs, up_ref[0])

    def conv_gn(cin, w_ref, g_ref, bias, mask_out):
        if cin >= _DIRECT_MIN_CIN:
            # Nine accumulating MXU dots reading tap slices of the slab
            # directly (no im2col scratch traffic); f32 accumulation.
            acc = None
            for k, (dy, dx) in enumerate(_TAPS):
                off = BASE + dy * Wp + dx
                tap = xbuf_ref[pl.ds(0, cin), pl.ds(off, HWL)]
                d = jnp.dot(w_ref[k], tap, preferred_element_type=jnp.float32)
                acc = d if acc is None else acc + d
        else:
            # Small-cin path: pack taps into a bf16 im2col scratch so the MXU
            # sees one K = 9*cin_p contraction.  Tap blocks are padded to a
            # multiple of 16 rows (bf16 sublane packing); pad rows re-zeroed.
            cin_p = _pad16(cin)
            zr = cin_p - cin
            if zr:
                zero = jnp.zeros((zr, HWL), tbuf_ref.dtype)
                for k in range(9):
                    tbuf_ref[pl.ds(k * cin_p + cin, zr), :] = zero
            for k, (dy, dx) in enumerate(_TAPS):
                off = BASE + dy * Wp + dx
                tbuf_ref[pl.ds(k * cin_p, cin), :] = xbuf_ref[
                    pl.ds(0, cin), pl.ds(off, HWL)]
            acc = jnp.dot(w_ref[...], tbuf_ref[pl.ds(0, 9 * cin_p), :],
                          preferred_element_type=jnp.float32)

        # GroupNorm(num_groups=1): masked two-pass statistics in f32.
        cout = acc.shape[0]
        inv_cnt = 1.0 / float(cout * H * W)
        mean = jnp.sum(acc * mask) * inv_cnt
        dev = (acc - mean) * mask
        var = jnp.sum(dev * dev) * inv_cnt
        y = (acc - mean) * jax.lax.rsqrt(var + 1e-5) * g_ref[...] + bias
        return y * mask if mask_out else y

    # DoubleConv #1 (residual): gelu(x + GN(conv(gelu(GN(conv(x))))))
    a = _gelu(conv_gn(C, w1a_ref, g1a_ref, b1a_ref[...], True))
    put(0, a)
    a = conv_gn(C, w1b_ref, g1b_ref, b1b_ref[...], True)
    # Residual re-read from the lane-aligned bf16 input refs (nothing held
    # live across the two matmuls above).
    put(0, _gelu(skip_ref[0].astype(jnp.float32) + a[:Cs]))
    put(Cs, _gelu(up_ref[0].astype(jnp.float32) + a[Cs:]))

    # DoubleConv #2 (mid = C // 2); last GN bias + emb folded into bias2.
    z = _gelu(conv_gn(C, w2a_ref, g2a_ref, b2a_ref[...], True))
    put(0, z)
    z = conv_gn(M, w2b_ref, g2b_ref, bias2_ref[0], False)
    o_ref[0] = z.astype(o_ref.dtype)


def _vmem_capacity_bytes():
    try:
        return int(pltpu.get_tpu_info().vmem_capacity_bytes)
    except Exception:
        return 128 << 20


def _vmem_limit_bytes(C, Cs, Cu, O, HWL, L, tbuf_rows, p):
    wbytes = 4 * sum(int(p[k].size) for k in
                     ('w1a', 'g1a', 'b1a', 'w1b', 'g1b', 'b1b',
                      'w2a', 'g2a', 'b2a', 'w2b', 'g2b'))
    est = (C * L * 2                      # bf16 slab
           + tbuf_rows * HWL * 2          # bf16 im2col scratch (0 if unused)
           + 2 * (Cs + Cu) * HWL * 2      # double-buffered bf16 inputs
           + 2 * O * HWL * 4              # double-buffered f32 output
           + 2 * (HWL * 4 + O * 4)        # mask + bias2 blocks
           + 2 * wbytes                   # weights / affine params
           + (4 << 20))                   # Mosaic internal scratch margin
    cap = _vmem_capacity_bytes()
    return int(min(cap * 3 // 4, max(32 << 20, 2 * est)))


def _up_block_call(skip_rp, up_rp, mask, bias2, p, *, H, W):
    N, Cs, HWL = skip_rp.shape
    Cu = up_rp.shape[1]
    C = Cs + Cu
    M = p['g2a'].shape[0]
    O = p['g2b'].shape[0]
    Wp = W + 2
    HWr = H * Wp
    assert HWL == _round_up(HWr, 128)
    OFF = _round_up(Wp + 1, 128)          # 128-aligned interior lane offset
    L = OFF + HWL + _round_up(Wp + 1, 128)

    cins = (C, C, C, M)
    im2col_cins = [c for c in cins if c < _DIRECT_MIN_CIN]
    tbuf_rows = 9 * max((_pad16(c) for c in im2col_cins), default=0)

    kernel = functools.partial(_up_block_kernel, H, W, Cs, Cu, M, O,
                               HWL, OFF, L)

    def bcast(arr):
        nd = arr.ndim
        return pl.BlockSpec(arr.shape, lambda n, _nd=nd: (0,) * _nd)

    in_specs = [
        pl.BlockSpec((1, Cs, HWL), lambda n: (n, 0, 0)),    # skip (rowpad)
        pl.BlockSpec((1, Cu, HWL), lambda n: (n, 0, 0)),    # upsampled x
        bcast(mask),                                        # valid-lane mask
        bcast(p['w1a']), bcast(p['g1a']), bcast(p['b1a']),  # conv/GN 1a
        bcast(p['w1b']), bcast(p['g1b']), bcast(p['b1b']),  # conv/GN 1b
        bcast(p['w2a']), bcast(p['g2a']), bcast(p['b2a']),  # conv/GN 2a
        bcast(p['w2b']), bcast(p['g2b']),                   # conv/GN 2b
        pl.BlockSpec((1, O, 1), lambda n: (n, 0, 0)),       # b2b + emb bias
    ]

    scratch = [pltpu.VMEM((C, L), _MATMUL_DTYPE)]           # padded slab
    if tbuf_rows:
        scratch.append(pltpu.VMEM((tbuf_rows, HWL), _MATMUL_DTYPE))

    # TODO(synk): add an H-tiled grid axis with partial-stats (two-pass)
    # GroupNorm so the per-sample slab fits v7x's 64 MiB VMEM at large H*W,
    # and batch several samples per grid step when channel counts are tiny.
    grid_spec = pltpu.PrefetchScalarGridSpec(
        num_scalar_prefetch=0,
        grid=(N,),
        in_specs=in_specs,
        out_specs=pl.BlockSpec((1, O, HWL), lambda n: (n, 0, 0)),
        scratch_shapes=scratch,
    )
    return pl.pallas_call(
        kernel,
        out_shape=jax.ShapeDtypeStruct((N, O, HWL), jnp.float32),
        grid_spec=grid_spec,
        compiler_params=pltpu.CompilerParams(
            dimension_semantics=("parallel",),
            vmem_limit_bytes=_vmem_limit_bytes(C, Cs, Cu, O, HWL, L,
                                               tbuf_rows, p)),
    )(skip_rp, up_rp, mask,
      p['w1a'], p['g1a'], p['b1a'],
      p['w1b'], p['g1b'], p['b1b'],
      p['w2a'], p['g2a'], p['b2a'],
      p['w2b'], p['g2b'],
      bias2)


# ----------------------------- plain-JAX glue ------------------------------

def _rowpad_lanes(x_nchw, HWL):
    """(N,C,H,W) -> (N,C,HWL) bf16: 2 zero cols per row + zero lane tail."""
    N, C, H, W = x_nchw.shape
    xp = jnp.pad(x_nchw, ((0, 0), (0, 0), (0, 0), (0, 2)))
    flat = xp.reshape(N, C, H * (W + 2))
    flat = jnp.pad(flat, ((0, 0), (0, 0), (0, HWL - H * (W + 2))))
    return flat.astype(_MATMUL_DTYPE)


def _upsample_bilinear_align_corners(x_nchw, size):
    # matches torch.nn.Upsample(size=size, mode='bilinear', align_corners=True)
    N, C, Hin, Win = x_nchw.shape
    Hout, Wout = size

    def coords(n_out, n_in):
        if n_out == 1:
            return jnp.zeros((1,), jnp.float32)
        return jnp.arange(n_out, dtype=jnp.float32) * ((n_in - 1) / (n_out - 1))

    ys, xs = coords(Hout, Hin), coords(Wout, Win)
    y0 = jnp.clip(jnp.floor(ys).astype(jnp.int32), 0, Hin - 1)
    x0 = jnp.clip(jnp.floor(xs).astype(jnp.int32), 0, Win - 1)
    y1 = jnp.minimum(y0 + 1, Hin - 1)
    x1 = jnp.minimum(x0 + 1, Win - 1)
    wy = (ys - y0.astype(jnp.float32))[None, None, :, None]
    wx = (xs - x0.astype(jnp.float32))[None, None, None, :]

    g = lambda yi, xi: x_nchw[:, :, yi][:, :, :, xi]
    top = g(y0, x0) * (1 - wx) + g(y0, x1) * wx
    bot = g(y1, x0) * (1 - wx) + g(y1, x1) * wx
    return top * (1 - wy) + bot * wy


def up_forward(params, x_nchw, skip_nchw, t, size):
    p = params
    x = x_nchw.astype(jnp.float32)
    skip = skip_nchw.astype(jnp.float32)

    # TODO(synk): fold the upsample gather / rowpad / final [:W] slice into the
    # kernel (or adopt the padded-HWL layout externally) to remove the
    # remaining wrapper-side HBM copies.
    xu = _upsample_bilinear_align_corners(x, size)        # (N, Cu, H, W)
    N, Cu, H, W = xu.shape
    Cs = skip.shape[1]
    Wp = W + 2
    HWr = H * Wp
    HWL = _round_up(HWr, 128)
    O = p['g2b'].shape[0]

    skip_rp = _rowpad_lanes(skip, HWL)                    # (N, Cs, HWL) bf16
    up_rp = _rowpad_lanes(xu, HWL)                        # (N, Cu, HWL) bf16

    cols = jnp.arange(HWL, dtype=jnp.int32)
    mask = ((cols < HWr) & ((cols % Wp) < W)).astype(jnp.float32)[None, :]

    # emb_layer = SiLU -> Linear, folded with the last GroupNorm bias.
    emb = jax.nn.silu(t.astype(jnp.float32)) @ p['we'] + p['be']   # (N, O)
    bias2 = emb[:, :, None] + p['b2b'][None, :, :]                 # (N, O, 1)

    out_flat = _up_block_call(skip_rp, up_rp, mask, bias2, p, H=H, W=W)
    out = out_flat[:, :, :HWr].reshape(N, O, H, Wp)[:, :, :, :W]
    return out                                             # NCHW (N, O, H, W)


# ------------------------------- parameters --------------------------------

def _conv_w_to_mat(w_oihw):
    """Pack a (Cout, Cin, 3, 3) conv weight for the kernel's MXU layout."""
    cout, cin = w_oihw.shape[0], w_oihw.shape[1]
    w = jnp.transpose(w_oihw, (0, 2, 3, 1))               # (cout, 3, 3, cin)
    if cin >= _DIRECT_MIN_CIN:
        # Direct path: (9, cout, cin), one per-tap operand (no lane slicing).
        return jnp.transpose(w, (1, 2, 0, 3)).reshape(
            9, cout, cin).astype(_MATMUL_DTYPE)
    # im2col path: (cout, 9*cin_p), column = (dy*3+dx)*cin_p + c, zero-padded.
    cin_p = _pad16(cin)
    w = jnp.pad(w, ((0, 0), (0, 0), (0, 0), (0, cin_p - cin)))
    return w.reshape(cout, 9 * cin_p).astype(_MATMUL_DTYPE)


def init_params(key, in_channels, out_channels, emb_dim):
    C, O, M, E = in_channels, out_channels, in_channels // 2, emb_dim
    ks = jax.random.split(key, 10)

    def conv_w(k, cin, cout):
        w = 0.1 * jax.random.normal(k, (cout, cin, 3, 3), jnp.float32)
        return _conv_w_to_mat(w)

    def gn(k, c):
        kg, kb = jax.random.split(k)
        return (1.0 + 0.1 * jax.random.normal(kg, (c, 1), jnp.float32),
                0.1 * jax.random.normal(kb, (c, 1), jnp.float32))

    g1a, b1a = gn(ks[1], C)
    g1b, b1b = gn(ks[3], C)
    g2a, b2a = gn(ks[5], M)
    g2b, b2b = gn(ks[7], O)
    return dict(
        w1a=conv_w(ks[0], C, C), g1a=g1a, b1a=b1a,
        w1b=conv_w(ks[2], C, C), g1b=g1b, b1b=b1b,
        w2a=conv_w(ks[4], C, M), g2a=g2a, b2a=b2a,
        w2b=conv_w(ks[6], M, O), g2b=g2b, b2b=b2b,
        we=0.1 * jax.random.normal(ks[8], (E, O), jnp.float32),
        be=0.1 * jax.random.normal(ks[9], (O,), jnp.float32),
    )


if __name__ == "__main__":
    key = jax.random.PRNGKey(0)
    k_par, kx, kskip, kt = jax.random.split(key, 4)

    in_channels, out_channels, emb_dim = 8, 8, 32   # in_channels = skip C + up C
    size = (16, 16)
    params = init_params(k_par, in_channels, out_channels, emb_dim)

    x = jax.random.normal(kx, (2, 4, 8, 8), jnp.float32)            # NCHW, pre-upsample
    skip_x = jax.random.normal(kskip, (2, 4, 16, 16), jnp.float32)  # NCHW
    t = jax.random.normal(kt, (2, emb_dim), jnp.float32)

    fwd = jax.jit(functools.partial(up_forward, size=size))
    out = fwd(params, x, skip_x, t)
    jax.block_until_ready(out)
    assert out.shape == (2, out_channels, 16, 16) and out.dtype == jnp.float32
    assert bool(jnp.all(jnp.isfinite(out)))
    print("KERNEL_OK")
</pallas_src>

<mosaic_0001>
module attributes {stable_mosaic.version = 11 : i64} {
  func.func @_up_block_kernel(%arg0: i32, %arg1: memref<1x4x384xbf16, #tpu.memory_space<vmem>>, %arg2: memref<1x4x384xbf16, #tpu.memory_space<vmem>>, %arg3: memref<1x384xf32, #tpu.memory_space<vmem>>, %arg4: memref<8x144xbf16, #tpu.memory_space<vmem>>, %arg5: memref<8x1xf32, #tpu.memory_space<vmem>>, %arg6: memref<8x1xf32, #tpu.memory_space<vmem>>, %arg7: memref<8x144xbf16, #tpu.memory_space<vmem>>, %arg8: memref<8x1xf32, #tpu.memory_space<vmem>>, %arg9: memref<8x1xf32, #tpu.memory_space<vmem>>, %arg10: memref<4x144xbf16, #tpu.memory_space<vmem>>, %arg11: memref<4x1xf32, #tpu.memory_space<vmem>>, %arg12: memref<4x1xf32, #tpu.memory_space<vmem>>, %arg13: memref<8x144xbf16, #tpu.memory_space<vmem>>, %arg14: memref<8x1xf32, #tpu.memory_space<vmem>>, %arg15: memref<1x8x1xf32, #tpu.memory_space<vmem>>, %arg16: memref<1x8x384xf32, #tpu.memory_space<vmem>>, %arg17: memref<8x640xbf16, #tpu.memory_space<vmem>>, %arg18: memref<144x384xbf16, #tpu.memory_space<vmem>>) attributes {dimension_semantics = [#tpu.dimension_semantics<parallel>], iteration_bounds = array<i64: 2>, scalar_prefetch = 0 : i64, scratch_operands = 2 : i64, tpu.core_type = #tpu.core_type<tc>, window_params = [{transform_indices = @transform_0, window_bounds = array<i64: 1, 4, 384>}, {transform_indices = @transform_1, window_bounds = array<i64: 1, 4, 384>}, {pipeline_mode = #tpu.pipeline_mode<synchronous>, transform_indices = @transform_2, window_bounds = array<i64: 1, 384>}, {pipeline_mode = #tpu.pipeline_mode<synchronous>, transform_indices = @transform_3, window_bounds = array<i64: 8, 144>}, {pipeline_mode = #tpu.pipeline_mode<synchronous>, transform_indices = @transform_4, window_bounds = array<i64: 8, 1>}, {pipeline_mode = #tpu.pipeline_mode<synchronous>, transform_indices = @transform_5, window_bounds = array<i64: 8, 1>}, {pipeline_mode = #tpu.pipeline_mode<synchronous>, transform_indices = @transform_6, window_bounds = array<i64: 8, 144>}, {pipeline_mode = #tpu.pipeline_mode<synchronous>, transform_indices = @transform_7, window_bounds = array<i64: 8, 1>}, {pipeline_mode = #tpu.pipeline_mode<synchronous>, transform_indices = @transform_8, window_bounds = array<i64: 8, 1>}, {pipeline_mode = #tpu.pipeline_mode<synchronous>, transform_indices = @transform_9, window_bounds = array<i64: 4, 144>}, {pipeline_mode = #tpu.pipeline_mode<synchronous>, transform_indices = @transform_10, window_bounds = array<i64: 4, 1>}, {pipeline_mode = #tpu.pipeline_mode<synchronous>, transform_indices = @transform_11, window_bounds = array<i64: 4, 1>}, {pipeline_mode = #tpu.pipeline_mode<synchronous>, transform_indices = @transform_12, window_bounds = array<i64: 8, 144>}, {pipeline_mode = #tpu.pipeline_mode<synchronous>, transform_indices = @transform_13, window_bounds = array<i64: 8, 1>}, {transform_indices = @transform_14, window_bounds = array<i64: 1, 8, 1>}, {transform_indices = @transform_15, window_bounds = array<i64: 1, 8, 384>}]} {
    %c0 = arith.constant 0 : index
    %c0_0 = arith.constant 0 : index
    %0 = vector.load %arg3[%c0, %c0_0] : memref<1x384xf32, #tpu.memory_space<vmem>>, vector<1x384xf32>
    %cst = arith.constant 0.000000e+00 : bf16
    %1 = vector.broadcast %cst : bf16 to vector<8x128xbf16>
    %c0_1 = arith.constant 0 : index
    %c0_2 = arith.constant 0 : index
    %2 = vector.load %arg17[%c0_1, %c0_2] : memref<8x640xbf16, #tpu.memory_space<vmem>>, vector<8x128xbf16>
    tpu.vector_store %arg17[%c0_1, %c0_2], %1 {strides = array<i32>} : memref<8x640xbf16, #tpu.memory_space<vmem>>, vector<8x128xbf16>,
    %cst_3 = arith.constant 0.000000e+00 : bf16
    %3 = vector.broadcast %cst_3 : bf16 to vector<8x128xbf16>
    %c0_4 = arith.constant 0 : index
    %c512 = arith.constant 512 : index
    %4 = vector.load %arg17[%c0_4, %c512] : memref<8x640xbf16, #tpu.memory_space<vmem>>, vector<8x128xbf16>
    tpu.vector_store %arg17[%c0_4, %c512], %3 {strides = array<i32>} : memref<8x640xbf16, #tpu.memory_space<vmem>>, vector<8x128xbf16>,
    %c0_5 = arith.constant 0 : index
    %c0_6 = arith.constant 0 : index
    %c0_7 = arith.constant 0 : index
    %5 = vector.load %arg1[%c0_5, %c0_6, %c0_7] : memref<1x4x384xbf16, #tpu.memory_space<vmem>>, vector<1x4x384xbf16>
    %6 = vector.shape_cast %5 : vector<1x4x384xbf16> to vector<4x384xbf16>
    %c0_8 = arith.constant 0 : index
    %c128 = arith.constant 128 : index
    %7 = vector.load %arg17[%c0_8, %c128] : memref<8x640xbf16, #tpu.memory_space<vmem>>, vector<4x384xbf16>
    tpu.vector_store %arg17[%c0_8, %c128], %6 {strides = array<i32>} : memref<8x640xbf16, #tpu.memory_space<vmem>>, vector<4x384xbf16>,
    %c0_9 = arith.constant 0 : index
    %c0_10 = arith.constant 0 : index
    %c0_11 = arith.constant 0 : index
    %8 = vector.load %arg2[%c0_9, %c0_10, %c0_11] : memref<1x4x384xbf16, #tpu.memory_space<vmem>>, vector<1x4x384xbf16>
    %9 = vector.shape_cast %8 : vector<1x4x384xbf16> to vector<4x384xbf16>
    %c4 = arith.constant 4 : index
    %c128_12 = arith.constant 128 : index
    %10 = vector.load %arg17[%c4, %c128_12] : memref<8x640xbf16, #tpu.memory_space<vmem>>, vector<4x384xbf16>
    tpu.vector_store %arg17[%c4, %c128_12], %9 {strides = array<i32>} : memref<8x640xbf16, #tpu.memory_space<vmem>>, vector<4x384xbf16>,
    %c0_13 = arith.constant 0 : index
    %c0_14 = arith.constant 0 : index
    %11 = vector.load %arg6[%c0_13, %c0_14] : memref<8x1xf32, #tpu.memory_space<vmem>>, vector<8x1xf32>
    %cst_15 = arith.constant 0.000000e+00 : bf16
    %12 = vector.broadcast %cst_15 : bf16 to vector<8x384xbf16>
    %c8 = arith.constant 8 : index
    %c0_16 = arith.constant 0 : index
    %13 = vector.load %arg18[%c8, %c0_16] : memref<144x384xbf16, #tpu.memory_space<vmem>>, vector<8x384xbf16>
    tpu.vector_store %arg18[%c8, %c0_16], %12 {strides = array<i32>} : memref<144x384xbf16, #tpu.memory_space<vmem>>, vector<8x384xbf16>,
    %c24 = arith.constant 24 : index
    %c0_17 = arith.constant 0 : index
    %14 = vector.load %arg18[%c24, %c0_17] : memref<144x384xbf16, #tpu.memory_space<vmem>>, vector<8x384xbf16>
    tpu.vector_store %arg18[%c24, %c0_17], %12 {strides = array<i32>} : memref<144x384xbf16, #tpu.memory_space<vmem>>, vector<8x384xbf16>,
    %c40 = arith.constant 40 : index
    %c0_18 = arith.constant 0 : index
    %15 = vector.load %arg18[%c40, %c0_18] : memref<144x384xbf16, #tpu.memory_space<vmem>>, vector<8x384xbf16>
    tpu.vector_store %arg18[%c40, %c0_18], %12 {strides = array<i32>} : memref<144x384xbf16, #tpu.memory_space<vmem>>, vector<8x384xbf16>,
    %c56 = arith.constant 56 : index
    %c0_19 = arith.constant 0 : index
    %16 = vector.load %arg18[%c56, %c0_19] : memref<144x384xbf16, #tpu.memory_space<vmem>>, vector<8x384xbf16>
    tpu.vector_store %arg18[%c56, %c0_19], %12 {strides = array<i32>} : memref<144x384xbf16, #tpu.memory_space<vmem>>, vector<8x384xbf16>,
    %c72 = arith.constant 72 : index
    %c0_20 = arith.constant 0 : index
    %17 = vector.load %arg18[%c72, %c0_20] : memref<144x384xbf16, #tpu.memory_space<vmem>>, vector<8x384xbf16>
    tpu.vector_store %arg18[%c72, %c0_20], %12 {strides = array<i32>} : memref<144x384xbf16, #tpu.memory_space<vmem>>, vector<8x384xbf16>,
    %c88 = arith.constant 88 : index
    %c0_21 = arith.constant 0 : index
    %18 = vector.load %arg18[%c88, %c0_21] : memref<144x384xbf16, #tpu.memory_space<vmem>>, vector<8x384xbf16>
    tpu.vector_store %arg18[%c88, %c0_21], %12 {strides = array<i32>} : memref<144x384xbf16, #tpu.memory_space<vmem>>, vector<8x384xbf16>,
    %c104 = arith.constant 104 : index
    %c0_22 = arith.constant 0 : index
    %19 = vector.load %arg18[%c104, %c0_22] : memref<144x384xbf16, #tpu.memory_space<vmem>>, vector<8x384xbf16>
    tpu.vector_store %arg18[%c104, %c0_22], %12 {strides = array<i32>} : memref<144x384xbf16, #tpu.memory_space<vmem>>, vector<8x384xbf16>,
    %c120 = arith.constant 120 : index
    %c0_23 = arith.constant 0 : index
    %20 = vector.load %arg18[%c120, %c0_23] : memref<144x384xbf16, #tpu.memory_space<vmem>>, vector<8x384xbf16>
    tpu.vector_store %arg18[%c120, %c0_23], %12 {strides = array<i32>} : memref<144x384xbf16, #tpu.memory_space<vmem>>, vector<8x384xbf16>,
    %c136 = arith.constant 136 : index
    %c0_24 = arith.constant 0 : index
    %21 = vector.load %arg18[%c136, %c0_24] : memref<144x384xbf16, #tpu.memory_space<vmem>>, vector<8x384xbf16>
    tpu.vector_store %arg18[%c136, %c0_24], %12 {strides = array<i32>} : memref<144x384xbf16, #tpu.memory_space<vmem>>, vector<8x384xbf16>,
    %c0_25 = arith.constant 0 : index
    %c109 = arith.constant 109 : index
    %22 = vector.load %arg17[%c0_25, %c109] : memref<8x640xbf16, #tpu.memory_space<vmem>>, vector<8x384xbf16>
    %c0_26 = arith.constant 0 : index
    %c0_27 = arith.constant 0 : index
    %23 = vector.load %arg18[%c0_26, %c0_27] : memref<144x384xbf16, #tpu.memory_space<vmem>>, vector<8x384xbf16>
    tpu.vector_store %arg18[%c0_26, %c0_27], %22 {strides = array<i32>} : memref<144x384xbf16, #tpu.memory_space<vmem>>, vector<8x384xbf16>,
    %c0_28 = arith.constant 0 : index
    %c110 = arith.constant 110 : index
    %24 = vector.load %arg17[%c0_28, %c110] : memref<8x640xbf16, #tpu.memory_space<vmem>>, vector<8x384xbf16>
    %c16 = arith.constant 16 : index
    %c0_29 = arith.constant 0 : index
    %25 = vector.load %arg18[%c16, %c0_29] : memref<144x384xbf16, #tpu.memory_space<vmem>>, vector<8x384xbf16>
    tpu.vector_store %arg18[%c16, %c0_29], %24 {strides = array<i32>} : memref<144x384xbf16, #tpu.memory_space<vmem>>, vector<8x384xbf16>,
    %c0_30 = arith.constant 0 : index
    %c111 = arith.constant 111 : index
    %26 = vector.load %arg17[%c0_30, %c111] : memref<8x640xbf16, #tpu.memory_space<vmem>>, vector<8x384xbf16>
    %c32 = arith.constant 32 : index
    %c0_31 = arith.constant 0 : index
    %27 = vector.load %arg18[%c32, %c0_31] : memref<144x384xbf16, #tpu.memory_space<vmem>>, vector<8x384xbf16>
    tpu.vector_store %arg18[%c32, %c0_31], %26 {strides = array<i32>} : memref<144x384xbf16, #tpu.memory_space<vmem>>, vector<8x384xbf16>,
    %c0_32 = arith.constant 0 : index
    %c127 = arith.constant 127 : index
    %28 = vector.load %arg17[%c0_32, %c127] : memref<8x640xbf16, #tpu.memory_space<vmem>>, vector<8x384xbf16>
    %c48 = arith.constant 48 : index
    %c0_33 = arith.constant 0 : index
    %29 = vector.load %arg18[%c48, %c0_33] : memref<144x384xbf16, #tpu.memory_space<vmem>>, vector<8x384xbf16>
    tpu.vector_store %arg18[%c48, %c0_33], %28 {strides = array<i32>} : memref<144x384xbf16, #tpu.memory_space<vmem>>, vector<8x384xbf16>,
    %c0_34 = arith.constant 0 : index
    %c128_35 = arith.constant 128 : index
    %30 = vector.load %arg17[%c0_34, %c128_35] : memref<8x640xbf16, #tpu.memory_space<vmem>>, vector<8x384xbf16>
    %c64 = arith.constant 64 : index
    %c0_36 = arith.constant 0 : index
    %31 = vector.load %arg18[%c64, %c0_36] : memref<144x384xbf16, #tpu.memory_space<vmem>>, vector<8x384xbf16>
    tpu.vector_store %arg18[%c64, %c0_36], %30 {strides = array<i32>} : memref<144x384xbf16, #tpu.memory_space<vmem>>, vector<8x384xbf16>,
    %c0_37 = arith.constant 0 : index
    %c129 = arith.constant 129 : index
    %32 = vector.load %arg17[%c0_37, %c129] : memref<8x640xbf16, #tpu.memory_space<vmem>>, vector<8x384xbf16>
    %c80 = arith.constant 80 : index
    %c0_38 = arith.constant 0 : index
    %33 = vector.load %arg18[%c80, %c0_38] : memref<144x384xbf16, #tpu.memory_space<vmem>>, vector<8x384xbf16>
    tpu.vector_store %arg18[%c80, %c0_38], %32 {strides = array<i32>} : memref<144x384xbf16, #tpu.memory_space<vmem>>, vector<8x384xbf16>,
    %c0_39 = arith.constant 0 : index
    %c145 = arith.constant 145 : index
    %34 = vector.load %arg17[%c0_39, %c145] : memref<8x640xbf16, #tpu.memory_space<vmem>>, vector<8x384xbf16>
    %c96 = arith.constant 96 : index
    %c0_40 = arith.constant 0 : index
    %35 = vector.load %arg18[%c96, %c0_40] : memref<144x384xbf16, #tpu.memory_space<vmem>>, vector<8x384xbf16>
    tpu.vector_store %arg18[%c96, %c0_40], %34 {strides = array<i32>} : memref<144x384xbf16, #tpu.memory_space<vmem>>, vector<8x384xbf16>,
    %c0_41 = arith.constant 0 : index
    %c146 = arith.constant 146 : index
    %36 = vector.load %arg17[%c0_41, %c146] : memref<8x640xbf16, #tpu.memory_space<vmem>>, vector<8x384xbf16>
    %c112 = arith.constant 112 : index
    %c0_42 = arith.constant 0 : index
    %37 = vector.load %arg18[%c112, %c0_42] : memref<144x384xbf16, #tpu.memory_space<vmem>>, vector<8x384xbf16>
    tpu.vector_store %arg18[%c112, %c0_42], %36 {strides = array<i32>} : memref<144x384xbf16, #tpu.memory_space<vmem>>, vector<8x384xbf16>,
    %c0_43 = arith.constant 0 : index
    %c147 = arith.constant 147 : index
    %38 = vector.load %arg17[%c0_43, %c147] : memref<8x640xbf16, #tpu.memory_space<vmem>>, vector<8x384xbf16>
    %c128_44 = arith.constant 128 : index
    %c0_45 = arith.constant 0 : index
    %39 = vector.load %arg18[%c128_44, %c0_45] : memref<144x384xbf16, #tpu.memory_space<vmem>>, vector<8x384xbf16>
    tpu.vector_store %arg18[%c128_44, %c0_45], %38 {strides = array<i32>} : memref<144x384xbf16, #tpu.memory_space<vmem>>, vector<8x384xbf16>,
    %c0_46 = arith.constant 0 : index
    %c0_47 = arith.constant 0 : index
    %40 = vector.load %arg4[%c0_46, %c0_47] : memref<8x144xbf16, #tpu.memory_space<vmem>>, vector<8x144xbf16>
    %c0_48 = arith.constant 0 : index
    %c0_49 = arith.constant 0 : index
    %41 = vector.load %arg18[%c0_48, %c0_49] : memref<144x384xbf16, #tpu.memory_space<vmem>>, vector<144x384xbf16>
    %cst_50 = arith.constant dense<0.000000e+00> : vector<8x384xf32>
    %42 = tpu.matmul %40, %41, %cst_50 {dimension_numbers = #tpu.dot_dimension_numbers<[1], [0], [0], [1], [0, 0, 1, 1], [], []>} : vector<8x144xbf16>, vector<144x384xbf16>, vector<8x384xf32> -> vector<8x384xf32>
    %43 = vector.broadcast %0 : vector<1x384xf32> to vector<8x384xf32>
    %44 = arith.mulf %42, %43 : vector<8x384xf32>
    %45 = vector.shape_cast %44 : vector<8x384xf32> to vector<1x8x384xf32>
    %cst_51 = arith.constant dense<0.000000e+00> : vector<1xf32>
    %46 = vector.multi_reduction <add>, %45, %cst_51 [1, 2] : vector<1x8x384xf32> to vector<1xf32>
    %47 = vector.shape_cast %46 : vector<1xf32> to vector<1x1x1xf32>
    %48 = vector.extract %47[0, 0, 0] : f32 from vector<1x1x1xf32>
    %cst_52 = arith.constant 4.8828125E-4 : f32
    %49 = arith.mulf %48, %cst_52 : f32
    %50 = vector.broadcast %49 : f32 to vector<8x384xf32>
    %51 = arith.subf %42, %50 : vector<8x384xf32>
    %52 = vector.broadcast %0 : vector<1x384xf32> to vector<8x384xf32>
    %53 = arith.mulf %51, %52 : vector<8x384xf32>
    %54 = arith.mulf %53, %53 : vector<8x384xf32>
    %55 = vector.shape_cast %54 : vector<8x384xf32> to vector<1x8x384xf32>
    %cst_53 = arith.constant dense<0.000000e+00> : vector<1xf32>
    %56 = vector.multi_reduction <add>, %55, %cst_53 [1, 2] : vector<1x8x384xf32> to vector<1xf32>
    %57 = vector.shape_cast %56 : vector<1xf32> to vector<1x1x1xf32>
    %58 = vector.extract %57[0, 0, 0] : f32 from vector<1x1x1xf32>
    %cst_54 = arith.constant 4.8828125E-4 : f32
    %59 = arith.mulf %58, %cst_54 : f32
    %60 = vector.broadcast %49 : f32 to vector<8x384xf32>
    %61 = arith.subf %42, %60 : vector<8x384xf32>
    %cst_55 = arith.constant 9.99999974E-6 : f32
    %62 = arith.addf %59, %cst_55 : f32
    %63 = math.rsqrt %62 : f32
    %64 = vector.broadcast %63 : f32 to vector<8x384xf32>
    %65 = arith.mulf %61, %64 : vector<8x384xf32>
    %c0_56 = arith.constant 0 : index
    %c0_57 = arith.constant 0 : index
    %66 = vector.load %arg5[%c0_56, %c0_57] : memref<8x1xf32, #tpu.memory_space<vmem>>, vector<8x1xf32>
    %67 = vector.broadcast %66 : vector<8x1xf32> to vector<8x384xf32>
    %68 = arith.mulf %65, %67 : vector<8x384xf32>
    %69 = vector.broadcast %11 : vector<8x1xf32> to vector<8x384xf32>
    %70 = arith.addf %68, %69 : vector<8x384xf32>
    %71 = vector.broadcast %0 : vector<1x384xf32> to vector<8x384xf32>
    %72 = arith.mulf %70, %71 : vector<8x384xf32>
    %cst_58 = arith.constant 5.000000e-01 : f32
    %73 = vector.broadcast %cst_58 : f32 to vector<8x384xf32>
    %74 = arith.mulf %73, %72 : vector<8x384xf32>
    %cst_59 = arith.constant 0.707106769 : f32
    %75 = vector.broadcast %cst_59 : f32 to vector<8x384xf32>
    %76 = arith.mulf %72, %75 : vector<8x384xf32>
    %77 = math.absf %76 : vector<8x384xf32>
    %cst_60 = arith.constant 0.327591091 : f32
    %78 = vector.broadcast %cst_60 : f32 to vector<8x384xf32>
    %79 = arith.mulf %78, %77 : vector<8x384xf32>
    %cst_61 = arith.constant 1.000000e+00 : f32
    %80 = vector.broadcast %cst_61 : f32 to vector<8x384xf32>
    %81 = arith.addf %80, %79 : vector<8x384xf32>
    %cst_62 = arith.constant 1.000000e+00 : f32
    %82 = vector.broadcast %cst_62 : f32 to vector<8x384xf32>
    %83 = arith.divf %82, %81 : vector<8x384xf32>
    %cst_63 = arith.constant 1.06140542 : f32
    %84 = vector.broadcast %cst_63 : f32 to vector<8x384xf32>
    %85 = arith.mulf %84, %83 : vector<8x384xf32>
    %cst_64 = arith.constant -1.45315206 : f32
    %86 = vector.broadcast %cst_64 : f32 to vector<8x384xf32>
    %87 = arith.addf %85, %86 : vector<8x384xf32>
    %88 = arith.mulf %87, %83 : vector<8x384xf32>
    %cst_65 = arith.constant 1.42141378 : f32
    %89 = vector.broadcast %cst_65 : f32 to vector<8x384xf32>
    %90 = arith.addf %88, %89 : vector<8x384xf32>
    %91 = arith.mulf %90, %83 : vector<8x384xf32>
    %cst_66 = arith.constant -0.284496725 : f32
    %92 = vector.broadcast %cst_66 : f32 to vector<8x384xf32>
    %93 = arith.addf %91, %92 : vector<8x384xf32>
    %94 = arith.mulf %93, %83 : vector<8x384xf32>
    %cst_67 = arith.constant 0.254829586 : f32
    %95 = vector.broadcast %cst_67 : f32 to vector<8x384xf32>
    %96 = arith.addf %94, %95 : vector<8x384xf32>
    %97 = arith.mulf %96, %83 : vector<8x384xf32>
    %cst_68 = arith.constant 0.000000e+00 : f32
    %98 = vector.broadcast %cst_68 : f32 to vector<8x384xf32>
    %99 = arith.subf %98, %77 : vector<8x384xf32>
    %100 = arith.mulf %99, %77 : vector<8x384xf32>
    %101 = math.exp %100 : vector<8x384xf32>
    %102 = arith.mulf %97, %101 : vector<8x384xf32>
    %cst_69 = arith.constant 1.000000e+00 : f32
    %103 = vector.broadcast %cst_69 : f32 to vector<8x384xf32>
    %104 = arith.subf %103, %102 : vector<8x384xf32>
    %cst_70 = arith.constant 0.000000e+00 : f32
    %105 = vector.broadcast %cst_70 : f32 to vector<8x384xf32>
    %106 = arith.cmpf oge, %76, %105 : vector<8x384xf32>
    %cst_71 = arith.constant 0.000000e+00 : f32
    %107 = vector.broadcast %cst_71 : f32 to vector<8x384xf32>
    %108 = arith.subf %107, %104 : vector<8x384xf32>
    %109 = arith.select %106, %104, %108 : vector<8x384xi1>, vector<8x384xf32>
    %cst_72 = arith.constant 1.000000e+00 : f32
    %110 = vector.broadcast %cst_72 : f32 to vector<8x384xf32>
    %111 = arith.addf %110, %109 : vector<8x384xf32>
    %112 = arith.mulf %74, %111 : vector<8x384xf32>
    %113 = arith.truncf %112 : vector<8x384xf32> to vector<8x384xbf16>
    %c0_73 = arith.constant 0 : index
    %c128_74 = arith.constant 128 : index
    %114 = vector.load %arg17[%c0_73, %c128_74] : memref<8x640xbf16, #tpu.memory_space<vmem>>, vector<8x384xbf16>
    tpu.vector_store %arg17[%c0_73, %c128_74], %113 {strides = array<i32>} : memref<8x640xbf16, #tpu.memory_space<vmem>>, vector<8x384xbf16>,
    %c0_75 = arith.constant 0 : index
    %c0_76 = arith.constant 0 : index
    %115 = vector.load %arg9[%c0_75, %c0_76] : memref<8x1xf32, #tpu.memory_space<vmem>>, vector<8x1xf32>
    %cst_77 = arith.constant 0.000000e+00 : bf16
    %116 = vector.broadcast %cst_77 : bf16 to vector<8x384xbf16>
    %c8_78 = arith.constant 8 : index
    %c0_79 = arith.constant 0 : index
    %117 = vector.load %arg18[%c8_78, %c0_79] : memref<144x384xbf16, #tpu.memory_space<vmem>>, vector<8x384xbf16>
    tpu.vector_store %arg18[%c8_78, %c0_79], %116 {strides = array<i32>} : memref<144x384xbf16, #tpu.memory_space<vmem>>, vector<8x384xbf16>,
    %c24_80 = arith.constant 24 : index
    %c0_81 = arith.constant 0 : index
    %118 = vector.load %arg18[%c24_80, %c0_81] : memref<144x384xbf16, #tpu.memory_space<vmem>>, vector<8x384xbf16>
    tpu.vector_store %arg18[%c24_80, %c0_81], %116 {strides = array<i32>} : memref<144x384xbf16, #tpu.memory_space<vmem>>, vector<8x384xbf16>,
    %c40_82 = arith.constant 40 : index
    %c0_83 = arith.constant 0 : index
    %119 = vector.load %arg18[%c40_82, %c0_83] : memref<144x384xbf16, #tpu.memory_space<vmem>>, vector<8x384xbf16>
    tpu.vector_store %arg18[%c40_82, %c0_83], %116 {strides = array<i32>} : memref<144x384xbf16, #tpu.memory_space<vmem>>, vector<8x384xbf16>,
    %c56_84 = arith.constant 56 : index
    %c0_85 = arith.constant 0 : index
    %120 = vector.load %arg18[%c56_84, %c0_85] : memref<144x384xbf16, #tpu.memory_space<vmem>>, vector<8x384xbf16>
    tpu.vector_store %arg18[%c56_84, %c0_85], %116 {strides = array<i32>} : memref<144x384xbf16, #tpu.memory_space<vmem>>, vector<8x384xbf16>,
    %c72_86 = arith.constant 72 : index
    %c0_87 = arith.constant 0 : index
    %121 = vector.load %arg18[%c72_86, %c0_87] : memref<144x384xbf16, #tpu.memory_space<vmem>>, vector<8x384xbf16>
    tpu.vector_store %arg18[%c72_86, %c0_87], %116 {strides = array<i32>} : memref<144x384xbf16, #tpu.memory_space<vmem>>, vector<8x384xbf16>,
    %c88_88 = arith.constant 88 : index
    %c0_89 = arith.constant 0 : index
    %122 = vector.load %arg18[%c88_88, %c0_89] : memref<144x384xbf16, #tpu.memory_space<vmem>>, vector<8x384xbf16>
    tpu.vector_store %arg18[%c88_88, %c0_89], %116 {strides = array<i32>} : memref<144x384xbf16, #tpu.memory_space<vmem>>, vector<8x384xbf16>,
    %c104_90 = arith.constant 104 : index
    %c0_91 = arith.constant 0 : index
    %123 = vector.load %arg18[%c104_90, %c0_91] : memref<144x384xbf16, #tpu.memory_space<vmem>>, vector<8x384xbf16>
    tpu.vector_store %arg18[%c104_90, %c0_91], %116 {strides = array<i32>} : memref<144x384xbf16, #tpu.memory_space<vmem>>, vector<8x384xbf16>,
    %c120_92 = arith.constant 120 : index
    %c0_93 = arith.constant 0 : index
    %124 = vector.load %arg18[%c120_92, %c0_93] : memref<144x384xbf16, #tpu.memory_space<vmem>>, vector<8x384xbf16>
    tpu.vector_store %arg18[%c120_92, %c0_93], %116 {strides = array<i32>} : memref<144x384xbf16, #tpu.memory_space<vmem>>, vector<8x384xbf16>,
    %c136_94 = arith.constant 136 : index
    %c0_95 = arith.constant 0 : index
    %125 = vector.load %arg18[%c136_94, %c0_95] : memref<144x384xbf16, #tpu.memory_space<vmem>>, vector<8x384xbf16>
    tpu.vector_store %arg18[%c136_94, %c0_95], %116 {strides = array<i32>} : memref<144x384xbf16, #tpu.memory_space<vmem>>, vector<8x384xbf16>,
    %c0_96 = arith.constant 0 : index
    %c109_97 = arith.constant 109 : index
    %126 = vector.load %arg17[%c0_96, %c109_97] : memref<8x640xbf16, #tpu.memory_space<vmem>>, vector<8x384xbf16>
    %c0_98 = arith.constant 0 : index
    %c0_99 = arith.constant 0 : index
    %127 = vector.load %arg18[%c0_98, %c0_99] : memref<144x384xbf16, #tpu.memory_space<vmem>>, vector<8x384xbf16>
    tpu.vector_store %arg18[%c0_98, %c0_99], %126 {strides = array<i32>} : memref<144x384xbf16, #tpu.memory_space<vmem>>, vector<8x384xbf16>,
    %c0_100 = arith.constant 0 : index
    %c110_101 = arith.constant 110 : index
    %128 = vector.load %arg17[%c0_100, %c110_101] : memref<8x640xbf16, #tpu.memory_space<vmem>>, vector<8x384xbf16>
    %c16_102 = arith.constant 16 : index
    %c0_103 = arith.constant 0 : index
    %129 = vector.load %arg18[%c16_102, %c0_103] : memref<144x384xbf16, #tpu.memory_space<vmem>>, vector<8x384xbf16>
    tpu.vector_store %arg18[%c16_102, %c0_103], %128 {strides = array<i32>} : memref<144x384xbf16, #tpu.memory_space<vmem>>, vector<8x384xbf16>,
    %c0_104 = arith.constant 0 : index
    %c111_105 = arith.constant 111 : index
    %130 = vector.load %arg17[%c0_104, %c111_105] : memref<8x640xbf16, #tpu.memory_space<vmem>>, vector<8x384xbf16>
    %c32_106 = arith.constant 32 : index
    %c0_107 = arith.constant 0 : index
    %131 = vector.load %arg18[%c32_106, %c0_107] : memref<144x384xbf16, #tpu.memory_space<vmem>>, vector<8x384xbf16>
    tpu.vector_store %arg18[%c32_106, %c0_107], %130 {strides = array<i32>} : memref<144x384xbf16, #tpu.memory_space<vmem>>, vector<8x384xbf16>,
    %c0_108 = arith.constant 0 : index
    %c127_109 = arith.constant 127 : index
    %132 = vector.load %arg17[%c0_108, %c127_109] : memref<8x640xbf16, #tpu.memory_space<vmem>>, vector<8x384xbf16>
    %c48_110 = arith.constant 48 : index
    %c0_111 = arith.constant 0 : index
    %133 = vector.load %arg18[%c48_110, %c0_111] : memref<144x384xbf16, #tpu.memory_space<vmem>>, vector<8x384xbf16>
    tpu.vector_store %arg18[%c48_110, %c0_111], %132 {strides = array<i32>} : memref<144x384xbf16, #tpu.memory_space<vmem>>, vector<8x384xbf16>,
    %c0_112 = arith.constant 0 : index
    %c128_113 = arith.constant 128 : index
    %134 = vector.load %arg17[%c0_112, %c128_113] : memref<8x640xbf16, #tpu.memory_space<vmem>>, vector<8x384xbf16>
    %c64_114 = arith.constant 64 : index
    %c0_115 = arith.constant 0 : index
    %135 = vector.load %arg18[%c64_114, %c0_115] : memref<144x384xbf16, #tpu.memory_space<vmem>>, vector<8x384xbf16>
    tpu.vector_store %arg18[%c64_114, %c0_115], %134 {strides = array<i32>} : memref<144x384xbf16, #tpu.memory_space<vmem>>, vector<8x384xbf16>,
    %c0_116 = arith.constant 0 : index
    %c129_117 = arith.constant 129 : index
    %136 = vector.load %arg17[%c0_116, %c129_117] : memref<8x640xbf16, #tpu.memory_space<vmem>>, vector<8x384xbf16>
    %c80_118 = arith.constant 80 : index
    %c0_119 = arith.constant 0 : index
    %137 = vector.load %arg18[%c80_118, %c0_119] : memref<144x384xbf16, #tpu.memory_space<vmem>>, vector<8x384xbf16>
    tpu.vector_store %arg18[%c80_118, %c0_119], %136 {strides = array<i32>} : memref<144x384xbf16, #tpu.memory_space<vmem>>, vector<8x384xbf16>,
    %c0_120 = arith.constant 0 : index
    %c145_121 = arith.constant 145 : index
    %138 = vector.load %arg17[%c0_120, %c145_121] : memref<8x640xbf16, #tpu.memory_space<vmem>>, vector<8x384xbf16>
    %c96_122 = arith.constant 96 : index
    %c0_123 = arith.constant 0 : index
    %139 = vector.load %arg18[%c96_122, %c0_123] : memref<144x384xbf16, #tpu.memory_space<vmem>>, vector<8x384xbf16>
    tpu.vector_store %arg18[%c96_122, %c0_123], %138 {strides = array<i32>} : memref<144x384xbf16, #tpu.memory_space<vmem>>, vector<8x384xbf16>,
    %c0_124 = arith.constant 0 : index
    %c146_125 = arith.constant 146 : index
    %140 = vector.load %arg17[%c0_124, %c146_125] : memref<8x640xbf16, #tpu.memory_space<vmem>>, vector<8x384xbf16>
    %c112_126 = arith.constant 112 : index
    %c0_127 = arith.constant 0 : index
    %141 = vector.load %arg18[%c112_126, %c0_127] : memref<144x384xbf16, #tpu.memory_space<vmem>>, vector<8x384xbf16>
    tpu.vector_store %arg18[%c112_126, %c0_127], %140 {strides = array<i32>} : memref<144x384xbf16, #tpu.memory_space<vmem>>, vector<8x384xbf16>,
    %c0_128 = arith.constant 0 : index
    %c147_129 = arith.constant 147 : index
    %142 = vector.load %arg17[%c0_128, %c147_129] : memref<8x640xbf16, #tpu.memory_space<vmem>>, vector<8x384xbf16>
    %c128_130 = arith.constant 128 : index
    %c0_131 = arith.constant 0 : index
    %143 = vector.load %arg18[%c128_130, %c0_131] : memref<144x384xbf16, #tpu.memory_space<vmem>>, vector<8x384xbf16>
    tpu.vector_store %arg18[%c128_130, %c0_131], %142 {strides = array<i32>} : memref<144x384xbf16, #tpu.memory_space<vmem>>, vector<8x384xbf16>,
    %c0_132 = arith.constant 0 : index
    %c0_133 = arith.constant 0 : index
    %144 = vector.load %arg7[%c0_132, %c0_133] : memref<8x144xbf16, #tpu.memory_space<vmem>>, vector<8x144xbf16>
    %c0_134 = arith.constant 0 : index
    %c0_135 = arith.constant 0 : index
    %145 = vector.load %arg18[%c0_134, %c0_135] : memref<144x384xbf16, #tpu.memory_space<vmem>>, vector<144x384xbf16>
    %cst_136 = arith.constant dense<0.000000e+00> : vector<8x384xf32>
    %146 = tpu.matmul %144, %145, %cst_136 {dimension_numbers = #tpu.dot_dimension_numbers<[1], [0], [0], [1], [0, 0, 1, 1], [], []>} : vector<8x144xbf16>, vector<144x384xbf16>, vector<8x384xf32> -> vector<8x384xf32>
    %147 = vector.broadcast %0 : vector<1x384xf32> to vector<8x384xf32>
    %148 = arith.mulf %146, %147 : vector<8x384xf32>
    %149 = vector.shape_cast %148 : vector<8x384xf32> to vector<1x8x384xf32>
    %cst_137 = arith.constant dense<0.000000e+00> : vector<1xf32>
    %150 = vector.multi_reduction <add>, %149, %cst_137 [1, 2] : vector<1x8x384xf32> to vector<1xf32>
    %151 = vector.shape_cast %150 : vector<1xf32> to vector<1x1x1xf32>
    %152 = vector.extract %151[0, 0, 0] : f32 from vector<1x1x1xf32>
    %cst_138 = arith.constant 4.8828125E-4 : f32
    %153 = arith.mulf %152, %cst_138 : f32
    %154 = vector.broadcast %153 : f32 to vector<8x384xf32>
    %155 = arith.subf %146, %154 : vector<8x384xf32>
    %156 = vector.broadcast %0 : vector<1x384xf32> to vector<8x384xf32>
    %157 = arith.mulf %155, %156 : vector<8x384xf32>
    %158 = arith.mulf %157, %157 : vector<8x384xf32>
    %159 = vector.shape_cast %158 : vector<8x384xf32> to vector<1x8x384xf32>
    %cst_139 = arith.constant dense<0.000000e+00> : vector<1xf32>
    %160 = vector.multi_reduction <add>, %159, %cst_139 [1, 2] : vector<1x8x384xf32> to vector<1xf32>
    %161 = vector.shape_cast %160 : vector<1xf32> to vector<1x1x1xf32>
    %162 = vector.extract %161[0, 0, 0] : f32 from vector<1x1x1xf32>
    %cst_140 = arith.constant 4.8828125E-4 : f32
    %163 = arith.mulf %162, %cst_140 : f32
    %164 = vector.broadcast %153 : f32 to vector<8x384xf32>
    %165 = arith.subf %146, %164 : vector<8x384xf32>
    %cst_141 = arith.constant 9.99999974E-6 : f32
    %166 = arith.addf %163, %cst_141 : f32
    %167 = math.rsqrt %166 : f32
    %168 = vector.broadcast %167 : f32 to vector<8x384xf32>
    %169 = arith.mulf %165, %168 : vector<8x384xf32>
    %c0_142 = arith.constant 0 : index
    %c0_143 = arith.constant 0 : index
    %170 = vector.load %arg8[%c0_142, %c0_143] : memref<8x1xf32, #tpu.memory_space<vmem>>, vector<8x1xf32>
    %171 = vector.broadcast %170 : vector<8x1xf32> to vector<8x384xf32>
    %172 = arith.mulf %169, %171 : vector<8x384xf32>
    %173 = vector.broadcast %115 : vector<8x1xf32> to vector<8x384xf32>
    %174 = arith.addf %172, %173 : vector<8x384xf32>
    %175 = vector.broadcast %0 : vector<1x384xf32> to vector<8x384xf32>
    %176 = arith.mulf %174, %175 : vector<8x384xf32>
    %c0_144 = arith.constant 0 : index
    %c0_145 = arith.constant 0 : index
    %c0_146 = arith.constant 0 : index
    %177 = vector.load %arg1[%c0_144, %c0_145, %c0_146] : memref<1x4x384xbf16, #tpu.memory_space<vmem>>, vector<1x4x384xbf16>
    %178 = vector.shape_cast %177 : vector<1x4x384xbf16> to vector<4x384xbf16>
    %179 = arith.extf %178 : vector<4x384xbf16> to vector<4x384xf32>
    %180 = vector.extract_strided_slice %176 {offsets = [0, 0], sizes = [4, 384], strides = [1, 1]} : vector<8x384xf32> to vector<4x384xf32>
    %181 = arith.addf %179, %180 : vector<4x384xf32>
    %cst_147 = arith.constant 5.000000e-01 : f32
    %182 = vector.broadcast %cst_147 : f32 to vector<4x384xf32>
    %183 = arith.mulf %182, %181 : vector<4x384xf32>
    %cst_148 = arith.constant 0.707106769 : f32
    %184 = vector.broadcast %cst_148 : f32 to vector<4x384xf32>
    %185 = arith.mulf %181, %184 : vector<4x384xf32>
    %186 = math.absf %185 : vector<4x384xf32>
    %cst_149 = arith.constant 0.327591091 : f32
    %187 = vector.broadcast %cst_149 : f32 to vector<4x384xf32>
    %188 = arith.mulf %187, %186 : vector<4x384xf32>
    %cst_150 = arith.constant 1.000000e+00 : f32
    %189 = vector.broadcast %cst_150 : f32 to vector<4x384xf32>
    %190 = arith.addf %189, %188 : vector<4x384xf32>
    %cst_151 = arith.constant 1.000000e+00 : f32
    %191 = vector.broadcast %cst_151 : f32 to vector<4x384xf32>
    %192 = arith.divf %191, %190 : vector<4x384xf32>
    %cst_152 = arith.constant 1.06140542 : f32
    %193 = vector.broadcast %cst_152 : f32 to vector<4x384xf32>
    %194 = arith.mulf %193, %192 : vector<4x384xf32>
    %cst_153 = arith.constant -1.45315206 : f32
    %195 = vector.broadcast %cst_153 : f32 to vector<4x384xf32>
    %196 = arith.addf %194, %195 : vector<4x384xf32>
    %197 = arith.mulf %196, %192 : vector<4x384xf32>
    %cst_154 = arith.constant 1.42141378 : f32
    %198 = vector.broadcast %cst_154 : f32 to vector<4x384xf32>
    %199 = arith.addf %197, %198 : vector<4x384xf32>
    %200 = arith.mulf %199, %192 : vector<4x384xf32>
    %cst_155 = arith.constant -0.284496725 : f32
    %201 = vector.broadcast %cst_155 : f32 to vector<4x384xf32>
    %202 = arith.addf %200, %201 : vector<4x384xf32>
    %203 = arith.mulf %202, %192 : vector<4x384xf32>
    %cst_156 = arith.constant 0.254829586 : f32
    %204 = vector.broadcast %cst_156 : f32 to vector<4x384xf32>
    %205 = arith.addf %203, %204 : vector<4x384xf32>
    %206 = arith.mulf %205, %192 : vector<4x384xf32>
    %cst_157 = arith.constant 0.000000e+00 : f32
    %207 = vector.broadcast %cst_157 : f32 to vector<4x384xf32>
    %208 = arith.subf %207, %186 : vector<4x384xf32>
    %209 = arith.mulf %208, %186 : vector<4x384xf32>
    %210 = math.exp %209 : vector<4x384xf32>
    %211 = arith.mulf %206, %210 : vector<4x384xf32>
    %cst_158 = arith.constant 1.000000e+00 : f32
    %212 = vector.broadcast %cst_158 : f32 to vector<4x384xf32>
    %213 = arith.subf %212, %211 : vector<4x384xf32>
    %cst_159 = arith.constant 0.000000e+00 : f32
    %214 = vector.broadcast %cst_159 : f32 to vector<4x384xf32>
    %215 = arith.cmpf oge, %185, %214 : vector<4x384xf32>
    %cst_160 = arith.constant 0.000000e+00 : f32
    %216 = vector.broadcast %cst_160 : f32 to vector<4x384xf32>
    %217 = arith.subf %216, %213 : vector<4x384xf32>
    %218 = arith.select %215, %213, %217 : vector<4x384xi1>, vector<4x384xf32>
    %cst_161 = arith.constant 1.000000e+00 : f32
    %219 = vector.broadcast %cst_161 : f32 to vector<4x384xf32>
    %220 = arith.addf %219, %218 : vector<4x384xf32>
    %221 = arith.mulf %183, %220 : vector<4x384xf32>
    %222 = arith.truncf %221 : vector<4x384xf32> to vector<4x384xbf16>
    %c0_162 = arith.constant 0 : index
    %c128_163 = arith.constant 128 : index
    %223 = vector.load %arg17[%c0_162, %c128_163] : memref<8x640xbf16, #tpu.memory_space<vmem>>, vector<4x384xbf16>
    tpu.vector_store %arg17[%c0_162, %c128_163], %222 {strides = array<i32>} : memref<8x640xbf16, #tpu.memory_space<vmem>>, vector<4x384xbf16>,
    %c0_164 = arith.constant 0 : index
    %c0_165 = arith.constant 0 : index
    %c0_166 = arith.constant 0 : index
    %224 = vector.load %arg2[%c0_164, %c0_165, %c0_166] : memref<1x4x384xbf16, #tpu.memory_space<vmem>>, vector<1x4x384xbf16>
    %225 = vector.shape_cast %224 : vector<1x4x384xbf16> to vector<4x384xbf16>
    %226 = arith.extf %225 : vector<4x384xbf16> to vector<4x384xf32>
    %227 = vector.extract_strided_slice %176 {offsets = [4, 0], sizes = [4, 384], strides = [1, 1]} : vector<8x384xf32> to vector<4x384xf32>
    %228 = arith.addf %226, %227 : vector<4x384xf32>
    %cst_167 = arith.constant 5.000000e-01 : f32
    %229 = vector.broadcast %cst_167 : f32 to vector<4x384xf32>
    %230 = arith.mulf %229, %228 : vector<4x384xf32>
    %cst_168 = arith.constant 0.707106769 : f32
    %231 = vector.broadcast %cst_168 : f32 to vector<4x384xf32>
    %232 = arith.mulf %228, %231 : vector<4x384xf32>
    %233 = math.absf %232 : vector<4x384xf32>
    %cst_169 = arith.constant 0.327591091 : f32
    %234 = vector.broadcast %cst_169 : f32 to vector<4x384xf32>
    %235 = arith.mulf %234, %233 : vector<4x384xf32>
    %cst_170 = arith.constant 1.000000e+00 : f32
    %236 = vector.broadcast %cst_170 : f32 to vector<4x384xf32>
    %237 = arith.addf %236, %235 : vector<4x384xf32>
    %cst_171 = arith.constant 1.000000e+00 : f32
    %238 = vector.broadcast %cst_171 : f32 to vector<4x384xf32>
    %239 = arith.divf %238, %237 : vector<4x384xf32>
    %cst_172 = arith.constant 1.06140542 : f32
    %240 = vector.broadcast %cst_172 : f32 to vector<4x384xf32>
    %241 = arith.mulf %240, %239 : vector<4x384xf32>
    %cst_173 = arith.constant -1.45315206 : f32
    %242 = vector.broadcast %cst_173 : f32 to vector<4x384xf32>
    %243 = arith.addf %241, %242 : vector<4x384xf32>
    %244 = arith.mulf %243, %239 : vector<4x384xf32>
    %cst_174 = arith.constant 1.42141378 : f32
    %245 = vector.broadcast %cst_174 : f32 to vector<4x384xf32>
    %246 = arith.addf %244, %245 : vector<4x384xf32>
    %247 = arith.mulf %246, %239 : vector<4x384xf32>
    %cst_175 = arith.constant -0.284496725 : f32
    %248 = vector.broadcast %cst_175 : f32 to vector<4x384xf32>
    %249 = arith.addf %247, %248 : vector<4x384xf32>
    %250 = arith.mulf %249, %239 : vector<4x384xf32>
    %cst_176 = arith.constant 0.254829586 : f32
    %251 = vector.broadcast %cst_176 : f32 to vector<4x384xf32>
    %252 = arith.addf %250, %251 : vector<4x384xf32>
    %253 = arith.mulf %252, %239 : vector<4x384xf32>
    %cst_177 = arith.constant 0.000000e+00 : f32
    %254 = vector.broadcast %cst_177 : f32 to vector<4x384xf32>
    %255 = arith.subf %254, %233 : vector<4x384xf32>
    %256 = arith.mulf %255, %233 : vector<4x384xf32>
    %257 = math.exp %256 : vector<4x384xf32>
    %258 = arith.mulf %253, %257 : vector<4x384xf32>
    %cst_178 = arith.constant 1.000000e+00 : f32
    %259 = vector.broadcast %cst_178 : f32 to vector<4x384xf32>
    %260 = arith.subf %259, %258 : vector<4x384xf32>
    %cst_179 = arith.constant 0.000000e+00 : f32
    %261 = vector.broadcast %cst_179 : f32 to vector<4x384xf32>
    %262 = arith.cmpf oge, %232, %261 : vector<4x384xf32>
    %cst_180 = arith.constant 0.000000e+00 : f32
    %263 = vector.broadcast %cst_180 : f32 to vector<4x384xf32>
    %264 = arith.subf %263, %260 : vector<4x384xf32>
    %265 = arith.select %262, %260, %264 : vector<4x384xi1>, vector<4x384xf32>
    %cst_181 = arith.constant 1.000000e+00 : f32
    %266 = vector.broadcast %cst_181 : f32 to vector<4x384xf32>
    %267 = arith.addf %266, %265 : vector<4x384xf32>
    %268 = arith.mulf %230, %267 : vector<4x384xf32>
    %269 = arith.truncf %268 : vector<4x384xf32> to vector<4x384xbf16>
    %c4_182 = arith.constant 4 : index
    %c128_183 = arith.constant 128 : index
    %270 = vector.load %arg17[%c4_182, %c128_183] : memref<8x640xbf16, #tpu.memory_space<vmem>>, vector<4x384xbf16>
    tpu.vector_store %arg17[%c4_182, %c128_183], %269 {strides = array<i32>} : memref<8x640xbf16, #tpu.memory_space<vmem>>, vector<4x384xbf16>,
    %c0_184 = arith.constant 0 : index
    %c0_185 = arith.constant 0 : index
    %271 = vector.load %arg12[%c0_184, %c0_185] : memref<4x1xf32, #tpu.memory_space<vmem>>, vector<4x1xf32>
    %cst_186 = arith.constant 0.000000e+00 : bf16
    %272 = vector.broadcast %cst_186 : bf16 to vector<8x384xbf16>
    %c8_187 = arith.constant 8 : index
    %c0_188 = arith.constant 0 : index
    %273 = vector.load %arg18[%c8_187, %c0_188] : memref<144x384xbf16, #tpu.memory_space<vmem>>, vector<8x384xbf16>
    tpu.vector_store %arg18[%c8_187, %c0_188], %272 {strides = array<i32>} : memref<144x384xbf16, #tpu.memory_space<vmem>>, vector<8x384xbf16>,
    %c24_189 = arith.constant 24 : index
    %c0_190 = arith.constant 0 : index
    %274 = vector.load %arg18[%c24_189, %c0_190] : memref<144x384xbf16, #tpu.memory_space<vmem>>, vector<8x384xbf16>
    tpu.vector_store %arg18[%c24_189, %c0_190], %272 {strides = array<i32>} : memref<144x384xbf16, #tpu.memory_space<vmem>>, vector<8x384xbf16>,
    %c40_191 = arith.constant 40 : index
    %c0_192 = arith.constant 0 : index
    %275 = vector.load %arg18[%c40_191, %c0_192] : memref<144x384xbf16, #tpu.memory_space<vmem>>, vector<8x384xbf16>
    tpu.vector_store %arg18[%c40_191, %c0_192], %272 {strides = array<i32>} : memref<144x384xbf16, #tpu.memory_space<vmem>>, vector<8x384xbf16>,
    %c56_193 = arith.constant 56 : index
    %c0_194 = arith.constant 0 : index
    %276 = vector.load %arg18[%c56_193, %c0_194] : memref<144x384xbf16, #tpu.memory_space<vmem>>, vector<8x384xbf16>
    tpu.vector_store %arg18[%c56_193, %c0_194], %272 {strides = array<i32>} : memref<144x384xbf16, #tpu.memory_space<vmem>>, vector<8x384xbf16>,
    %c72_195 = arith.constant 72 : index
    %c0_196 = arith.constant 0 : index
    %277 = vector.load %arg18[%c72_195, %c0_196] : memref<144x384xbf16, #tpu.memory_space<vmem>>, vector<8x384xbf16>
    tpu.vector_store %arg18[%c72_195, %c0_196], %272 {strides = array<i32>} : memref<144x384xbf16, #tpu.memory_space<vmem>>, vector<8x384xbf16>,
    %c88_197 = arith.constant 88 : index
    %c0_198 = arith.constant 0 : index
    %278 = vector.load %arg18[%c88_197, %c0_198] : memref<144x384xbf16, #tpu.memory_space<vmem>>, vector<8x384xbf16>
    tpu.vector_store %arg18[%c88_197, %c0_198], %272 {strides = array<i32>} : memref<144x384xbf16, #tpu.memory_space<vmem>>, vector<8x384xbf16>,
    %c104_199 = arith.constant 104 : index
    %c0_200 = arith.constant 0 : index
    %279 = vector.load %arg18[%c104_199, %c0_200] : memref<144x384xbf16, #tpu.memory_space<vmem>>, vector<8x384xbf16>
    tpu.vector_store %arg18[%c104_199, %c0_200], %272 {strides = array<i32>} : memref<144x384xbf16, #tpu.memory_space<vmem>>, vector<8x384xbf16>,
    %c120_201 = arith.constant 120 : index
    %c0_202 = arith.constant 0 : index
    %280 = vector.load %arg18[%c120_201, %c0_202] : memref<144x384xbf16, #tpu.memory_space<vmem>>, vector<8x384xbf16>
    tpu.vector_store %arg18[%c120_201, %c0_202], %272 {strides = array<i32>} : memref<144x384xbf16, #tpu.memory_space<vmem>>, vector<8x384xbf16>,
    %c136_203 = arith.constant 136 : index
    %c0_204 = arith.constant 0 : index
    %281 = vector.load %arg18[%c136_203, %c0_204] : memref<144x384xbf16, #tpu.memory_space<vmem>>, vector<8x384xbf16>
    tpu.vector_store %arg18[%c136_203, %c0_204], %272 {strides = array<i32>} : memref<144x384xbf16, #tpu.memory_space<vmem>>, vector<8x384xbf16>,
    %c0_205 = arith.constant 0 : index
    %c109_206 = arith.constant 109 : index
    %282 = vector.load %arg17[%c0_205, %c109_206] : memref<8x640xbf16, #tpu.memory_space<vmem>>, vector<8x384xbf16>
    %c0_207 = arith.constant 0 : index
    %c0_208 = arith.constant 0 : index
    %283 = vector.load %arg18[%c0_207, %c0_208] : memref<144x384xbf16, #tpu.memory_space<vmem>>, vector<8x384xbf16>
    tpu.vector_store %arg18[%c0_207, %c0_208], %282 {strides = array<i32>} : memref<144x384xbf16, #tpu.memory_space<vmem>>, vector<8x384xbf16>,
    %c0_209 = arith.constant 0 : index
    %c110_210 = arith.constant 110 : index
    %284 = vector.load %arg17[%c0_209, %c110_210] : memref<8x640xbf16, #tpu.memory_space<vmem>>, vector<8x384xbf16>
    %c16_211 = arith.constant 16 : index
    %c0_212 = arith.constant 0 : index
    %285 = vector.load %arg18[%c16_211, %c0_212] : memref<144x384xbf16, #tpu.memory_space<vmem>>, vector<8x384xbf16>
    tpu.vector_store %arg18[%c16_211, %c0_212], %284 {strides = array<i32>} : memref<144x384xbf16, #tpu.memory_space<vmem>>, vector<8x384xbf16>,
    %c0_213 = arith.constant 0 : index
    %c111_214 = arith.constant 111 : index
    %286 = vector.load %arg17[%c0_213, %c111_214] : memref<8x640xbf16, #tpu.memory_space<vmem>>, vector<8x384xbf16>
    %c32_215 = arith.constant 32 : index
    %c0_216 = arith.constant 0 : index
    %287 = vector.load %arg18[%c32_215, %c0_216] : memref<144x384xbf16, #tpu.memory_space<vmem>>, vector<8x384xbf16>
    tpu.vector_store %arg18[%c32_215, %c0_216], %286 {strides = array<i32>} : memref<144x384xbf16, #tpu.memory_space<vmem>>, vector<8x384xbf16>,
    %c0_217 = arith.constant 0 : index
    %c127_218 = arith.constant 127 : index
    %288 = vector.load %arg17[%c0_217, %c127_218] : memref<8x640xbf16, #tpu.memory_space<vmem>>, vector<8x384xbf16>
    %c48_219 = arith.constant 48 : index
    %c0_220 = arith.constant 0 : index
    %289 = vector.load %arg18[%c48_219, %c0_220] : memref<144x384xbf16, #tpu.memory_space<vmem>>, vector<8x384xbf16>
    tpu.vector_store %arg18[%c48_219, %c0_220], %288 {strides = array<i32>} : memref<144x384xbf16, #tpu.memory_space<vmem>>, vector<8x384xbf16>,
    %c0_221 = arith.constant 0 : index
    %c128_222 = arith.constant 128 : index
    %290 = vector.load %arg17[%c0_221, %c128_222] : memref<8x640xbf16, #tpu.memory_space<vmem>>, vector<8x384xbf16>
    %c64_223 = arith.constant 64 : index
    %c0_224 = arith.constant 0 : index
    %291 = vector.load %arg18[%c64_223, %c0_224] : memref<144x384xbf16, #tpu.memory_space<vmem>>, vector<8x384xbf16>
    tpu.vector_store %arg18[%c64_223, %c0_224], %290 {strides = array<i32>} : memref<144x384xbf16, #tpu.memory_space<vmem>>, vector<8x384xbf16>,
    %c0_225 = arith.constant 0 : index
    %c129_226 = arith.constant 129 : index
    %292 = vector.load %arg17[%c0_225, %c129_226] : memref<8x640xbf16, #tpu.memory_space<vmem>>, vector<8x384xbf16>
    %c80_227 = arith.constant 80 : index
    %c0_228 = arith.constant 0 : index
    %293 = vector.load %arg18[%c80_227, %c0_228] : memref<144x384xbf16, #tpu.memory_space<vmem>>, vector<8x384xbf16>
    tpu.vector_store %arg18[%c80_227, %c0_228], %292 {strides = array<i32>} : memref<144x384xbf16, #tpu.memory_space<vmem>>, vector<8x384xbf16>,
    %c0_229 = arith.constant 0 : index
    %c145_230 = arith.constant 145 : index
    %294 = vector.load %arg17[%c0_229, %c145_230] : memref<8x640xbf16, #tpu.memory_space<vmem>>, vector<8x384xbf16>
    %c96_231 = arith.constant 96 : index
    %c0_232 = arith.constant 0 : index
    %295 = vector.load %arg18[%c96_231, %c0_232] : memref<144x384xbf16, #tpu.memory_space<vmem>>, vector<8x384xbf16>
    tpu.vector_store %arg18[%c96_231, %c0_232], %294 {strides = array<i32>} : memref<144x384xbf16, #tpu.memory_space<vmem>>, vector<8x384xbf16>,
    %c0_233 = arith.constant 0 : index
    %c146_234 = arith.constant 146 : index
    %296 = vector.load %arg17[%c0_233, %c146_234] : memref<8x640xbf16, #tpu.memory_space<vmem>>, vector<8x384xbf16>
    %c112_235 = arith.constant 112 : index
    %c0_236 = arith.constant 0 : index
    %297 = vector.load %arg18[%c112_235, %c0_236] : memref<144x384xbf16, #tpu.memory_space<vmem>>, vector<8x384xbf16>
    tpu.vector_store %arg18[%c112_235, %c0_236], %296 {strides = array<i32>} : memref<144x384xbf16, #tpu.memory_space<vmem>>, vector<8x384xbf16>,
    %c0_237 = arith.constant 0 : index
    %c147_238 = arith.constant 147 : index
    %298 = vector.load %arg17[%c0_237, %c147_238] : memref<8x640xbf16, #tpu.memory_space<vmem>>, vector<8x384xbf16>
    %c128_239 = arith.constant 128 : index
    %c0_240 = arith.constant 0 : index
    %299 = vector.load %arg18[%c128_239, %c0_240] : memref<144x384xbf16, #tpu.memory_space<vmem>>, vector<8x384xbf16>
    tpu.vector_store %arg18[%c128_239, %c0_240], %298 {strides = array<i32>} : memref<144x384xbf16, #tpu.memory_space<vmem>>, vector<8x384xbf16>,
    %c0_241 = arith.constant 0 : index
    %c0_242 = arith.constant 0 : index
    %300 = vector.load %arg10[%c0_241, %c0_242] : memref<4x144xbf16, #tpu.memory_space<vmem>>, vector<4x144xbf16>
    %c0_243 = arith.constant 0 : index
    %c0_244 = arith.constant 0 : index
    %301 = vector.load %arg18[%c0_243, %c0_244] : memref<144x384xbf16, #tpu.memory_space<vmem>>, vector<144x384xbf16>
    %cst_245 = arith.constant dense<0.000000e+00> : vector<4x384xf32>
    %302 = tpu.matmul %300, %301, %cst_245 {dimension_numbers = #tpu.dot_dimension_numbers<[1], [0], [0], [1], [0, 0, 1, 1], [], []>} : vector<4x144xbf16>, vector<144x384xbf16>, vector<4x384xf32> -> vector<4x384xf32>
    %303 = vector.broadcast %0 : vector<1x384xf32> to vector<4x384xf32>
    %304 = arith.mulf %302, %303 : vector<4x384xf32>
    %305 = vector.shape_cast %304 : vector<4x384xf32> to vector<1x4x384xf32>
    %cst_246 = arith.constant dense<0.000000e+00> : vector<1xf32>
    %306 = vector.multi_reduction <add>, %305, %cst_246 [1, 2] : vector<1x4x384xf32> to vector<1xf32>
    %307 = vector.shape_cast %306 : vector<1xf32> to vector<1x1x1xf32>
    %308 = vector.extract %307[0, 0, 0] : f32 from vector<1x1x1xf32>
    %cst_247 = arith.constant 9.765625E-4 : f32
    %309 = arith.mulf %308, %cst_247 : f32
    %310 = vector.broadcast %309 : f32 to vector<4x384xf32>
    %311 = arith.subf %302, %310 : vector<4x384xf32>
    %312 = vector.broadcast %0 : vector<1x384xf32> to vector<4x384xf32>
    %313 = arith.mulf %311, %312 : vector<4x384xf32>
    %314 = arith.mulf %313, %313 : vector<4x384xf32>
    %315 = vector.shape_cast %314 : vector<4x384xf32> to vector<1x4x384xf32>
    %cst_248 = arith.constant dense<0.000000e+00> : vector<1xf32>
    %316 = vector.multi_reduction <add>, %315, %cst_248 [1, 2] : vector<1x4x384xf32> to vector<1xf32>
    %317 = vector.shape_cast %316 : vector<1xf32> to vector<1x1x1xf32>
    %318 = vector.extract %317[0, 0, 0] : f32 from vector<1x1x1xf32>
    %cst_249 = arith.constant 9.765625E-4 : f32
    %319 = arith.mulf %318, %cst_249 : f32
    %320 = vector.broadcast %309 : f32 to vector<4x384xf32>
    %321 = arith.subf %302, %320 : vector<4x384xf32>
    %cst_250 = arith.constant 9.99999974E-6 : f32
    %322 = arith.addf %319, %cst_250 : f32
    %323 = math.rsqrt %322 : f32
    %324 = vector.broadcast %323 : f32 to vector<4x384xf32>
    %325 = arith.mulf %321, %324 : vector<4x384xf32>
    %c0_251 = arith.constant 0 : index
    %c0_252 = arith.constant 0 : index
    %326 = vector.load %arg11[%c0_251, %c0_252] : memref<4x1xf32, #tpu.memory_space<vmem>>, vector<4x1xf32>
    %327 = vector.broadcast %326 : vector<4x1xf32> to vector<4x384xf32>
    %328 = arith.mulf %325, %327 : vector<4x384xf32>
    %329 = vector.broadcast %271 : vector<4x1xf32> to vector<4x384xf32>
    %330 = arith.addf %328, %329 : vector<4x384xf32>
    %331 = vector.broadcast %0 : vector<1x384xf32> to vector<4x384xf32>
    %332 = arith.mulf %330, %331 : vector<4x384xf32>
    %cst_253 = arith.constant 5.000000e-01 : f32
    %333 = vector.broadcast %cst_253 : f32 to vector<4x384xf32>
    %334 = arith.mulf %333, %332 : vector<4x384xf32>
    %cst_254 = arith.constant 0.707106769 : f32
    %335 = vector.broadcast %cst_254 : f32 to vector<4x384xf32>
    %336 = arith.mulf %332, %335 : vector<4x384xf32>
    %337 = math.absf %336 : vector<4x384xf32>
    %cst_255 = arith.constant 0.327591091 : f32
    %338 = vector.broadcast %cst_255 : f32 to vector<4x384xf32>
    %339 = arith.mulf %338, %337 : vector<4x384xf32>
    %cst_256 = arith.constant 1.000000e+00 : f32
    %340 = vector.broadcast %cst_256 : f32 to vector<4x384xf32>
    %341 = arith.addf %340, %339 : vector<4x384xf32>
    %cst_257 = arith.constant 1.000000e+00 : f32
    %342 = vector.broadcast %cst_257 : f32 to vector<4x384xf32>
    %343 = arith.divf %342, %341 : vector<4x384xf32>
    %cst_258 = arith.constant 1.06140542 : f32
    %344 = vector.broadcast %cst_258 : f32 to vector<4x384xf32>
    %345 = arith.mulf %344, %343 : vector<4x384xf32>
    %cst_259 = arith.constant -1.45315206 : f32
    %346 = vector.broadcast %cst_259 : f32 to vector<4x384xf32>
    %347 = arith.addf %345, %346 : vector<4x384xf32>
    %348 = arith.mulf %347, %343 : vector<4x384xf32>
    %cst_260 = arith.constant 1.42141378 : f32
    %349 = vector.broadcast %cst_260 : f32 to vector<4x384xf32>
    %350 = arith.addf %348, %349 : vector<4x384xf32>
    %351 = arith.mulf %350, %343 : vector<4x384xf32>
    %cst_261 = arith.constant -0.284496725 : f32
    %352 = vector.broadcast %cst_261 : f32 to vector<4x384xf32>
    %353 = arith.addf %351, %352 : vector<4x384xf32>
    %354 = arith.mulf %353, %343 : vector<4x384xf32>
    %cst_262 = arith.constant 0.254829586 : f32
    %355 = vector.broadcast %cst_262 : f32 to vector<4x384xf32>
    %356 = arith.addf %354, %355 : vector<4x384xf32>
    %357 = arith.mulf %356, %343 : vector<4x384xf32>
    %cst_263 = arith.constant 0.000000e+00 : f32
    %358 = vector.broadcast %cst_263 : f32 to vector<4x384xf32>
    %359 = arith.subf %358, %337 : vector<4x384xf32>
    %360 = arith.mulf %359, %337 : vector<4x384xf32>
    %361 = math.exp %360 : vector<4x384xf32>
    %362 = arith.mulf %357, %361 : vector<4x384xf32>
    %cst_264 = arith.constant 1.000000e+00 : f32
    %363 = vector.broadcast %cst_264 : f32 to vector<4x384xf32>
    %364 = arith.subf %363, %362 : vector<4x384xf32>
    %cst_265 = arith.constant 0.000000e+00 : f32
    %365 = vector.broadcast %cst_265 : f32 to vector<4x384xf32>
    %366 = arith.cmpf oge, %336, %365 : vector<4x384xf32>
    %cst_266 = arith.constant 0.000000e+00 : f32
    %367 = vector.broadcast %cst_266 : f32 to vector<4x384xf32>
    %368 = arith.subf %367, %364 : vector<4x384xf32>
    %369 = arith.select %366, %364, %368 : vector<4x384xi1>, vector<4x384xf32>
    %cst_267 = arith.constant 1.000000e+00 : f32
    %370 = vector.broadcast %cst_267 : f32 to vector<4x384xf32>
    %371 = arith.addf %370, %369 : vector<4x384xf32>
    %372 = arith.mulf %334, %371 : vector<4x384xf32>
    %373 = arith.truncf %372 : vector<4x384xf32> to vector<4x384xbf16>
    %c0_268 = arith.constant 0 : index
    %c128_269 = arith.constant 128 : index
    %374 = vector.load %arg17[%c0_268, %c128_269] : memref<8x640xbf16, #tpu.memory_space<vmem>>, vector<4x384xbf16>
    tpu.vector_store %arg17[%c0_268, %c128_269], %373 {strides = array<i32>} : memref<8x640xbf16, #tpu.memory_space<vmem>>, vector<4x384xbf16>,
    %c0_270 = arith.constant 0 : index
    %c0_271 = arith.constant 0 : index
    %c0_272 = arith.constant 0 : index
    %375 = vector.load %arg15[%c0_270, %c0_271, %c0_272] : memref<1x8x1xf32, #tpu.memory_space<vmem>>, vector<1x8x1xf32>
    %376 = vector.shape_cast %375 : vector<1x8x1xf32> to vector<8x1xf32>
    %cst_273 = arith.constant 0.000000e+00 : bf16
    %377 = vector.broadcast %cst_273 : bf16 to vector<12x384xbf16>
    %c4_274 = arith.constant 4 : index
    %c0_275 = arith.constant 0 : index
    %378 = vector.load %arg18[%c4_274, %c0_275] : memref<144x384xbf16, #tpu.memory_space<vmem>>, vector<12x384xbf16>
    tpu.vector_store %arg18[%c4_274, %c0_275], %377 {strides = array<i32>} : memref<144x384xbf16, #tpu.memory_space<vmem>>, vector<12x384xbf16>,
    %c20 = arith.constant 20 : index
    %c0_276 = arith.constant 0 : index
    %379 = vector.load %arg18[%c20, %c0_276] : memref<144x384xbf16, #tpu.memory_space<vmem>>, vector<12x384xbf16>
    tpu.vector_store %arg18[%c20, %c0_276], %377 {strides = array<i32>} : memref<144x384xbf16, #tpu.memory_space<vmem>>, vector<12x384xbf16>,
    %c36 = arith.constant 36 : index
    %c0_277 = arith.constant 0 : index
    %380 = vector.load %arg18[%c36, %c0_277] : memref<144x384xbf16, #tpu.memory_space<vmem>>, vector<12x384xbf16>
    tpu.vector_store %arg18[%c36, %c0_277], %377 {strides = array<i32>} : memref<144x384xbf16, #tpu.memory_space<vmem>>, vector<12x384xbf16>,
    %c52 = arith.constant 52 : index
    %c0_278 = arith.constant 0 : index
    %381 = vector.load %arg18[%c52, %c0_278] : memref<144x384xbf16, #tpu.memory_space<vmem>>, vector<12x384xbf16>
    tpu.vector_store %arg18[%c52, %c0_278], %377 {strides = array<i32>} : memref<144x384xbf16, #tpu.memory_space<vmem>>, vector<12x384xbf16>,
    %c68 = arith.constant 68 : index
    %c0_279 = arith.constant 0 : index
    %382 = vector.load %arg18[%c68, %c0_279] : memref<144x384xbf16, #tpu.memory_space<vmem>>, vector<12x384xbf16>
    tpu.vector_store %arg18[%c68, %c0_279], %377 {strides = array<i32>} : memref<144x384xbf16, #tpu.memory_space<vmem>>, vector<12x384xbf16>,
    %c84 = arith.constant 84 : index
    %c0_280 = arith.constant 0 : index
    %383 = vector.load %arg18[%c84, %c0_280] : memref<144x384xbf16, #tpu.memory_space<vmem>>, vector<12x384xbf16>
    tpu.vector_store %arg18[%c84, %c0_280], %377 {strides = array<i32>} : memref<144x384xbf16, #tpu.memory_space<vmem>>, vector<12x384xbf16>,
    %c100 = arith.constant 100 : index
    %c0_281 = arith.constant 0 : index
    %384 = vector.load %arg18[%c100, %c0_281] : memref<144x384xbf16, #tpu.memory_space<vmem>>, vector<12x384xbf16>
    tpu.vector_store %arg18[%c100, %c0_281], %377 {strides = array<i32>} : memref<144x384xbf16, #tpu.memory_space<vmem>>, vector<12x384xbf16>,
    %c116 = arith.constant 116 : index
    %c0_282 = arith.constant 0 : index
    %385 = vector.load %arg18[%c116, %c0_282] : memref<144x384xbf16, #tpu.memory_space<vmem>>, vector<12x384xbf16>
    tpu.vector_store %arg18[%c116, %c0_282], %377 {strides = array<i32>} : memref<144x384xbf16, #tpu.memory_space<vmem>>, vector<12x384xbf16>,
    %c132 = arith.constant 132 : index
    %c0_283 = arith.constant 0 : index
    %386 = vector.load %arg18[%c132, %c0_283] : memref<144x384xbf16, #tpu.memory_space<vmem>>, vector<12x384xbf16>
    tpu.vector_store %arg18[%c132, %c0_283], %377 {strides = array<i32>} : memref<144x384xbf16, #tpu.memory_space<vmem>>, vector<12x384xbf16>,
    %c0_284 = arith.constant 0 : index
    %c109_285 = arith.constant 109 : index
    %387 = vector.load %arg17[%c0_284, %c109_285] : memref<8x640xbf16, #tpu.memory_space<vmem>>, vector<4x384xbf16>
    %c0_286 = arith.constant 0 : index
    %c0_287 = arith.constant 0 : index
    %388 = vector.load %arg18[%c0_286, %c0_287] : memref<144x384xbf16, #tpu.memory_space<vmem>>, vector<4x384xbf16>
    tpu.vector_store %arg18[%c0_286, %c0_287], %387 {strides = array<i32>} : memref<144x384xbf16, #tpu.memory_space<vmem>>, vector<4x384xbf16>,
    %c0_288 = arith.constant 0 : index
    %c110_289 = arith.constant 110 : index
    %389 = vector.load %arg17[%c0_288, %c110_289] : memref<8x640xbf16, #tpu.memory_space<vmem>>, vector<4x384xbf16>
    %c16_290 = arith.constant 16 : index
    %c0_291 = arith.constant 0 : index
    %390 = vector.load %arg18[%c16_290, %c0_291] : memref<144x384xbf16, #tpu.memory_space<vmem>>, vector<4x384xbf16>
    tpu.vector_store %arg18[%c16_290, %c0_291], %389 {strides = array<i32>} : memref<144x384xbf16, #tpu.memory_space<vmem>>, vector<4x384xbf16>,
    %c0_292 = arith.constant 0 : index
    %c111_293 = arith.constant 111 : index
    %391 = vector.load %arg17[%c0_292, %c111_293] : memref<8x640xbf16, #tpu.memory_space<vmem>>, vector<4x384xbf16>
    %c32_294 = arith.constant 32 : index
    %c0_295 = arith.constant 0 : index
    %392 = vector.load %arg18[%c32_294, %c0_295] : memref<144x384xbf16, #tpu.memory_space<vmem>>, vector<4x384xbf16>
    tpu.vector_store %arg18[%c32_294, %c0_295], %391 {strides = array<i32>} : memref<144x384xbf16, #tpu.memory_space<vmem>>, vector<4x384xbf16>,
    %c0_296 = arith.constant 0 : index
    %c127_297 = arith.constant 127 : index
    %393 = vector.load %arg17[%c0_296, %c127_297] : memref<8x640xbf16, #tpu.memory_space<vmem>>, vector<4x384xbf16>
    %c48_298 = arith.constant 48 : index
    %c0_299 = arith.constant 0 : index
    %394 = vector.load %arg18[%c48_298, %c0_299] : memref<144x384xbf16, #tpu.memory_space<vmem>>, vector<4x384xbf16>
    tpu.vector_store %arg18[%c48_298, %c0_299], %393 {strides = array<i32>} : memref<144x384xbf16, #tpu.memory_space<vmem>>, vector<4x384xbf16>,
    %c0_300 = arith.constant 0 : index
    %c128_301 = arith.constant 128 : index
    %395 = vector.load %arg17[%c0_300, %c128_301] : memref<8x640xbf16, #tpu.memory_space<vmem>>, vector<4x384xbf16>
    %c64_302 = arith.constant 64 : index
    %c0_303 = arith.constant 0 : index
    %396 = vector.load %arg18[%c64_302, %c0_303] : memref<144x384xbf16, #tpu.memory_space<vmem>>, vector<4x384xbf16>
    tpu.vector_store %arg18[%c64_302, %c0_303], %395 {strides = array<i32>} : memref<144x384xbf16, #tpu.memory_space<vmem>>, vector<4x384xbf16>,
    %c0_304 = arith.constant 0 : index
    %c129_305 = arith.constant 129 : index
    %397 = vector.load %arg17[%c0_304, %c129_305] : memref<8x640xbf16, #tpu.memory_space<vmem>>, vector<4x384xbf16>
    %c80_306 = arith.constant 80 : index
    %c0_307 = arith.constant 0 : index
    %398 = vector.load %arg18[%c80_306, %c0_307] : memref<144x384xbf16, #tpu.memory_space<vmem>>, vector<4x384xbf16>
    tpu.vector_store %arg18[%c80_306, %c0_307], %397 {strides = array<i32>} : memref<144x384xbf16, #tpu.memory_space<vmem>>, vector<4x384xbf16>,
    %c0_308 = arith.constant 0 : index
    %c145_309 = arith.constant 145 : index
    %399 = vector.load %arg17[%c0_308, %c145_309] : memref<8x640xbf16, #tpu.memory_space<vmem>>, vector<4x384xbf16>
    %c96_310 = arith.constant 96 : index
    %c0_311 = arith.constant 0 : index
    %400 = vector.load %arg18[%c96_310, %c0_311] : memref<144x384xbf16, #tpu.memory_space<vmem>>, vector<4x384xbf16>
    tpu.vector_store %arg18[%c96_310, %c0_311], %399 {strides = array<i32>} : memref<144x384xbf16, #tpu.memory_space<vmem>>, vector<4x384xbf16>,
    %c0_312 = arith.constant 0 : index
    %c146_313 = arith.constant 146 : index
    %401 = vector.load %arg17[%c0_312, %c146_313] : memref<8x640xbf16, #tpu.memory_space<vmem>>, vector<4x384xbf16>
    %c112_314 = arith.constant 112 : index
    %c0_315 = arith.constant 0 : index
    %402 = vector.load %arg18[%c112_314, %c0_315] : memref<144x384xbf16, #tpu.memory_space<vmem>>, vector<4x384xbf16>
    tpu.vector_store %arg18[%c112_314, %c0_315], %401 {strides = array<i32>} : memref<144x384xbf16, #tpu.memory_space<vmem>>, vector<4x384xbf16>,
    %c0_316 = arith.constant 0 : index
    %c147_317 = arith.constant 147 : index
    %403 = vector.load %arg17[%c0_316, %c147_317] : memref<8x640xbf16, #tpu.memory_space<vmem>>, vector<4x384xbf16>
    %c128_318 = arith.constant 128 : index
    %c0_319 = arith.constant 0 : index
    %404 = vector.load %arg18[%c128_318, %c0_319] : memref<144x384xbf16, #tpu.memory_space<vmem>>, vector<4x384xbf16>
    tpu.vector_store %arg18[%c128_318, %c0_319], %403 {strides = array<i32>} : memref<144x384xbf16, #tpu.memory_space<vmem>>, vector<4x384xbf16>,
    %c0_320 = arith.constant 0 : index
    %c0_321 = arith.constant 0 : index
    %405 = vector.load %arg13[%c0_320, %c0_321] : memref<8x144xbf16, #tpu.memory_space<vmem>>, vector<8x144xbf16>
    %c0_322 = arith.constant 0 : index
    %c0_323 = arith.constant 0 : index
    %406 = vector.load %arg18[%c0_322, %c0_323] : memref<144x384xbf16, #tpu.memory_space<vmem>>, vector<144x384xbf16>
    %cst_324 = arith.constant dense<0.000000e+00> : vector<8x384xf32>
    %407 = tpu.matmul %405, %406, %cst_324 {dimension_numbers = #tpu.dot_dimension_numbers<[1], [0], [0], [1], [0, 0, 1, 1], [], []>} : vector<8x144xbf16>, vector<144x384xbf16>, vector<8x384xf32> -> vector<8x384xf32>
    %408 = vector.broadcast %0 : vector<1x384xf32> to vector<8x384xf32>
    %409 = arith.mulf %407, %408 : vector<8x384xf32>
    %410 = vector.shape_cast %409 : vector<8x384xf32> to vector<1x8x384xf32>
    %cst_325 = arith.constant dense<0.000000e+00> : vector<1xf32>
    %411 = vector.multi_reduction <add>, %410, %cst_325 [1, 2] : vector<1x8x384xf32> to vector<1xf32>
    %412 = vector.shape_cast %411 : vector<1xf32> to vector<1x1x1xf32>
    %413 = vector.extract %412[0, 0, 0] : f32 from vector<1x1x1xf32>
    %cst_326 = arith.constant 4.8828125E-4 : f32
    %414 = arith.mulf %413, %cst_326 : f32
    %415 = vector.broadcast %414 : f32 to vector<8x384xf32>
    %416 = arith.subf %407, %415 : vector<8x384xf32>
    %417 = vector.broadcast %0 : vector<1x384xf32> to vector<8x384xf32>
    %418 = arith.mulf %416, %417 : vector<8x384xf32>
    %419 = arith.mulf %418, %418 : vector<8x384xf32>
    %420 = vector.shape_cast %419 : vector<8x384xf32> to vector<1x8x384xf32>
    %cst_327 = arith.constant dense<0.000000e+00> : vector<1xf32>
    %421 = vector.multi_reduction <add>, %420, %cst_327 [1, 2] : vector<1x8x384xf32> to vector<1xf32>
    %422 = vector.shape_cast %421 : vector<1xf32> to vector<1x1x1xf32>
    %423 = vector.extract %422[0, 0, 0] : f32 from vector<1x1x1xf32>
    %cst_328 = arith.constant 4.8828125E-4 : f32
    %424 = arith.mulf %423, %cst_328 : f32
    %425 = vector.broadcast %414 : f32 to vector<8x384xf32>
    %426 = arith.subf %407, %425 : vector<8x384xf32>
    %cst_329 = arith.constant 9.99999974E-6 : f32
    %427 = arith.addf %424, %cst_329 : f32
    %428 = math.rsqrt %427 : f32
    %429 = vector.broadcast %428 : f32 to vector<8x384xf32>
    %430 = arith.mulf %426, %429 : vector<8x384xf32>
    %c0_330 = arith.constant 0 : index
    %c0_331 = arith.constant 0 : index
    %431 = vector.load %arg14[%c0_330, %c0_331] : memref<8x1xf32, #tpu.memory_space<vmem>>, vector<8x1xf32>
    %432 = vector.broadcast %431 : vector<8x1xf32> to vector<8x384xf32>
    %433 = arith.mulf %430, %432 : vector<8x384xf32>
    %434 = vector.broadcast %376 : vector<8x1xf32> to vector<8x384xf32>
    %435 = arith.addf %433, %434 : vector<8x384xf32>
    %c0_332 = arith.constant 0 : index
    %c0_333 = arith.constant 0 : index
    %c0_334 = arith.constant 0 : index
    %436 = vector.load %arg16[%c0_332, %c0_333, %c0_334] : memref<1x8x384xf32, #tpu.memory_space<vmem>>, vector<1x8x384xf32>
    %437 = vector.shape_cast %436 : vector<1x8x384xf32> to vector<8x384xf32>
    %438 = vector.shape_cast %435 : vector<8x384xf32> to vector<1x8x384xf32>
    tpu.vector_store %arg16[%c0_332, %c0_333, %c0_334], %438 {strides = array<i32>} : memref<1x8x384xf32, #tpu.memory_space<vmem>>, vector<1x8x384xf32>,
    return
  }
  func.func @transform_0(%arg0: i32) -> (i32, i32, i32) {
    %c0_i32 = arith.constant 0 : i32
    %c0_i32_0 = arith.constant 0 : i32
    %c0_i32_1 = arith.constant 0 : i32
    return %arg0, %c0_i32, %c0_i32_0 : i32, i32, i32
  }
  func.func @transform_1(%arg0: i32) -> (i32, i32, i32) {
    %c0_i32 = arith.constant 0 : i32
    %c0_i32_0 = arith.constant 0 : i32
    %c0_i32_1 = arith.constant 0 : i32
    return %arg0, %c0_i32, %c0_i32_0 : i32, i32, i32
  }
  func.func @transform_2(%arg0: i32) -> (i32, i32) {
    %c0_i32 = arith.constant 0 : i32
    %c0_i32_0 = arith.constant 0 : i32
    %c0_i32_1 = arith.constant 0 : i32
    return %c0_i32, %c0_i32_0 : i32, i32
  }
  func.func @transform_3(%arg0: i32) -> (i32, i32) {
    %c0_i32 = arith.constant 0 : i32
    %c0_i32_0 = arith.constant 0 : i32
    %c0_i32_1 = arith.constant 0 : i32
    return %c0_i32, %c0_i32_0 : i32, i32
  }
  func.func @transform_4(%arg0: i32) -> (i32, i32) {
    %c0_i32 = arith.constant 0 : i32
    %c0_i32_0 = arith.constant 0 : i32
    %c0_i32_1 = arith.constant 0 : i32
    return %c0_i32, %c0_i32_0 : i32, i32
  }
  func.func @transform_5(%arg0: i32) -> (i32, i32) {
    %c0_i32 = arith.constant 0 : i32
    %c0_i32_0 = arith.constant 0 : i32
    %c0_i32_1 = arith.constant 0 : i32
    return %c0_i32, %c0_i32_0 : i32, i32
  }
  func.func @transform_6(%arg0: i32) -> (i32, i32) {
    %c0_i32 = arith.constant 0 : i32
    %c0_i32_0 = arith.constant 0 : i32
    %c0_i32_1 = arith.constant 0 : i32
    return %c0_i32, %c0_i32_0 : i32, i32
  }
  func.func @transform_7(%arg0: i32) -> (i32, i32) {
    %c0_i32 = arith.constant 0 : i32
    %c0_i32_0 = arith.constant 0 : i32
    %c0_i32_1 = arith.constant 0 : i32
    return %c0_i32, %c0_i32_0 : i32, i32
  }
  func.func @transform_8(%arg0: i32) -> (i32, i32) {
    %c0_i32 = arith.constant 0 : i32
    %c0_i32_0 = arith.constant 0 : i32
    %c0_i32_1 = arith.constant 0 : i32
    return %c0_i32, %c0_i32_0 : i32, i32
  }
  func.func @transform_9(%arg0: i32) -> (i32, i32) {
    %c0_i32 = arith.constant 0 : i32
    %c0_i32_0 = arith.constant 0 : i32
    %c0_i32_1 = arith.constant 0 : i32
    return %c0_i32, %c0_i32_0 : i32, i32
  }
  func.func @transform_10(%arg0: i32) -> (i32, i32) {
    %c0_i32 = arith.constant 0 : i32
    %c0_i32_0 = arith.constant 0 : i32
    %c0_i32_1 = arith.constant 0 : i32
    return %c0_i32, %c0_i32_0 : i32, i32
  }
  func.func @transform_11(%arg0: i32) -> (i32, i32) {
    %c0_i32 = arith.constant 0 : i32
    %c0_i32_0 = arith.constant 0 : i32
    %c0_i32_1 = arith.constant 0 : i32
    return %c0_i32, %c0_i32_0 : i32, i32
  }
  func.func @transform_12(%arg0: i32) -> (i32, i32) {
    %c0_i32 = arith.constant 0 : i32
    %c0_i32_0 = arith.constant 0 : i32
    %c0_i32_1 = arith.constant 0 : i32
    return %c0_i32, %c0_i32_0 : i32, i32
  }
  func.func @transform_13(%arg0: i32) -> (i32, i32) {
    %c0_i32 = arith.constant 0 : i32
    %c0_i32_0 = arith.constant 0 : i32
    %c0_i32_1 = arith.constant 0 : i32
    return %c0_i32, %c0_i32_0 : i32, i32
  }
  func.func @transform_14(%arg0: i32) -> (i32, i32, i32) {
    %c0_i32 = arith.constant 0 : i32
    %c0_i32_0 = arith.constant 0 : i32
    %c0_i32_1 = arith.constant 0 : i32
    return %arg0, %c0_i32, %c0_i32_0 : i32, i32, i32
  }
  func.func @transform_15(%arg0: i32) -> (i32, i32, i32) {
    %c0_i32 = arith.constant 0 : i32
    %c0_i32_0 = arith.constant 0 : i32
    %c0_i32_1 = arith.constant 0 : i32
    return %arg0, %c0_i32, %c0_i32_0 : i32, i32, i32
  }
}

</mosaic_0001>

<llo_original>
// kernel: up_forward.1
$region0: #{up_forward.1}
  #allocation0 [shape = 'u32[]', space=smem, size = 0x4, offset = 0x4, fixed_abs, tag = 'smem constant byte address 0x4 - core index']
  #allocation1 [shape = 'u32[72,128]{1,0:T(1,128)}', space=vmem, size = 0x9000, scoped, tag = 'internal scratch']
  #allocation2 [shape = 'bf16[8,640]{1,0:T(8,128)(2,1)}', space=vmem, size = 0x2800, scoped, tag = 'scratch operand']
  #allocation3 [shape = 'bf16[144,384]{1,0:T(8,128)(2,1)}', space=vmem, size = 0x1b000, scoped, tag = 'scratch operand']
  %s0 = inlined_call_operand.vmem [shape: bf16[2,4,384], index: 0, kind: input, shape index: {}]
  %s1 = inlined_call_operand.vmem [shape: bf16[2,4,384], index: 1, kind: input, shape index: {}]
  %s2 = inlined_call_operand.vmem [shape: f32[1,384], index: 2, kind: input, shape index: {}]
  %s3 = inlined_call_operand.vmem [shape: bf16[8,144], index: 3, kind: input, shape index: {}]
  %s4 = inlined_call_operand.vmem [shape: f32[8,1], index: 4, kind: input, shape index: {}]
  %s5 = inlined_call_operand.vmem [shape: f32[8,1], index: 5, kind: input, shape index: {}]
  %s6 = inlined_call_operand.vmem [shape: bf16[8,144], index: 6, kind: input, shape index: {}]
  %s7 = inlined_call_operand.vmem [shape: f32[8,1], index: 7, kind: input, shape index: {}]
  %s8 = inlined_call_operand.vmem [shape: f32[8,1], index: 8, kind: input, shape index: {}]
  %s9 = inlined_call_operand.vmem [shape: bf16[4,144], index: 9, kind: input, shape index: {}]
  %s10 = inlined_call_operand.vmem [shape: f32[4,1], index: 10, kind: input, shape index: {}]
  %s11 = inlined_call_operand.vmem [shape: f32[4,1], index: 11, kind: input, shape index: {}]
  %s12 = inlined_call_operand.vmem [shape: bf16[8,144], index: 12, kind: input, shape index: {}]
  %s13 = inlined_call_operand.vmem [shape: f32[8,1], index: 13, kind: input, shape index: {}]
  %s14 = inlined_call_operand.vmem [shape: f32[2,8,1], index: 14, kind: input, shape index: {}]
  %s15 = inlined_call_operand.vmem [shape: f32[2,8,384], index: 15, kind: output, shape index: {}]
  %s16 = sld [smem:[#allocation0]]
  $region93: #{up_forward.1} parent=0
    _
  %s18 = ssub.s32 1, %s16
  %s19 = scalar_select 0, %s18, %s16
  loop: start=0, step=1, limit=4
  $region2: #{up_forward.1} parent=0 // loop_pre_header
    _
  $region3: #{up_forward.1} parent=0 // loop_header
    %s21 = sphi 0, %s25
    %p22 = scmp.ge.s32.totalorder %s21, 4
    %s31 = sphi 0, %s33
    %s34 = sphi 0, %s31
    %s35 = sphi 0, %s34
    %s51 = sphi 0, %s35
    %s57 = sphi 0, %s59
    %s60 = sphi 0, %s57
    %s61 = sphi 0, %s60
    %s77 = sphi 0, %s61
    %s81 = sphi 0, %s81
    %s83 = sphi 0, %s81
    %s84 = sphi 0, %s83
    %s98 = sphi 0, %s84
    %s102 = sphi 0, %s102
    %s104 = sphi 0, %s102
    %s105 = sphi 0, %s104
    %s119 = sphi 0, %s105
    %s123 = sphi 0, %s123
    %s125 = sphi 0, %s123
    %s126 = sphi 0, %s125
    %s140 = sphi 0, %s126
    %s144 = sphi 0, %s144
    %s146 = sphi 0, %s144
    %s147 = sphi 0, %s146
    %s161 = sphi 0, %s147
    %s165 = sphi 0, %s165
    %s167 = sphi 0, %s165
    %s168 = sphi 0, %s167
    %s182 = sphi 0, %s168
    %s186 = sphi 0, %s186
    %s188 = sphi 0, %s186
    %s189 = sphi 0, %s188
    %s203 = sphi 0, %s189
    %s207 = sphi 0, %s207
    %s209 = sphi 0, %s207
    %s210 = sphi 0, %s209
    %s224 = sphi 0, %s210
    %s228 = sphi 0, %s228
    %s230 = sphi 0, %s228
    %s231 = sphi 0, %s230
    %s245 = sphi 0, %s231
    %s249 = sphi 0, %s249
    %s251 = sphi 0, %s249
    %s252 = sphi 0, %s251
    %s266 = sphi 0, %s252
    %s270 = sphi 0, %s270
    %s272 = sphi 0, %s270
    %s273 = sphi 0, %s272
    %s287 = sphi 0, %s273
    %s291 = sphi 0, %s291
    %s293 = sphi 0, %s291
    %s294 = sphi 0, %s293
    %s308 = sphi 0, %s294
    %s312 = sphi 0, %s312
    %s314 = sphi 0, %s312
    %s315 = sphi 0, %s314
    %s329 = sphi 0, %s315
    %s335 = sphi 0, %s337
    %s338 = sphi 0, %s335
    %s339 = sphi 0, %s338
    %s355 = sphi 0, %s339
    %s361 = sphi 0, %s363
    %s364 = sphi 0, %s361
    %s365 = sphi 0, %s364
    %s381 = sphi 0, %s365
  $region4: #{up_forward.1} parent=0 // loop_header_branch
    %24 = sbr.rel (%p22) target = $region8
  $region5: #{up_forward.1} parent=0 // loop_body
    %s26 = ssub.s32 %s21, 1
    %s27 = ssub.s32 %s21, 2
    %s28 = sadd.s32 %s21, 1
    %s29 = ssub.s32 %s21, %s28
    %p30 = scmp.eq.s32.totalorder %s29, 0
    %s32 = sadd.s32 %s31, 1
    %s33 = scalar_select %p30, %s31, %s32
    %p36 = pneg %p30
    %p37 = scmp.eq.s32.totalorder %s21, 1
    %p38 = por %p36, %p37
    %p39 = scmp.ne.s32.totalorder %s31, %s34
    %p40 = scmp.eq.s32.totalorder %s21, 0
    %p41 = por %p39, %p40
    %p42 = scmp.ne.s32.totalorder %s31, %s34
    %p43 = scmp.eq.s32.totalorder %s26, 1
    %p44 = por %p42, %p43
    %p45 = scmp.ne.s32.totalorder %s34, %s35
    %p46 = scmp.eq.s32.totalorder %s26, 0
    %p47 = por %p45, %p46
    %p48 = scmp.ne.s32.totalorder %s34, %s35
    %p49 = scmp.eq.s32.totalorder %s27, 1
    %p50 = por %p48, %p49
    %p52 = scmp.ne.s32.totalorder %s35, %s51
    %p53 = scmp.eq.s32.totalorder %s27, 0
    %p54 = por %p52, %p53
    %s55 = ssub.s32 %s21, %s28
    %p56 = scmp.eq.s32.totalorder %s55, 0
    %s58 = sadd.s32 %s57, 1
    %s59 = scalar_select %p56, %s57, %s58
    %p62 = pneg %p56
    %p63 = scmp.eq.s32.totalorder %s21, 1
    %p64 = por %p62, %p63
    %p65 = scmp.ne.s32.totalorder %s57, %s60
    %p66 = scmp.eq.s32.totalorder %s21, 0
    %p67 = por %p65, %p66
    %p68 = scmp.ne.s32.totalorder %s57, %s60
    %p69 = scmp.eq.s32.totalorder %s26, 1
    %p70 = por %p68, %p69
    %p71 = scmp.ne.s32.totalorder %s60, %s61
    %p72 = scmp.eq.s32.totalorder %s26, 0
    %p73 = por %p71, %p72
    %p74 = scmp.ne.s32.totalorder %s60, %s61
    %p75 = scmp.eq.s32.totalorder %s27, 1
    %p76 = por %p74, %p75
    %p78 = scmp.ne.s32.totalorder %s61, %s77
    %p79 = scmp.eq.s32.totalorder %s27, 0
    %p80 = por %p78, %p79
    %s82 = sadd.s32 %s81, 1
    %p85 = scmp.eq.s32.totalorder %s21, 1
    %p86 = scmp.ne.s32.totalorder %s81, %s83
    %p87 = scmp.eq.s32.totalorder %s21, 0
    %p88 = por %p86, %p87
    %p89 = scmp.ne.s32.totalorder %s81, %s83
    %p90 = scmp.eq.s32.totalorder %s26, 1
    %p91 = por %p89, %p90
    %p92 = scmp.ne.s32.totalorder %s83, %s84
    %p93 = scmp.eq.s32.totalorder %s26, 0
    %p94 = por %p92, %p93
    %p95 = scmp.ne.s32.totalorder %s83, %s84
    %p96 = scmp.eq.s32.totalorder %s27, 1
    %p97 = por %p95, %p96
    %p99 = scmp.ne.s32.totalorder %s84, %s98
    %p100 = scmp.eq.s32.totalorder %s27, 0
    %p101 = por %p99, %p100
    %s103 = sadd.s32 %s102, 1
    %p106 = scmp.eq.s32.totalorder %s21, 1
    %p107 = scmp.ne.s32.totalorder %s102, %s104
    %p108 = scmp.eq.s32.totalorder %s21, 0
    %p109 = por %p107, %p108
    %p110 = scmp.ne.s32.totalorder %s102, %s104
    %p111 = scmp.eq.s32.totalorder %s26, 1
    %p112 = por %p110, %p111
    %p113 = scmp.ne.s32.totalorder %s104, %s105
    %p114 = scmp.eq.s32.totalorder %s26, 0
    %p115 = por %p113, %p114
    %p116 = scmp.ne.s32.totalorder %s104, %s105
    %p117 = scmp.eq.s32.totalorder %s27, 1
    %p118 = por %p116, %p117
    %p120 = scmp.ne.s32.totalorder %s105, %s119
    %p121 = scmp.eq.s32.totalorder %s27, 0
    %p122 = por %p120, %p121
    %s124 = sadd.s32 %s123, 1
    %p127 = scmp.eq.s32.totalorder %s21, 1
    %p128 = scmp.ne.s32.totalorder %s123, %s125
    %p129 = scmp.eq.s32.totalorder %s21, 0
    %p130 = por %p128, %p129
    %p131 = scmp.ne.s32.totalorder %s123, %s125
    %p132 = scmp.eq.s32.totalorder %s26, 1
    %p133 = por %p131, %p132
    %p134 = scmp.ne.s32.totalorder %s125, %s126
    %p135 = scmp.eq.s32.totalorder %s26, 0
    %p136 = por %p134, %p135
    %p137 = scmp.ne.s32.totalorder %s125, %s126
    %p138 = scmp.eq.s32.totalorder %s27, 1
    %p139 = por %p137, %p138
    %p141 = scmp.ne.s32.totalorder %s126, %s140
    %p142 = scmp.eq.s32.totalorder %s27, 0
    %p143 = por %p141, %p142
    %s145 = sadd.s32 %s144, 1
    %p148 = scmp.eq.s32.totalorder %s21, 1
    %p149 = scmp.ne.s32.totalorder %s144, %s146
    %p150 = scmp.eq.s32.totalorder %s21, 0
    %p151 = por %p149, %p150
    %p152 = scmp.ne.s32.totalorder %s144, %s146
    %p153 = scmp.eq.s32.totalorder %s26, 1
    %p154 = por %p152, %p153
    %p155 = scmp.ne.s32.totalorder %s146, %s147
    %p156 = scmp.eq.s32.totalorder %s26, 0
    %p157 = por %p155, %p156
    %p158 = scmp.ne.s32.totalorder %s146, %s147
    %p159 = scmp.eq.s32.totalorder %s27, 1
    %p160 = por %p158, %p159
    %p162 = scmp.ne.s32.totalorder %s147, %s161
    %p163 = scmp.eq.s32.totalorder %s27, 0
    %p164 = por %p162, %p163
    %s166 = sadd.s32 %s165, 1
    %p169 = scmp.eq.s32.totalorder %s21, 1
    %p170 = scmp.ne.s32.totalorder %s165, %s167
    %p171 = scmp.eq.s32.totalorder %s21, 0
    %p172 = por %p170, %p171
    %p173 = scmp.ne.s32.totalorder %s165, %s167
    %p174 = scmp.eq.s32.totalorder %s26, 1
    %p175 = por %p173, %p174
    %p176 = scmp.ne.s32.totalorder %s167, %s168
    %p177 = scmp.eq.s32.totalorder %s26, 0
    %p178 = por %p176, %p177
    %p179 = scmp.ne.s32.totalorder %s167, %s168
    %p180 = scmp.eq.s32.totalorder %s27, 1
    %p181 = por %p179, %p180
    %p183 = scmp.ne.s32.totalorder %s168, %s182
    %p184 = scmp.eq.s32.totalorder %s27, 0
    %p185 = por %p183, %p184
    %s187 = sadd.s32 %s186, 1
    %p190 = scmp.eq.s32.totalorder %s21, 1
    %p191 = scmp.ne.s32.totalorder %s186, %s188
    %p192 = scmp.eq.s32.totalorder %s21, 0
    %p193 = por %p191, %p192
    %p194 = scmp.ne.s32.totalorder %s186, %s188
    %p195 = scmp.eq.s32.totalorder %s26, 1
    %p196 = por %p194, %p195
    %p197 = scmp.ne.s32.totalorder %s188, %s189
    %p198 = scmp.eq.s32.totalorder %s26, 0
    %p199 = por %p197, %p198
    %p200 = scmp.ne.s32.totalorder %s188, %s189
    %p201 = scmp.eq.s32.totalorder %s27, 1
    %p202 = por %p200, %p201
    %p204 = scmp.ne.s32.totalorder %s189, %s203
    %p205 = scmp.eq.s32.totalorder %s27, 0
    %p206 = por %p204, %p205
    %s208 = sadd.s32 %s207, 1
    %p211 = scmp.eq.s32.totalorder %s21, 1
    %p212 = scmp.ne.s32.totalorder %s207, %s209
    %p213 = scmp.eq.s32.totalorder %s21, 0
    %p214 = por %p212, %p213
    %p215 = scmp.ne.s32.totalorder %s207, %s209
    %p216 = scmp.eq.s32.totalorder %s26, 1
    %p217 = por %p215, %p216
    %p218 = scmp.ne.s32.totalorder %s209, %s210
    %p219 = scmp.eq.s32.totalorder %s26, 0
    %p220 = por %p218, %p219
    %p221 = scmp.ne.s32.totalorder %s209, %s210
    %p222 = scmp.eq.s32.totalorder %s27, 1
    %p223 = por %p221, %p222
    %p225 = scmp.ne.s32.totalorder %s210, %s224
    %p226 = scmp.eq.s32.totalorder %s27, 0
    %p227 = por %p225, %p226
    %s229 = sadd.s32 %s228, 1
    %p232 = scmp.eq.s32.totalorder %s21, 1
    %p233 = scmp.ne.s32.totalorder %s228, %s230
    %p234 = scmp.eq.s32.totalorder %s21, 0
    %p235 = por %p233, %p234
    %p236 = scmp.ne.s32.totalorder %s228, %s230
    %p237 = scmp.eq.s32.totalorder %s26, 1
    %p238 = por %p236, %p237
    %p239 = scmp.ne.s32.totalorder %s230, %s231
    %p240 = scmp.eq.s32.totalorder %s26, 0
    %p241 = por %p239, %p240
    %p242 = scmp.ne.s32.totalorder %s230, %s231
    %p243 = scmp.eq.s32.totalorder %s27, 1
    %p244 = por %p242, %p243
    %p246 = scmp.ne.s32.totalorder %s231, %s245
    %p247 = scmp.eq.s32.totalorder %s27, 0
    %p248 = por %p246, %p247
    %s250 = sadd.s32 %s249, 1
    %p253 = scmp.eq.s32.totalorder %s21, 1
    %p254 = scmp.ne.s32.totalorder %s249, %s251
    %p255 = scmp.eq.s32.totalorder %s21, 0
    %p256 = por %p254, %p255
    %p257 = scmp.ne.s32.totalorder %s249, %s251
    %p258 = scmp.eq.s32.totalorder %s26, 1
    %p259 = por %p257, %p258
    %p260 = scmp.ne.s32.totalorder %s251, %s252
    %p261 = scmp.eq.s32.totalorder %s26, 0
    %p262 = por %p260, %p261
    %p263 = scmp.ne.s32.totalorder %s251, %s252
    %p264 = scmp.eq.s32.totalorder %s27, 1
    %p265 = por %p263, %p264
    %p267 = scmp.ne.s32.totalorder %s252, %s266
    %p268 = scmp.eq.s32.totalorder %s27, 0
    %p269 = por %p267, %p268
    %s271 = sadd.s32 %s270, 1
    %p274 = scmp.eq.s32.totalorder %s21, 1
    %p275 = scmp.ne.s32.totalorder %s270, %s272
    %p276 = scmp.eq.s32.totalorder %s21, 0
    %p277 = por %p275, %p276
    %p278 = scmp.ne.s32.totalorder %s270, %s272
    %p279 = scmp.eq.s32.totalorder %s26, 1
    %p280 = por %p278, %p279
    %p281 = scmp.ne.s32.totalorder %s272, %s273
    %p282 = scmp.eq.s32.totalorder %s26, 0
    %p283 = por %p281, %p282
    %p284 = scmp.ne.s32.totalorder %s272, %s273
    %p285 = scmp.eq.s32.totalorder %s27, 1
    %p286 = por %p284, %p285
    %p288 = scmp.ne.s32.totalorder %s273, %s287
    %p289 = scmp.eq.s32.totalorder %s27, 0
    %p290 = por %p288, %p289
    %s292 = sadd.s32 %s291, 1
    %p295 = scmp.eq.s32.totalorder %s21, 1
    %p296 = scmp.ne.s32.totalorder %s291, %s293
    %p297 = scmp.eq.s32.totalorder %s21, 0
    %p298 = por %p296, %p297
    %p299 = scmp.ne.s32.totalorder %s291, %s293
    %p300 = scmp.eq.s32.totalorder %s26, 1
    %p301 = por %p299, %p300
    %p302 = scmp.ne.s32.totalorder %s293, %s294
    %p303 = scmp.eq.s32.totalorder %s26, 0
    %p304 = por %p302, %p303
    %p305 = scmp.ne.s32.totalorder %s293, %s294
    %p306 = scmp.eq.s32.totalorder %s27, 1
    %p307 = por %p305, %p306
    %p309 = scmp.ne.s32.totalorder %s294, %s308
    %p310 = scmp.eq.s32.totalorder %s27, 0
    %p311 = por %p309, %p310
    %s313 = sadd.s32 %s312, 1
    %p316 = scmp.eq.s32.totalorder %s21, 1
    %p317 = scmp.ne.s32.totalorder %s312, %s314
    %p318 = scmp.eq.s32.totalorder %s21, 0
    %p319 = por %p317, %p318
    %p320 = scmp.ne.s32.totalorder %s312, %s314
    %p321 = scmp.eq.s32.totalorder %s26, 1
    %p322 = por %p320, %p321
    %p323 = scmp.ne.s32.totalorder %s314, %s315
    %p324 = scmp.eq.s32.totalorder %s26, 0
    %p325 = por %p323, %p324
    %p326 = scmp.ne.s32.totalorder %s314, %s315
    %p327 = scmp.eq.s32.totalorder %s27, 1
    %p328 = por %p326, %p327
    %p330 = scmp.ne.s32.totalorder %s315, %s329
    %p331 = scmp.eq.s32.totalorder %s27, 0
    %p332 = por %p330, %p331
    %s333 = ssub.s32 %s21, %s28
    %p334 = scmp.eq.s32.totalorder %s333, 0
    %s336 = sadd.s32 %s335, 1
    %s337 = scalar_select %p334, %s335, %s336
    %p340 = pneg %p334
    %p341 = scmp.eq.s32.totalorder %s21, 1
    %p342 = por %p340, %p341
    %p343 = scmp.ne.s32.totalorder %s335, %s338
    %p344 = scmp.eq.s32.totalorder %s21, 0
    %p345 = por %p343, %p344
    %p346 = scmp.ne.s32.totalorder %s335, %s338
    %p347 = scmp.eq.s32.totalorder %s26, 1
    %p348 = por %p346, %p347
    %p349 = scmp.ne.s32.totalorder %s338, %s339
    %p350 = scmp.eq.s32.totalorder %s26, 0
    %p351 = por %p349, %p350
    %p352 = scmp.ne.s32.totalorder %s338, %s339
    %p353 = scmp.eq.s32.totalorder %s27, 1
    %p354 = por %p352, %p353
    %p356 = scmp.ne.s32.totalorder %s339, %s355
    %p357 = scmp.eq.s32.totalorder %s27, 0
    %p358 = por %p356, %p357
    %s359 = ssub.s32 %s21, %s28
    %p360 = scmp.eq.s32.totalorder %s359, 0
    %s362 = sadd.s32 %s361, 1
    %s363 = scalar_select %p360, %s361, %s362
    %p366 = pneg %p360
    %p367 = scmp.eq.s32.totalorder %s21, 1
    %p368 = por %p366, %p367
    %p369 = scmp.ne.s32.totalorder %s361, %s364
    %p370 = scmp.eq.s32.totalorder %s21, 0
    %p371 = por %p369, %p370
    %p372 = scmp.ne.s32.totalorder %s361, %s364
    %p373 = scmp.eq.s32.totalorder %s26, 1
    %p374 = por %p372, %p373
    %p375 = scmp.ne.s32.totalorder %s364, %s365
    %p376 = scmp.eq.s32.totalorder %s26, 0
    %p377 = por %p375, %p376
    %p378 = scmp.ne.s32.totalorder %s364, %s365
    %p379 = scmp.eq.s32.totalorder %s27, 1
    %p380 = por %p378, %p379
    %p382 = scmp.ne.s32.totalorder %s365, %s381
    %p383 = scmp.eq.s32.totalorder %s27, 0
    %p384 = por %p382, %p383
    %p385 = scmp.le.s32.totalorder 1, %s21
    %p386 = scmp.lt.s32.totalorder %s21, 3
    %p387 = pnand %p385, %p386
    %p388 = pneg %p387
    // Predicated region
    $region9: #{up_forward.1} parent=5 // pred_check
      _
    $region10: #{up_forward.1} parent=5 // pred_check_branch
      %390 = sbr.rel (%p387) target = $region12
    $region11: #{up_forward.1} parent=5 // pred_region
      %s391 = ssub.s32 %s21, 1
      // Predicated region
      $region13: #{up_forward.1} parent=11 // pred_check
        %p392 = pneg %p94
      $region14: #{up_forward.1} parent=11 // pred_check_branch
        %394 = sbr.rel (%p392) target = $region16
      $region15: #{up_forward.1} parent=11 // pred_region
        _
      $region16: #{up_forward.1} parent=11 // pred_fallthru
        _
      // Predicated region
      $region17: #{up_forward.1} parent=11 // pred_check
        %p395 = pneg %p115
      $region18: #{up_forward.1} parent=11 // pred_check_branch
        %397 = sbr.rel (%p395) target = $region20
      $region19: #{up_forward.1} parent=11 // pred_region
        _
      $region20: #{up_forward.1} parent=11 // pred_fallthru
        _
      // Predicated region
      $region21: #{up_forward.1} parent=11 // pred_check
        %p398 = pneg %p136
      $region22: #{up_forward.1} parent=11 // pred_check_branch
        %400 = sbr.rel (%p398) target = $region24
      $region23: #{up_forward.1} parent=11 // pred_region
        _
      $region24: #{up_forward.1} parent=11 // pred_fallthru
        _
      // Predicated region
      $region25: #{up_forward.1} parent=11 // pred_check
        %p401 = pneg %p157
      $region26: #{up_forward.1} parent=11 // pred_check_branch
        %403 = sbr.rel (%p401) target = $region28
      $region27: #{up_forward.1} parent=11 // pred_region
        _
      $region28: #{up_forward.1} parent=11 // pred_fallthru
        _
      // Predicated region
      $region29: #{up_forward.1} parent=11 // pred_check
        %p404 = pneg %p178
      $region30: #{up_forward.1} parent=11 // pred_check_branch
        %406 = sbr.rel (%p404) target = $region32
      $region31: #{up_forward.1} parent=11 // pred_region
        _
      $region32: #{up_forward.1} parent=11 // pred_fallthru
        _
      // Predicated region
      $region33: #{up_forward.1} parent=11 // pred_check
        %p407 = pneg %p199
      $region34: #{up_forward.1} parent=11 // pred_check_branch
        %409 = sbr.rel (%p407) target = $region36
      $region35: #{up_forward.1} parent=11 // pred_region
        _
      $region36: #{up_forward.1} parent=11 // pred_fallthru
        _
      // Predicated region
      $region37: #{up_forward.1} parent=11 // pred_check
        %p410 = pneg %p220
      $region38: #{up_forward.1} parent=11 // pred_check_branch
        %412 = sbr.rel (%p410) target = $region40
      $region39: #{up_forward.1} parent=11 // pred_region
        _
      $region40: #{up_forward.1} parent=11 // pred_fallthru
        _
      // Predicated region
      $region41: #{up_forward.1} parent=11 // pred_check
        %p413 = pneg %p241
      $region42: #{up_forward.1} parent=11 // pred_check_branch
        %415 = sbr.rel (%p413) target = $region44
      $region43: #{up_forward.1} parent=11 // pred_region
        _
      $region44: #{up_forward.1} parent=11 // pred_fallthru
        _
      // Predicated region
      $region45: #{up_forward.1} parent=11 // pred_check
        %p416 = pneg %p262
      $region46: #{up_forward.1} parent=11 // pred_check_branch
        %418 = sbr.rel (%p416) target = $region48
      $region47: #{up_forward.1} parent=11 // pred_region
        _
      $region48: #{up_forward.1} parent=11 // pred_fallthru
        _
      // Predicated region
      $region49: #{up_forward.1} parent=11 // pred_check
        %p419 = pneg %p283
      $region50: #{up_forward.1} parent=11 // pred_check_branch
        %421 = sbr.rel (%p419) target = $region52
      $region51: #{up_forward.1} parent=11 // pred_region
        _
      $region52: #{up_forward.1} parent=11 // pred_fallthru
        _
      // Predicated region
      $region53: #{up_forward.1} parent=11 // pred_check
        %p422 = pneg %p304
      $region54: #{up_forward.1} parent=11 // pred_check_branch
        %424 = sbr.rel (%p422) target = $region56
      $region55: #{up_forward.1} parent=11 // pred_region
        _
      $region56: #{up_forward.1} parent=11 // pred_fallthru
        _
      // Predicated region
      $region57: #{up_forward.1} parent=11 // pred_check
        %p425 = pneg %p325
      $region58: #{up_forward.1} parent=11 // pred_check_branch
        %427 = sbr.rel (%p425) target = $region60
      $region59: #{up_forward.1} parent=11 // pred_region
        _
      $region60: #{up_forward.1} parent=11 // pred_fallthru
        _
    $region12: #{up_forward.1} parent=5 // pred_fallthru
      _
    %p428 = scmp.lt.s32.totalorder %s21, 2
    // Predicated region
    $region61: #{up_forward.1} parent=5 // pred_check
      %p429 = pneg %p428
    $region62: #{up_forward.1} parent=5 // pred_check_branch
      %431 = sbr.rel (%p429) target = $region64
    $region63: #{up_forward.1} parent=5 // pred_region
      // Predicated region
      $region65: #{up_forward.1} parent=63 // pred_check
        %p432 = pneg %p41
      $region66: #{up_forward.1} parent=63 // pred_check_branch
        %434 = sbr.rel (%p432) target = $region68
      $region67: #{up_forward.1} parent=63 // pred_region
        %p435 = scmp.lt.s32.totalorder %s21, 1
        %s436 = scalar_select %p435, %s21, 1
        %s437 = smul.addr %s436, 3
        %s438 = smul.addr %s437, 2
        %s439 = scalar_lea.vmem %s0, %s438
      $region68: #{up_forward.1} parent=63 // pred_fallthru
        _
      // Predicated region
      $region69: #{up_forward.1} parent=63 // pred_check
        %p440 = pneg %p67
      $region70: #{up_forward.1} parent=63 // pred_check_branch
        %442 = sbr.rel (%p440) target = $region72
      $region71: #{up_forward.1} parent=63 // pred_region
        %p443 = scmp.lt.s32.totalorder %s21, 1
        %s444 = scalar_select %p443, %s21, 1
        %s445 = smul.addr %s444, 3
        %s446 = smul.addr %s445, 2
        %s447 = scalar_lea.vmem %s1, %s446
      $region72: #{up_forward.1} parent=63 // pred_fallthru
        _
      // Predicated region
      $region73: #{up_forward.1} parent=63 // pred_check
        %p448 = pneg %p345
      $region74: #{up_forward.1} parent=63 // pred_check_branch
        %450 = sbr.rel (%p448) target = $region76
      $region75: #{up_forward.1} parent=63 // pred_region
        %p451 = scmp.lt.s32.totalorder %s21, 1
        %s452 = scalar_select %p451, %s21, 1
        %s453 = smul.addr %s452, 8
        %s454 = scalar_lea.vmem %s14, %s453
      $region76: #{up_forward.1} parent=63 // pred_fallthru
        _
    $region64: #{up_forward.1} parent=5 // pred_fallthru
      _
    %p455 = scmp.le.s32.totalorder 1, %s21
    %p456 = scmp.lt.s32.totalorder %s21, 3
    %p457 = pnand %p455, %p456
    %p458 = pneg %p457
    // Predicated region
    $region77: #{up_forward.1} parent=5 // pred_check
      _
    $region78: #{up_forward.1} parent=5 // pred_check_branch
      %460 = sbr.rel (%p457) target = $region80
    $region79: #{up_forward.1} parent=5 // pred_region
      %s461 = ssub.s32 %s21, 1
      %p462 = scmp.lt.s32.totalorder %s26, 1
      %s463 = scalar_select %p462, %s26, 1
      %s464 = smul.addr %s463, 3
      %s465 = smul.addr %s464, 2
      %s466 = scalar_lea.vmem %s0, %s465
      %p467 = pneg %p47
      %p468 = pneg %p44
      %p469 = scmp.lt.s32.totalorder %s26, 1
      %s470 = scalar_select %p469, %s26, 1
      %s471 = smul.addr %s470, 3
      %s472 = smul.addr %s471, 2
      %s473 = scalar_lea.vmem %s1, %s472
      %p474 = pneg %p73
      %p475 = pneg %p70
      %p476 = pneg %p94
      %p477 = pneg %p91
      %p478 = pneg %p115
      %p479 = pneg %p112
      %p480 = pneg %p136
      %p481 = pneg %p133
      %p482 = pneg %p157
      %p483 = pneg %p154
      %p484 = pneg %p178
      %p485 = pneg %p175
      %p486 = pneg %p199
      %p487 = pneg %p196
      %p488 = pneg %p220
      %p489 = pneg %p217
      %p490 = pneg %p241
      %p491 = pneg %p238
      %p492 = pneg %p262
      %p493 = pneg %p259
      %p494 = pneg %p283
      %p495 = pneg %p280
      %p496 = pneg %p304
      %p497 = pneg %p301
      %p498 = pneg %p325
      %p499 = pneg %p322
      %p500 = scmp.lt.s32.totalorder %s26, 1
      %s501 = scalar_select %p500, %s26, 1
      %s502 = smul.addr %s501, 8
      %s503 = scalar_lea.vmem %s14, %s502
      %p504 = pneg %p351
      %p505 = pneg %p348
      %p506 = pneg %p377
      %p507 = pneg %p374
      %p508 = scmp.lt.s32.totalorder %s26, 1
      %s509 = scalar_select %p508, %s26, 1
      %s510 = smul.addr %s509, 3
      %s511 = smul.addr %s510, 8
      %s512 = scalar_lea.vmem %s15, %s511
      %p513 = scmp.lt.s32.totalorder %s26, 1
      %s514 = scalar_select %p513, %s26, 1
      %s515 = smul.addr %s514, 3
      %s516 = smul.addr %s515, 2
      %s517 = scalar_lea.vmem %s0, %s516
      %p518 = scmp.lt.s32.totalorder %s26, 1
      %s519 = scalar_select %p518, %s26, 1
      %s520 = smul.addr %s519, 3
      %s521 = smul.addr %s520, 2
      %s522 = scalar_lea.vmem %s1, %s521
      %p523 = scmp.lt.s32.totalorder %s26, 1
      %s524 = scalar_select %p523, %s26, 1
      %s525 = smul.addr %s524, 8
      %s526 = scalar_lea.vmem %s14, %s525
      %p527 = scmp.lt.s32.totalorder %s26, 1
      %s528 = scalar_select %p527, %s26, 1
      %s529 = smul.addr %s528, 3
      %s530 = smul.addr %s529, 8
      %s531 = scalar_lea.vmem %s15, %s530
      %v533 = vld [vmem:[%s2] sm:$0x7]
      %534 = vst [vmem:[#allocation2] sm:$0xf] 0
      %535 = vst [vmem:[#allocation2 + $0x10] sm:$0xf] 0
      %v536 = vld [vmem:[%s517] sm:$0x3f]
      %538 = vst [vmem:[#allocation1] ss:$2 sm:$0xff] %v536
      %v539 = vld.sshfl [vmem:[#allocation1] sm:$0xff pattern:$0x75643120]
      %v540 = vld.sshfl [vmem:[#allocation1 + $0x8] sm:$0xff pattern:$0x75643120]
      %543 = vst [vmem:[#allocation2 + $0x4] sm:$0x33] %v539
      %544 = vst [vmem:[#allocation2 + $0xc] sm:$0x3] %v540
      %v545 = vld [vmem:[%s522] sm:$0x3f]
      %s547 = scalar_lea.vmem [#allocation1], 1
      %548 = vst [vmem:[%s547] ss:$2 sm:$0xff] %v545
      %v549 = vld.sshfl [vmem:[#allocation1] sm:$0xff pattern:$0x75643120]
      %v550 = vld.sshfl [vmem:[#allocation1 + $0x8] sm:$0xff pattern:$0x75643120]
      %553 = vst [vmem:[#allocation2 + $0x4] sm:$0xcc] %v549
      %554 = vst [vmem:[#allocation2 + $0xc] sm:$0xc] %v550
      %v555 = vld [vmem:[%s5] sm:$0xff]
      %556 = vst [vmem:[#allocation3 + $0xc] sm:$0xff] 0
      %557 = vst [vmem:[#allocation3 + $0x14] sm:$0xf] 0
      %558 = vst [vmem:[#allocation3 + $0x24] sm:$0xff] 0
      %559 = vst [vmem:[#allocation3 + $0x2c] sm:$0xf] 0
      %560 = vst [vmem:[#allocation3 + $0x3c] sm:$0xff] 0
      %561 = vst [vmem:[#allocation3 + $0x44] sm:$0xf] 0
      %562 = vst [vmem:[#allocation3 + $0x54] sm:$0xff] 0
      %563 = vst [vmem:[#allocation3 + $0x5c] sm:$0xf] 0
      %564 = vst [vmem:[#allocation3 + $0x6c] sm:$0xff] 0
      %565 = vst [vmem:[#allocation3 + $0x74] sm:$0xf] 0
      %566 = vst [vmem:[#allocation3 + $0x84] sm:$0xff] 0
      %567 = vst [vmem:[#allocation3 + $0x8c] sm:$0xf] 0
      %568 = vst [vmem:[#allocation3 + $0x9c] sm:$0xff] 0
      %569 = vst [vmem:[#allocation3 + $0xa4] sm:$0xf] 0
      %570 = vst [vmem:[#allocation3 + $0xb4] sm:$0xff] 0
      %571 = vst [vmem:[#allocation3 + $0xbc] sm:$0xf] 0
      %572 = vst [vmem:[#allocation3 + $0xcc] sm:$0xff] 0
      %573 = vst [vmem:[#allocation3 + $0xd4] sm:$0xf] 0
      %v574 = vld [vmem:[#allocation2] sm:$0xff]
      %v575 = vld [vmem:[#allocation2 + $0x8] sm:$0xff]
      %578 = vrot.lane.b32.xlu0 %v574, 19
      %v579 = vpop.permute.xlu0 %578
      %580 = vrot.lane.b32.xlu0 %v575, 19
      %v581 = vpop.permute.xlu0 %580
      %v582 = vrot.slane %v579, 4
      %v583 = vrot.slane %v581, 4
      %vm584 = vcmask 1043456
      %v585 = vsel %vm584, %v582, %v583
      %vm586 = vcmask 154624
      %v587 = vsel %vm586, %v579, %v585
      %v588 = vsel %vm586, %v581, %v583
      %591 = vst [vmem:[#allocation3] sm:$0xff] %v587
      %592 = vst [vmem:[#allocation3 + $0x8] sm:$0xf] %v588
      %v593 = vld [vmem:[#allocation2] sm:$0xff]
      %v594 = vld [vmem:[#allocation2 + $0x8] sm:$0xff]
      %597 = vrot.lane.b32.xlu0 %v593, 18
      %v598 = vpop.permute.xlu0 %597
      %599 = vrot.lane.b32.xlu0 %v594, 18
      %v600 = vpop.permute.xlu0 %599
      %v601 = vrot.slane %v598, 4
      %v602 = vrot.slane %v600, 4
      %v603 = vsel %vm584, %v601, %v602
      %vm604 = vcmask 146432
      %v605 = vsel %vm604, %v598, %v603
      %v606 = vsel %vm604, %v600, %v602
      %609 = vst [vmem:[#allocation3 + $0x18] sm:$0xff] %v605
      %610 = vst [vmem:[#allocation3 + $0x20] sm:$0xf] %v606
      %v611 = vld [vmem:[#allocation2] sm:$0xff]
      %v612 = vld [vmem:[#allocation2 + $0x8] sm:$0xff]
      %615 = vrot.lane.b32.xlu0 %v611, 17
      %v616 = vpop.permute.xlu0 %615
      %617 = vrot.lane.b32.xlu0 %v612, 17
      %v618 = vpop.permute.xlu0 %617
      %v619 = vrot.slane %v616, 4
      %v620 = vrot.slane %v618, 4
      %v621 = vsel %vm584, %v619, %v620
      %vm622 = vcmask 138240
      %v623 = vsel %vm622, %v616, %v621
      %v624 = vsel %vm622, %v618, %v620
      %627 = vst [vmem:[#allocation3 + $0x30] sm:$0xff] %v623
      %628 = vst [vmem:[#allocation3 + $0x38] sm:$0xf] %v624
      %v629 = vld [vmem:[#allocation2] sm:$0xff]
      %v630 = vld [vmem:[#allocation2 + $0x8] sm:$0xff]
      %633 = vrot.lane.b32.xlu0 %v629, 1
      %v634 = vpop.permute.xlu0 %633
      %635 = vrot.lane.b32.xlu0 %v630, 1
      %v636 = vpop.permute.xlu0 %635
      %v637 = vrot.slane %v634, 4
      %v638 = vrot.slane %v636, 4
      %v639 = vsel %vm584, %v637, %v638
      %vm640 = vcmask 7168
      %v641 = vsel %vm640, %v634, %v639
      %v642 = vsel %vm640, %v636, %v638
      %645 = vst [vmem:[#allocation3 + $0x48] sm:$0xff] %v641
      %646 = vst [vmem:[#allocation3 + $0x50] sm:$0xf] %v642
      %v647 = vld [vmem:[#allocation2 + $0x4] sm:$0xff]
      %v648 = vld [vmem:[#allocation2 + $0xc] sm:$0xf]
      %649 = vst [vmem:[#allocation3 + $0x60] sm:$0xff] %v647
      %650 = vst [vmem:[#allocation3 + $0x68] sm:$0xf] %v648
      %v651 = vld [vmem:[#allocation2 + $0x4] sm:$0xff]
      %v652 = vld [vmem:[#allocation2 + $0xc] sm:$0xff]
      %655 = vrot.lane.b32.xlu0 %v651, 127
      %v656 = vpop.permute.xlu0 %655
      %657 = vrot.lane.b32.xlu0 %v652, 127
      %v658 = vpop.permute.xlu0 %657
      %v659 = vrot.slane %v656, 4
      %v660 = vrot.slane %v658, 4
      %v661 = vsel %vm584, %v659, %v660
      %vm662 = vcmask 1039360
      %v663 = vsel %vm662, %v656, %v661
      %v664 = vsel %vm662, %v658, %v660
      %667 = vst [vmem:[#allocation3 + $0x78] sm:$0xff] %v663
      %668 = vst [vmem:[#allocation3 + $0x80] sm:$0xf] %v664
      %v669 = vld [vmem:[#allocation2 + $0x4] sm:$0xff]
      %v670 = vld [vmem:[#allocation2 + $0xc] sm:$0xff]
      %673 = vrot.lane.b32.xlu0 %v669, 111
      %v674 = vpop.permute.xlu0 %673
      %675 = vrot.lane.b32.xlu0 %v670, 111
      %v676 = vpop.permute.xlu0 %675
      %v677 = vrot.slane %v674, 4
      %v678 = vrot.slane %v676, 4
      %v679 = vsel %vm584, %v677, %v678
      %vm680 = vcmask 908288
      %v681 = vsel %vm680, %v674, %v679
      %v682 = vsel %vm680, %v676, %v678
      %685 = vst [vmem:[#allocation3 + $0x90] sm:$0xff] %v681
      %686 = vst [vmem:[#allocation3 + $0x98] sm:$0xf] %v682
      %v687 = vld [vmem:[#allocation2 + $0x4] sm:$0xff]
      %v688 = vld [vmem:[#allocation2 + $0xc] sm:$0xff]
      %691 = vrot.lane.b32.xlu0 %v687, 110
      %v692 = vpop.permute.xlu0 %691
      %693 = vrot.lane.b32.xlu0 %v688, 110
      %v694 = vpop.permute.xlu0 %693
      %v695 = vrot.slane %v692, 4
      %v696 = vrot.slane %v694, 4
      %v697 = vsel %vm584, %v695, %v696
      %vm698 = vcmask 900096
      %v699 = vsel %vm698, %v692, %v697
      %v700 = vsel %vm698, %v694, %v696
      %703 = vst [vmem:[#allocation3 + $0xa8] sm:$0xff] %v699
      %704 = vst [vmem:[#allocation3 + $0xb0] sm:$0xf] %v700
      %v705 = vld [vmem:[#allocation2 + $0x4] sm:$0xff]
      %v706 = vld [vmem:[#allocation2 + $0xc] sm:$0xff]
      %709 = vrot.lane.b32.xlu0 %v705, 109
      %v710 = vpop.permute.xlu0 %709
      %711 = vrot.lane.b32.xlu0 %v706, 109
      %v712 = vpop.permute.xlu0 %711
      %v713 = vrot.slane %v710, 4
      %v714 = vrot.slane %v712, 4
      %v715 = vsel %vm584, %v713, %v714
      %vm716 = vcmask 891904
      %v717 = vsel %vm716, %v710, %v715
      %v718 = vsel %vm716, %v712, %v714
      %721 = vst [vmem:[#allocation3 + $0xc0] sm:$0xff] %v717
      %722 = vst [vmem:[#allocation3 + $0xc8] sm:$0xf] %v718
      %v723 = vld [vmem:[%s3] sm:$0xff]
      %v724 = vld [vmem:[#allocation3] sm:$0xff]
      %v725 = vld [vmem:[#allocation3 + $0x8] sm:$0xf]
      %v726 = vld [vmem:[#allocation3 + $0xc] sm:$0xff]
      %v727 = vld [vmem:[#allocation3 + $0x14] sm:$0xf]
      %v728 = vld [vmem:[#allocation3 + $0x18] sm:$0xff]
      %v729 = vld [vmem:[#allocation3 + $0x20] sm:$0xf]
      %v730 = vld [vmem:[#allocation3 + $0x24] sm:$0xff]
      %v731 = vld [vmem:[#allocation3 + $0x2c] sm:$0xf]
      %v732 = vld [vmem:[#allocation3 + $0x30] sm:$0xff]
      %v733 = vld [vmem:[#allocation3 + $0x38] sm:$0xf]
      %v734 = vld [vmem:[#allocation3 + $0x3c] sm:$0xff]
      %v735 = vld [vmem:[#allocation3 + $0x44] sm:$0xf]
      %v736 = vld [vmem:[#allocation3 + $0x48] sm:$0xff]
      %v737 = vld [vmem:[#allocation3 + $0x50] sm:$0xf]
      %v738 = vld [vmem:[#allocation3 + $0x54] sm:$0xff]
      %v739 = vld [vmem:[#allocation3 + $0x5c] sm:$0xf]
      %v740 = vld [vmem:[#allocation3 + $0x60] sm:$0xff]
      %v741 = vld [vmem:[#allocation3 + $0x68] sm:$0xf]
      %v742 = vld [vmem:[#allocation3 + $0x6c] sm:$0xff]
      %v743 = vld [vmem:[#allocation3 + $0x74] sm:$0xf]
      %v744 = vld [vmem:[#allocation3 + $0x78] sm:$0xff]
      %v745 = vld [vmem:[#allocation3 + $0x80] sm:$0xf]
      %v746 = vld [vmem:[#allocation3 + $0x84] sm:$0xff]
      %v747 = vld [vmem:[#allocation3 + $0x8c] sm:$0xf]
      %v748 = vld [vmem:[#allocation3 + $0x90] sm:$0xff]
      %v749 = vld [vmem:[#allocation3 + $0x98] sm:$0xf]
      %v750 = vld [vmem:[#allocation3 + $0x9c] sm:$0xff]
      %v751 = vld [vmem:[#allocation3 + $0xa4] sm:$0xf]
      %v752 = vld [vmem:[#allocation3 + $0xa8] sm:$0xff]
      %v753 = vld [vmem:[#allocation3 + $0xb0] sm:$0xf]
      %v754 = vld [vmem:[#allocation3 + $0xb4] sm:$0xff]
      %v755 = vld [vmem:[#allocation3 + $0xbc] sm:$0xf]
      %v756 = vld [vmem:[#allocation3 + $0xc0] sm:$0xff]
      %v757 = vld [vmem:[#allocation3 + $0xc8] sm:$0xf]
      %v758 = vld [vmem:[#allocation3 + $0xcc] sm:$0xff]
      %v759 = vld [vmem:[#allocation3 + $0xd4] sm:$0xf]
      %v761 = vunpack.c.l.b16 %v723
      %v762 = vunpack.c.h.b16 %v723
      %v763 = vpack.c.b16 %v761, %v761
      %v764 = vpack.c.b16 %v762, %v762
      %v802 = vunpack.c.l.b16 %v724
      %v803 = vunpack.c.h.b16 %v724
      %v804 = vunpack.c.l.b16 %v725
      %v805 = vunpack.c.l.b16 %v726
      %v806 = vunpack.c.h.b16 %v726
      %v807 = vunpack.c.l.b16 %v727
      %v808 = vunpack.c.l.b16 %v728
      %v809 = vunpack.c.h.b16 %v728
      %v810 = vunpack.c.l.b16 %v729
      %v811 = vunpack.c.l.b16 %v730
      %v812 = vunpack.c.h.b16 %v730
      %v813 = vunpack.c.l.b16 %v731
      %v814 = vunpack.c.l.b16 %v732
      %v815 = vunpack.c.h.b16 %v732
      %v816 = vunpack.c.l.b16 %v733
      %v817 = vunpack.c.l.b16 %v734
      %v818 = vunpack.c.h.b16 %v734
      %v819 = vunpack.c.l.b16 %v735
      %v820 = vunpack.c.l.b16 %v736
      %v821 = vunpack.c.h.b16 %v736
      %v822 = vunpack.c.l.b16 %v737
      %v823 = vunpack.c.l.b16 %v738
      %v824 = vunpack.c.h.b16 %v738
      %v825 = vunpack.c.l.b16 %v739
      %v826 = vunpack.c.l.b16 %v740
      %v827 = vunpack.c.h.b16 %v740
      %v828 = vunpack.c.l.b16 %v741
      %v829 = vunpack.c.l.b16 %v742
      %v830 = vunpack.c.h.b16 %v742
      %v831 = vunpack.c.l.b16 %v743
      %v832 = vunpack.c.l.b16 %v744
      %v833 = vunpack.c.h.b16 %v744
      %v834 = vunpack.c.l.b16 %v745
      %v835 = vunpack.c.l.b16 %v746
      %v836 = vunpack.c.h.b16 %v746
      %v837 = vunpack.c.l.b16 %v747
      %v838 = vunpack.c.l.b16 %v748
      %v839 = vunpack.c.h.b16 %v748
      %v840 = vunpack.c.l.b16 %v749
      %v841 = vunpack.c.l.b16 %v750
      %v842 = vunpack.c.h.b16 %v750
      %v843 = vunpack.c.l.b16 %v751
      %v844 = vunpack.c.l.b16 %v752
      %v845 = vunpack.c.h.b16 %v752
      %v846 = vunpack.c.l.b16 %v753
      %v847 = vunpack.c.l.b16 %v754
      %v848 = vunpack.c.h.b16 %v754
      %v849 = vunpack.c.l.b16 %v755
      %v850 = vunpack.c.l.b16 %v756
      %v851 = vunpack.c.h.b16 %v756
      %v852 = vunpack.c.l.b16 %v757
      %v853 = vunpack.c.l.b16 %v758
      %v854 = vunpack.c.h.b16 %v758
      %v855 = vunpack.c.l.b16 %v759
      %v856 = vpack.c.b16 %v805, %v802
      %v857 = vpack.c.b16 %v806, %v803
      %v858 = vpack.c.b16 %v807, %v804
      %v859 = vpack.c.b16 %v811, %v808
      %v860 = vpack.c.b16 %v812, %v809
      %v861 = vpack.c.b16 %v813, %v810
      %v862 = vpack.c.b16 %v817, %v814
      %v863 = vpack.c.b16 %v818, %v815
      %v864 = vpack.c.b16 %v819, %v816
      %v865 = vpack.c.b16 %v823, %v820
      %v866 = vpack.c.b16 %v824, %v821
      %v867 = vpack.c.b16 %v825, %v822
      %v868 = vpack.c.b16 %v829, %v826
      %v869 = vpack.c.b16 %v830, %v827
      %v870 = vpack.c.b16 %v831, %v828
      %v871 = vpack.c.b16 %v835, %v832
      %v872 = vpack.c.b16 %v836, %v833
      %v873 = vpack.c.b16 %v837, %v834
      %v874 = vpack.c.b16 %v841, %v838
      %v875 = vpack.c.b16 %v842, %v839
      %v876 = vpack.c.b16 %v843, %v840
      %v877 = vpack.c.b16 %v847, %v844
      %v878 = vpack.c.b16 %v848, %v845
      %v879 = vpack.c.b16 %v849, %v846
      %v880 = vpack.c.b16 %v853, %v850
      %v881 = vpack.c.b16 %v854, %v851
      %v882 = vpack.c.b16 %v855, %v852
      %vm910 = vcmask 130048
      %v912 = vsel %vm910, %v764, 0
      %914 = vmatpush.bf16.msra.mxu0 %v877
      %915 = vmatpush.bf16.msra.mxu0 %v874
      %916 = vmatpush.bf16.msra.mxu0 %v871
      %917 = vmatpush.bf16.msra.mxu0 %v868
      %918 = vmatpush.bf16.msra.mxu0 %v865
      %919 = vmatpush.bf16.msra.mxu0 %v862
      %920 = vmatpush.bf16.msra.mxu0 %v859
      %921 = vmatpush.bf16.msra.mxu0 %v856
      %922 = vmatmul.bf16.gmra.mxu0 %v763
      %v923 = vpop.f32.mrf.mxu0
      %v924 = vadd.f32 0.0, %v923
      %v925 = vpop.f32.mrf.mxu0
      %926 = vdwg.mxu0
      %927 = vmatpush.bf16.msra.mxu0 0
      %928 = vmatpush.bf16.msra.mxu0 0
      %929 = vmatpush.bf16.msra.mxu0 0
      %930 = vmatpush.bf16.msra.mxu0 0
      %931 = vmatpush.bf16.msra.mxu0 0
      %932 = vmatpush.bf16.msra.mxu0 0
      %933 = vmatpush.bf16.msra.mxu0 0
      %934 = vmatpush.bf16.msra.mxu0 %v880
      %935 = vmatmul.bf16.gmra.mxu0 %v912
      %v936 = vpop.f32.mrf.mxu0
      %v937 = vadd.f32 %v924, %v936
      %v938 = vpop.f32.mrf.mxu0
      %939 = vdwg.mxu0
      %940 = vmatpush.bf16.msra.mxu0 %v878
      %941 = vmatpush.bf16.msra.mxu0 %v875
      %942 = vmatpush.bf16.msra.mxu0 %v872
      %943 = vmatpush.bf16.msra.mxu0 %v869
      %944 = vmatpush.bf16.msra.mxu0 %v866
      %945 = vmatpush.bf16.msra.mxu0 %v863
      %946 = vmatpush.bf16.msra.mxu0 %v860
      %947 = vmatpush.bf16.msra.mxu0 %v857
      %948 = vmatmul.bf16.gmra.mxu0 %v763
      %v949 = vpop.f32.mrf.mxu0
      %v950 = vadd.f32 0.0, %v949
      %v951 = vpop.f32.mrf.mxu0
      %952 = vdwg.mxu0
      %953 = vmatpush.bf16.msra.mxu0 0
      %954 = vmatpush.bf16.msra.mxu0 0
      %955 = vmatpush.bf16.msra.mxu0 0
      %956 = vmatpush.bf16.msra.mxu0 0
      %957 = vmatpush.bf16.msra.mxu0 0
      %958 = vmatpush.bf16.msra.mxu0 0
      %959 = vmatpush.bf16.msra.mxu0 0
      %960 = vmatpush.bf16.msra.mxu0 %v881
      %961 = vmatmul.bf16.gmra.mxu0 %v912
      %v962 = vpop.f32.mrf.mxu0
      %v963 = vadd.f32 %v950, %v962
      %v964 = vpop.f32.mrf.mxu0
      %965 = vdwg.mxu0
      %966 = vmatpush.bf16.msra.mxu0 %v879
      %967 = vmatpush.bf16.msra.mxu0 %v876
      %968 = vmatpush.bf16.msra.mxu0 %v873
      %969 = vmatpush.bf16.msra.mxu0 %v870
      %970 = vmatpush.bf16.msra.mxu0 %v867
      %971 = vmatpush.bf16.msra.mxu0 %v864
      %972 = vmatpush.bf16.msra.mxu0 %v861
      %973 = vmatpush.bf16.msra.mxu0 %v858
      %974 = vmatmul.bf16.gmra.mxu0 %v763
      %v975 = vpop.f32.mrf.mxu0
      %v976 = vadd.f32 0.0, %v975
      %v977 = vpop.f32.mrf.mxu0
      %978 = vdwg.mxu0
      %979 = vmatpush.bf16.msra.mxu0 0
      %980 = vmatpush.bf16.msra.mxu0 0
      %981 = vmatpush.bf16.msra.mxu0 0
      %982 = vmatpush.bf16.msra.mxu0 0
      %983 = vmatpush.bf16.msra.mxu0 0
      %984 = vmatpush.bf16.msra.mxu0 0
      %985 = vmatpush.bf16.msra.mxu0 0
      %986 = vmatpush.bf16.msra.mxu0 %v882
      %987 = vmatmul.bf16.gmra.mxu0 %v912
      %v988 = vpop.f32.mrf.mxu0
      %v989 = vadd.f32 %v976, %v988
      %v990 = vpop.f32.mrf.mxu0
      %991 = vdwg.mxu0
      %v993 = vperm.slane %v533, 0
      %v994 = vperm.slane %v533, 1
      %v995 = vperm.slane %v533, 2
      %v999 = vmul.f32 %v937, %v993
      %v1000 = vmul.f32 %v963, %v994
      %v1001 = vmul.f32 %v989, %v995
      %v1002 = vadd.f32 %v999, %v1000
      %v1003 = vadd.f32 %v1002, %v1001
      %1004 = vadd.xlane.f32.xlu0 %v1003
      %v1005 = vpop.xlane.xlu0 %1004
      %v1006 = vrot.slane %v1005, 4
      %v1007 = vadd.f32 %v1005, %v1006
      %v1008 = vrot.slane %v1007, 2
      %v1009 = vadd.f32 %v1007, %v1008
      %v1010 = vrot.slane %v1009, 1
      %v1011 = vadd.f32 %v1009, %v1010
      %s1012 = vtos %v1011
      %s1013 = smul.f32 %s1012, 0.00048828125
      %v1014 = vstv %s1013
      %v1015 = vsub.f32 %v937, %v1014
      %v1016 = vsub.f32 %v963, %v1014
      %v1017 = vsub.f32 %v989, %v1014
      %v1018 = vmul.f32 %v1015, %v993
      %v1019 = vmul.f32 %v1016, %v994
      %v1020 = vmul.f32 %v1017, %v995
      %v1021 = vmul.f32 %v1018, %v1018
      %v1022 = vmul.f32 %v1019, %v1019
      %v1023 = vmul.f32 %v1020, %v1020
      %v1024 = vadd.f32 %v1021, %v1022
      %v1025 = vadd.f32 %v1024, %v1023
      %1026 = vadd.xlane.f32.xlu0 %v1025
      %v1027 = vpop.xlane.xlu0 %1026
      %v1028 = vrot.slane %v1027, 4
      %v1029 = vadd.f32 %v1027, %v1028
      %v1030 = vrot.slane %v1029, 2
      %v1031 = vadd.f32 %v1029, %v1030
      %v1032 = vrot.slane %v1031, 1
      %v1033 = vadd.f32 %v1031, %v1032
      %s1034 = vtos %v1033
      %s1035 = smul.f32 %s1034, 0.00048828125
      %s1036 = sadd.f32 %s1035, 1e-05
      %v1037 = vstv %s1036
      %v1038 = vrsqrt.pop %v1037
      %v1039 = vmul.f32 %v1038, %v1037
      %v1040 = vmul.f32 %v1039, %v1038
      %v1041 = vmul.f32 0.5, %v1040
      %v1042 = vsub.f32 1.5, %v1041
      %v1043 = vmul.f32 %v1038, %v1042
      %vm1044 = vweird.f32 %v1037
      %vm1045 = vweird.f32 %v1038
      %vm1046 = vmor %vm1044, %vm1045
      %v1047 = vsel %vm1046, %v1038, %v1043
      %s1048 = vtos %v1047
      %v1049 = vstv %s1048
      %v1050 = vmul.f32 %v1015, %v1049
      %v1051 = vmul.f32 %v1016, %v1049
      %v1052 = vmul.f32 %v1017, %v1049
      %v1053 = vld [vmem:[%s4] sm:$0xff]
      %1055 = vset.pattern.permute.xlu0 0
      %1056 = vperm.xlu0 %1055, %v1053
      %v1057 = vpop.permute.xlu0 %1056
      %v1059 = vmul.f32 %v1050, %v1057
      %v1060 = vmul.f32 %v1051, %v1057
      %v1061 = vmul.f32 %v1052, %v1057
      %1063 = vset.pattern.permute.xlu0 0
      %1064 = vperm.xlu0 %1063, %v555
      %v1065 = vpop.permute.xlu0 %1064
      %v1067 = vadd.f32 %v1059, %v1065
      %v1068 = vadd.f32 %v1060, %v1065
      %v1069 = vadd.f32 %v1061, %v1065
      %v1070 = vmul.f32 %v1067, %v993
      %v1071 = vmul.f32 %v1068, %v994
      %v1072 = vmul.f32 %v1069, %v995
      %v1073 = vmul.f32 %v1070, 0.5
      %v1074 = vmul.f32 %v1071, 0.5
      %v1075 = vmul.f32 %v1072, 0.5
      %v1076 = vmul.f32 %v1070, 0.70710677
      %v1077 = vmul.f32 %v1071, 0.70710677
      %v1078 = vmul.f32 %v1072, 0.70710677
      %v1079 = vand.u32 2147483647, %v1076
      %v1080 = vand.u32 2147483647, %v1077
      %v1081 = vand.u32 2147483647, %v1078
      %v1082 = vmul.f32 %v1079, 0.3275911
      %v1083 = vmul.f32 %v1080, 0.3275911
      %v1084 = vmul.f32 %v1081, 0.3275911
      %v1085 = vadd.f32 %v1082, 1.0
      %v1086 = vadd.f32 %v1083, 1.0
      %v1087 = vadd.f32 %v1084, 1.0
      %v1088 = vrcp.pop %v1085
      %v1089 = vmul.f32 %v1085, %v1088
      %v1090 = vsub.f32 1.0, %v1089
      %v1091 = vmul.f32 %v1088, %v1090
      %v1092 = vadd.f32 %v1088, %v1091
      %vm1093 = vweird.f32 %v1085
      %vm1094 = vweird.f32 %v1088
      %vm1095 = vmor %vm1093, %vm1094
      %v1096 = vsel %vm1095, %v1088, %v1092
      %v1097 = vand.u32 2147483647, %v1085
      %vm1098 = vcmp.eq.f32.partialorder %v1097, 8.507059e+37
      %v1099 = vand.u32 %v1085, 2147483648
      %v1100 = vor.u32 1.1754944e-38, %v1099
      %v1101 = vsel %vm1098, %v1100, %v1096
      %v1102 = vmul.f32 1.0, %v1101
      %v1103 = vrcp.pop %v1086
      %v1104 = vmul.f32 %v1086, %v1103
      %v1105 = vsub.f32 1.0, %v1104
      %v1106 = vmul.f32 %v1103, %v1105
      %v1107 = vadd.f32 %v1103, %v1106
      %vm1108 = vweird.f32 %v1086
      %vm1109 = vweird.f32 %v1103
      %vm1110 = vmor %vm1108, %vm1109
      %v1111 = vsel %vm1110, %v1103, %v1107
      %v1112 = vand.u32 2147483647, %v1086
      %vm1113 = vcmp.eq.f32.partialorder %v1112, 8.507059e+37
      %v1114 = vand.u32 %v1086, 2147483648
      %v1115 = vor.u32 1.1754944e-38, %v1114
      %v1116 = vsel %vm1113, %v1115, %v1111
      %v1117 = vmul.f32 1.0, %v1116
      %v1118 = vrcp.pop %v1087
      %v1119 = vmul.f32 %v1087, %v1118
      %v1120 = vsub.f32 1.0, %v1119
      %v1121 = vmul.f32 %v1118, %v1120
      %v1122 = vadd.f32 %v1118, %v1121
      %vm1123 = vweird.f32 %v1087
      %vm1124 = vweird.f32 %v1118
      %vm1125 = vmor %vm1123, %vm1124
      %v1126 = vsel %vm1125, %v1118, %v1122
      %v1127 = vand.u32 2147483647, %v1087
      %vm1128 = vcmp.eq.f32.partialorder %v1127, 8.507059e+37
      %v1129 = vand.u32 %v1087, 2147483648
      %v1130 = vor.u32 1.1754944e-38, %v1129
      %v1131 = vsel %vm1128, %v1130, %v1126
      %v1132 = vmul.f32 1.0, %v1131
      %v1133 = vmul.f32 %v1102, 1.0614054
      %v1134 = vmul.f32 %v1117, 1.0614054
      %v1135 = vmul.f32 %v1132, 1.0614054
      %v1136 = vadd.f32 %v1133, -1.4531521
      %v1137 = vadd.f32 %v1134, -1.4531521
      %v1138 = vadd.f32 %v1135, -1.4531521
      %v1139 = vmul.f32 %v1136, %v1102
      %v1140 = vmul.f32 %v1137, %v1117
      %v1141 = vmul.f32 %v1138, %v1132
      %v1142 = vadd.f32 %v1139, 1.4214138
      %v1143 = vadd.f32 %v1140, 1.4214138
      %v1144 = vadd.f32 %v1141, 1.4214138
      %v1145 = vmul.f32 %v1142, %v1102
      %v1146 = vmul.f32 %v1143, %v1117
      %v1147 = vmul.f32 %v1144, %v1132
      %v1148 = vadd.f32 %v1145, -0.28449672
      %v1149 = vadd.f32 %v1146, -0.28449672
      %v1150 = vadd.f32 %v1147, -0.28449672
      %v1151 = vmul.f32 %v1148, %v1102
      %v1152 = vmul.f32 %v1149, %v1117
      %v1153 = vmul.f32 %v1150, %v1132
      %v1154 = vadd.f32 %v1151, 0.2548296
      %v1155 = vadd.f32 %v1152, 0.2548296
      %v1156 = vadd.f32 %v1153, 0.2548296
      %v1157 = vmul.f32 %v1154, %v1102
      %v1158 = vmul.f32 %v1155, %v1117
      %v1159 = vmul.f32 %v1156, %v1132
      %v1160 = vsub.f32 0.0, %v1079
      %v1161 = vsub.f32 0.0, %v1080
      %v1162 = vsub.f32 0.0, %v1081
      %v1163 = vmul.f32 %v1160, %v1079
      %v1164 = vmul.f32 %v1161, %v1080
      %v1165 = vmul.f32 %v1162, %v1081
      %v1166 = vmul.f32 %v1163, 1.442695
      %v1167 = vpow.pop %v1166
      %v1168 = vmul.f32 %v1164, 1.442695
      %v1169 = vpow.pop %v1168
      %v1170 = vmul.f32 %v1165, 1.442695
      %v1171 = vpow.pop %v1170
      %v1172 = vmul.f32 %v1157, %v1167
      %v1173 = vmul.f32 %v1158, %v1169
      %v1174 = vmul.f32 %v1159, %v1171
      %v1175 = vsub.f32 1.0, %v1172
      %v1176 = vsub.f32 1.0, %v1173
      %v1177 = vsub.f32 1.0, %v1174
      %vm1178 = vcmp.ge.f32.partialorder %v1076, 0.0
      %vm1179 = vcmp.ge.f32.partialorder %v1077, 0.0
      %vm1180 = vcmp.ge.f32.partialorder %v1078, 0.0
      %v1181 = vsub.f32 0.0, %v1175
      %v1182 = vsub.f32 0.0, %v1176
      %v1183 = vsub.f32 0.0, %v1177
      %v1184 = vsel %vm1178, %v1175, %v1181
      %v1185 = vsel %vm1179, %v1176, %v1182
      %v1186 = vsel %vm1180, %v1177, %v1183
      %v1187 = vadd.f32 %v1184, 1.0
      %v1188 = vadd.f32 %v1185, 1.0
      %v1189 = vadd.f32 %v1186, 1.0
      %v1190 = vmul.f32 %v1073, %v1187
      %v1191 = vmul.f32 %v1074, %v1188
      %v1192 = vmul.f32 %v1075, %v1189
      %v1193 = vpack.c.bf16 %v1191, %v1190
      %v1194 = vpack.c.bf16 %v1192, %v1192
      %1195 = vst [vmem:[#allocation2 + $0x4] sm:$0xff] %v1193
      %1196 = vst [vmem:[#allocation2 + $0xc] sm:$0xf] %v1194
      %v1197 = vld [vmem:[%s8] sm:$0xff]
      %1198 = vst [vmem:[#allocation3 + $0xc] sm:$0xff] 0
      %1199 = vst [vmem:[#allocation3 + $0x14] sm:$0xf] 0
      %1200 = vst [vmem:[#allocation3 + $0x24] sm:$0xff] 0
      %1201 = vst [vmem:[#allocation3 + $0x2c] sm:$0xf] 0
      %1202 = vst [vmem:[#allocation3 + $0x3c] sm:$0xff] 0
      %1203 = vst [vmem:[#allocation3 + $0x44] sm:$0xf] 0
      %1204 = vst [vmem:[#allocation3 + $0x54] sm:$0xff] 0
      %1205 = vst [vmem:[#allocation3 + $0x5c] sm:$0xf] 0
      %1206 = vst [vmem:[#allocation3 + $0x6c] sm:$0xff] 0
      %1207 = vst [vmem:[#allocation3 + $0x74] sm:$0xf] 0
      %1208 = vst [vmem:[#allocation3 + $0x84] sm:$0xff] 0
      %1209 = vst [vmem:[#allocation3 + $0x8c] sm:$0xf] 0
      %1210 = vst [vmem:[#allocation3 + $0x9c] sm:$0xff] 0
      %1211 = vst [vmem:[#allocation3 + $0xa4] sm:$0xf] 0
      %1212 = vst [vmem:[#allocation3 + $0xb4] sm:$0xff] 0
      %1213 = vst [vmem:[#allocation3 + $0xbc] sm:$0xf] 0
      %1214 = vst [vmem:[#allocation3 + $0xcc] sm:$0xff] 0
      %1215 = vst [vmem:[#allocation3 + $0xd4] sm:$0xf] 0
      %v1216 = vld [vmem:[#allocation2] sm:$0xff]
      %v1217 = vld [vmem:[#allocation2 + $0x8] sm:$0xff]
      %1220 = vrot.lane.b32.xlu0 %v1216, 19
      %v1221 = vpop.permute.xlu0 %1220
      %1222 = vrot.lane.b32.xlu0 %v1217, 19
      %v1223 = vpop.permute.xlu0 %1222
      %v1224 = vrot.slane %v1221, 4
      %v1225 = vrot.slane %v1223, 4
      %v1226 = vsel %vm584, %v1224, %v1225
      %v1227 = vsel %vm586, %v1221, %v1226
      %v1228 = vsel %vm586, %v1223, %v1225
      %1231 = vst [vmem:[#allocation3] sm:$0xff] %v1227
      %1232 = vst [vmem:[#allocation3 + $0x8] sm:$0xf] %v1228
      %v1233 = vld [vmem:[#allocation2] sm:$0xff]
      %v1234 = vld [vmem:[#allocation2 + $0x8] sm:$0xff]
      %1237 = vrot.lane.b32.xlu0 %v1233, 18
      %v1238 = vpop.permute.xlu0 %1237
      %1239 = vrot.lane.b32.xlu0 %v1234, 18
      %v1240 = vpop.permute.xlu0 %1239
      %v1241 = vrot.slane %v1238, 4
      %v1242 = vrot.slane %v1240, 4
      %v1243 = vsel %vm584, %v1241, %v1242
      %v1244 = vsel %vm604, %v1238, %v1243
      %v1245 = vsel %vm604, %v1240, %v1242
      %1248 = vst [vmem:[#allocation3 + $0x18] sm:$0xff] %v1244
      %1249 = vst [vmem:[#allocation3 + $0x20] sm:$0xf] %v1245
      %v1250 = vld [vmem:[#allocation2] sm:$0xff]
      %v1251 = vld [vmem:[#allocation2 + $0x8] sm:$0xff]
      %1254 = vrot.lane.b32.xlu0 %v1250, 17
      %v1255 = vpop.permute.xlu0 %1254
      %1256 = vrot.lane.b32.xlu0 %v1251, 17
      %v1257 = vpop.permute.xlu0 %1256
      %v1258 = vrot.slane %v1255, 4
      %v1259 = vrot.slane %v1257, 4
      %v1260 = vsel %vm584, %v1258, %v1259
      %v1261 = vsel %vm622, %v1255, %v1260
      %v1262 = vsel %vm622, %v1257, %v1259
      %1265 = vst [vmem:[#allocation3 + $0x30] sm:$0xff] %v1261
      %1266 = vst [vmem:[#allocation3 + $0x38] sm:$0xf] %v1262
      %v1267 = vld [vmem:[#allocation2] sm:$0xff]
      %v1268 = vld [vmem:[#allocation2 + $0x8] sm:$0xff]
      %1271 = vrot.lane.b32.xlu0 %v1267, 1
      %v1272 = vpop.permute.xlu0 %1271
      %1273 = vrot.lane.b32.xlu0 %v1268, 1
      %v1274 = vpop.permute.xlu0 %1273
      %v1275 = vrot.slane %v1272, 4
      %v1276 = vrot.slane %v1274, 4
      %v1277 = vsel %vm584, %v1275, %v1276
      %v1278 = vsel %vm640, %v1272, %v1277
      %v1279 = vsel %vm640, %v1274, %v1276
      %1282 = vst [vmem:[#allocation3 + $0x48] sm:$0xff] %v1278
      %1283 = vst [vmem:[#allocation3 + $0x50] sm:$0xf] %v1279
      %v1284 = vld [vmem:[#allocation2 + $0x4] sm:$0xff]
      %v1285 = vld [vmem:[#allocation2 + $0xc] sm:$0xf]
      %1286 = vst [vmem:[#allocation3 + $0x60] sm:$0xff] %v1284
      %1287 = vst [vmem:[#allocation3 + $0x68] sm:$0xf] %v1285
      %v1288 = vld [vmem:[#allocation2 + $0x4] sm:$0xff]
      %v1289 = vld [vmem:[#allocation2 + $0xc] sm:$0xff]
      %1292 = vrot.lane.b32.xlu0 %v1288, 127
      %v1293 = vpop.permute.xlu0 %1292
      %1294 = vrot.lane.b32.xlu0 %v1289, 127
      %v1295 = vpop.permute.xlu0 %1294
      %v1296 = vrot.slane %v1293, 4
      %v1297 = vrot.slane %v1295, 4
      %v1298 = vsel %vm584, %v1296, %v1297
      %v1299 = vsel %vm662, %v1293, %v1298
      %v1300 = vsel %vm662, %v1295, %v1297
      %1303 = vst [vmem:[#allocation3 + $0x78] sm:$0xff] %v1299
      %1304 = vst [vmem:[#allocation3 + $0x80] sm:$0xf] %v1300
      %v1305 = vld [vmem:[#allocation2 + $0x4] sm:$0xff]
      %v1306 = vld [vmem:[#allocation2 + $0xc] sm:$0xff]
      %1309 = vrot.lane.b32.xlu0 %v1305, 111
      %v1310 = vpop.permute.xlu0 %1309
      %1311 = vrot.lane.b32.xlu0 %v1306, 111
      %v1312 = vpop.permute.xlu0 %1311
      %v1313 = vrot.slane %v1310, 4
      %v1314 = vrot.slane %v1312, 4
      %v1315 = vsel %vm584, %v1313, %v1314
      %v1316 = vsel %vm680, %v1310, %v1315
      %v1317 = vsel %vm680, %v1312, %v1314
      %1320 = vst [vmem:[#allocation3 + $0x90] sm:$0xff] %v1316
      %1321 = vst [vmem:[#allocation3 + $0x98] sm:$0xf] %v1317
      %v1322 = vld [vmem:[#allocation2 + $0x4] sm:$0xff]
      %v1323 = vld [vmem:[#allocation2 + $0xc] sm:$0xff]
      %1326 = vrot.lane.b32.xlu0 %v1322, 110
      %v1327 = vpop.permute.xlu0 %1326
      %1328 = vrot.lane.b32.xlu0 %v1323, 110
      %v1329 = vpop.permute.xlu0 %1328
      %v1330 = vrot.slane %v1327, 4
      %v1331 = vrot.slane %v1329, 4
      %v1332 = vsel %vm584, %v1330, %v1331
      %v1333 = vsel %vm698, %v1327, %v1332
      %v1334 = vsel %vm698, %v1329, %v1331
      %1337 = vst [vmem:[#allocation3 + $0xa8] sm:$0xff] %v1333
      %1338 = vst [vmem:[#allocation3 + $0xb0] sm:$0xf] %v1334
      %v1339 = vld [vmem:[#allocation2 + $0x4] sm:$0xff]
      %v1340 = vld [vmem:[#allocation2 + $0xc] sm:$0xff]
      %1343 = vrot.lane.b32.xlu0 %v1339, 109
      %v1344 = vpop.permute.xlu0 %1343
      %1345 = vrot.lane.b32.xlu0 %v1340, 109
      %v1346 = vpop.permute.xlu0 %1345
      %v1347 = vrot.slane %v1344, 4
      %v1348 = vrot.slane %v1346, 4
      %v1349 = vsel %vm584, %v1347, %v1348
      %v1350 = vsel %vm716, %v1344, %v1349
      %v1351 = vsel %vm716, %v1346, %v1348
      %1354 = vst [vmem:[#allocation3 + $0xc0] sm:$0xff] %v1350
      %1355 = vst [vmem:[#allocation3 + $0xc8] sm:$0xf] %v1351
      %v1356 = vld [vmem:[%s6] sm:$0xff]
      %v1357 = vld [vmem:[#allocation3] sm:$0xff]
      %v1358 = vld [vmem:[#allocation3 + $0x8] sm:$0xf]
      %v1359 = vld [vmem:[#allocation3 + $0xc] sm:$0xff]
      %v1360 = vld [vmem:[#allocation3 + $0x14] sm:$0xf]
      %v1361 = vld [vmem:[#allocation3 + $0x18] sm:$0xff]
      %v1362 = vld [vmem:[#allocation3 + $0x20] sm:$0xf]
      %v1363 = vld [vmem:[#allocation3 + $0x24] sm:$0xff]
      %v1364 = vld [vmem:[#allocation3 + $0x2c] sm:$0xf]
      %v1365 = vld [vmem:[#allocation3 + $0x30] sm:$0xff]
      %v1366 = vld [vmem:[#allocation3 + $0x38] sm:$0xf]
      %v1367 = vld [vmem:[#allocation3 + $0x3c] sm:$0xff]
      %v1368 = vld [vmem:[#allocation3 + $0x44] sm:$0xf]
      %v1369 = vld [vmem:[#allocation3 + $0x48] sm:$0xff]
      %v1370 = vld [vmem:[#allocation3 + $0x50] sm:$0xf]
      %v1371 = vld [vmem:[#allocation3 + $0x54] sm:$0xff]
      %v1372 = vld [vmem:[#allocation3 + $0x5c] sm:$0xf]
      %v1373 = vld [vmem:[#allocation3 + $0x60] sm:$0xff]
      %v1374 = vld [vmem:[#allocation3 + $0x68] sm:$0xf]
      %v1375 = vld [vmem:[#allocation3 + $0x6c] sm:$0xff]
      %v1376 = vld [vmem:[#allocation3 + $0x74] sm:$0xf]
      %v1377 = vld [vmem:[#allocation3 + $0x78] sm:$0xff]
      %v1378 = vld [vmem:[#allocation3 + $0x80] sm:$0xf]
      %v1379 = vld [vmem:[#allocation3 + $0x84] sm:$0xff]
      %v1380 = vld [vmem:[#allocation3 + $0x8c] sm:$0xf]
      %v1381 = vld [vmem:[#allocation3 + $0x90] sm:$0xff]
      %v1382 = vld [vmem:[#allocation3 + $0x98] sm:$0xf]
      %v1383 = vld [vmem:[#allocation3 + $0x9c] sm:$0xff]
      %v1384 = vld [vmem:[#allocation3 + $0xa4] sm:$0xf]
      %v1385 = vld [vmem:[#allocation3 + $0xa8] sm:$0xff]
      %v1386 = vld [vmem:[#allocation3 + $0xb0] sm:$0xf]
      %v1387 = vld [vmem:[#allocation3 + $0xb4] sm:$0xff]
      %v1388 = vld [vmem:[#allocation3 + $0xbc] sm:$0xf]
      %v1389 = vld [vmem:[#allocation3 + $0xc0] sm:$0xff]
      %v1390 = vld [vmem:[#allocation3 + $0xc8] sm:$0xf]
      %v1391 = vld [vmem:[#allocation3 + $0xcc] sm:$0xff]
      %v1392 = vld [vmem:[#allocation3 + $0xd4] sm:$0xf]
      %v1394 = vunpack.c.l.b16 %v1356
      %v1395 = vunpack.c.h.b16 %v1356
      %v1396 = vpack.c.b16 %v1394, %v1394
      %v1397 = vpack.c.b16 %v1395, %v1395
      %v1435 = vunpack.c.l.b16 %v1357
      %v1436 = vunpack.c.h.b16 %v1357
      %v1437 = vunpack.c.l.b16 %v1358
      %v1438 = vunpack.c.l.b16 %v1359
      %v1439 = vunpack.c.h.b16 %v1359
      %v1440 = vunpack.c.l.b16 %v1360
      %v1441 = vunpack.c.l.b16 %v1361
      %v1442 = vunpack.c.h.b16 %v1361
      %v1443 = vunpack.c.l.b16 %v1362
      %v1444 = vunpack.c.l.b16 %v1363
      %v1445 = vunpack.c.h.b16 %v1363
      %v1446 = vunpack.c.l.b16 %v1364
      %v1447 = vunpack.c.l.b16 %v1365
      %v1448 = vunpack.c.h.b16 %v1365
      %v1449 = vunpack.c.l.b16 %v1366
      %v1450 = vunpack.c.l.b16 %v1367
      %v1451 = vunpack.c.h.b16 %v1367
      %v1452 = vunpack.c.l.b16 %v1368
      %v1453 = vunpack.c.l.b16 %v1369
      %v1454 = vunpack.c.h.b16 %v1369
      %v1455 = vunpack.c.l.b16 %v1370
      %v1456 = vunpack.c.l.b16 %v1371
      %v1457 = vunpack.c.h.b16 %v1371
      %v1458 = vunpack.c.l.b16 %v1372
      %v1459 = vunpack.c.l.b16 %v1373
      %v1460 = vunpack.c.h.b16 %v1373
      %v1461 = vunpack.c.l.b16 %v1374
      %v1462 = vunpack.c.l.b16 %v1375
      %v1463 = vunpack.c.h.b16 %v1375
      %v1464 = vunpack.c.l.b16 %v1376
      %v1465 = vunpack.c.l.b16 %v1377
      %v1466 = vunpack.c.h.b16 %v1377
      %v1467 = vunpack.c.l.b16 %v1378
      %v1468 = vunpack.c.l.b16 %v1379
      %v1469 = vunpack.c.h.b16 %v1379
      %v1470 = vunpack.c.l.b16 %v1380
      %v1471 = vunpack.c.l.b16 %v1381
      %v1472 = vunpack.c.h.b16 %v1381
      %v1473 = vunpack.c.l.b16 %v1382
      %v1474 = vunpack.c.l.b16 %v1383
      %v1475 = vunpack.c.h.b16 %v1383
      %v1476 = vunpack.c.l.b16 %v1384
      %v1477 = vunpack.c.l.b16 %v1385
      %v1478 = vunpack.c.h.b16 %v1385
      %v1479 = vunpack.c.l.b16 %v1386
      %v1480 = vunpack.c.l.b16 %v1387
      %v1481 = vunpack.c.h.b16 %v1387
      %v1482 = vunpack.c.l.b16 %v1388
      %v1483 = vunpack.c.l.b16 %v1389
      %v1484 = vunpack.c.h.b16 %v1389
      %v1485 = vunpack.c.l.b16 %v1390
      %v1486 = vunpack.c.l.b16 %v1391
      %v1487 = vunpack.c.h.b16 %v1391
      %v1488 = vunpack.c.l.b16 %v1392
      %v1489 = vpack.c.b16 %v1438, %v1435
      %v1490 = vpack.c.b16 %v1439, %v1436
      %v1491 = vpack.c.b16 %v1440, %v1437
      %v1492 = vpack.c.b16 %v1444, %v1441
      %v1493 = vpack.c.b16 %v1445, %v1442
      %v1494 = vpack.c.b16 %v1446, %v1443
      %v1495 = vpack.c.b16 %v1450, %v1447
      %v1496 = vpack.c.b16 %v1451, %v1448
      %v1497 = vpack.c.b16 %v1452, %v1449
      %v1498 = vpack.c.b16 %v1456, %v1453
      %v1499 = vpack.c.b16 %v1457, %v1454
      %v1500 = vpack.c.b16 %v1458, %v1455
      %v1501 = vpack.c.b16 %v1462, %v1459
      %v1502 = vpack.c.b16 %v1463, %v1460
      %v1503 = vpack.c.b16 %v1464, %v1461
      %v1504 = vpack.c.b16 %v1468, %v1465
      %v1505 = vpack.c.b16 %v1469, %v1466
      %v1506 = vpack.c.b16 %v1470, %v1467
      %v1507 = vpack.c.b16 %v1474, %v1471
      %v1508 = vpack.c.b16 %v1475, %v1472
      %v1509 = vpack.c.b16 %v1476, %v1473
      %v1510 = vpack.c.b16 %v1480, %v1477
      %v1511 = vpack.c.b16 %v1481, %v1478
      %v1512 = vpack.c.b16 %v1482, %v1479
      %v1513 = vpack.c.b16 %v1486, %v1483
      %v1514 = vpack.c.b16 %v1487, %v1484
      %v1515 = vpack.c.b16 %v1488, %v1485
      %v1544 = vsel %vm910, %v1397, 0
      %1546 = vmatpush.bf16.msra.mxu0 %v1510
      %1547 = vmatpush.bf16.msra.mxu0 %v1507
      %1548 = vmatpush.bf16.msra.mxu0 %v1504
      %1549 = vmatpush.bf16.msra.mxu0 %v1501
      %1550 = vmatpush.bf16.msra.mxu0 %v1498
      %1551 = vmatpush.bf16.msra.mxu0 %v1495
      %1552 = vmatpush.bf16.msra.mxu0 %v1492
      %1553 = vmatpush.bf16.msra.mxu0 %v1489
      %1554 = vmatmul.bf16.gmra.mxu0 %v1396
      %v1555 = vpop.f32.mrf.mxu0
      %v1556 = vadd.f32 0.0, %v1555
      %v1557 = vpop.f32.mrf.mxu0
      %1558 = vdwg.mxu0
      %1559 = vmatpush.bf16.msra.mxu0 0
      %1560 = vmatpush.bf16.msra.mxu0 0
      %1561 = vmatpush.bf16.msra.mxu0 0
      %1562 = vmatpush.bf16.msra.mxu0 0
      %1563 = vmatpush.bf16.msra.mxu0 0
      %1564 = vmatpush.bf16.msra.mxu0 0
      %1565 = vmatpush.bf16.msra.mxu0 0
      %1566 = vmatpush.bf16.msra.mxu0 %v1513
      %1567 = vmatmul.bf16.gmra.mxu0 %v1544
      %v1568 = vpop.f32.mrf.mxu0
      %v1569 = vadd.f32 %v1556, %v1568
      %v1570 = vpop.f32.mrf.mxu0
      %1571 = vdwg.mxu0
      %1572 = vmatpush.bf16.msra.mxu0 %v1511
      %1573 = vmatpush.bf16.msra.mxu0 %v1508
      %1574 = vmatpush.bf16.msra.mxu0 %v1505
      %1575 = vmatpush.bf16.msra.mxu0 %v1502
      %1576 = vmatpush.bf16.msra.mxu0 %v1499
      %1577 = vmatpush.bf16.msra.mxu0 %v1496
      %1578 = vmatpush.bf16.msra.mxu0 %v1493
      %1579 = vmatpush.bf16.msra.mxu0 %v1490
      %1580 = vmatmul.bf16.gmra.mxu0 %v1396
      %v1581 = vpop.f32.mrf.mxu0
      %v1582 = vadd.f32 0.0, %v1581
      %v1583 = vpop.f32.mrf.mxu0
      %1584 = vdwg.mxu0
      %1585 = vmatpush.bf16.msra.mxu0 0
      %1586 = vmatpush.bf16.msra.mxu0 0
      %1587 = vmatpush.bf16.msra.mxu0 0
      %1588 = vmatpush.bf16.msra.mxu0 0
      %1589 = vmatpush.bf16.msra.mxu0 0
      %1590 = vmatpush.bf16.msra.mxu0 0
      %1591 = vmatpush.bf16.msra.mxu0 0
      %1592 = vmatpush.bf16.msra.mxu0 %v1514
      %1593 = vmatmul.bf16.gmra.mxu0 %v1544
      %v1594 = vpop.f32.mrf.mxu0
      %v1595 = vadd.f32 %v1582, %v1594
      %v1596 = vpop.f32.mrf.mxu0
      %1597 = vdwg.mxu0
      %1598 = vmatpush.bf16.msra.mxu0 %v1512
      %1599 = vmatpush.bf16.msra.mxu0 %v1509
      %1600 = vmatpush.bf16.msra.mxu0 %v1506
      %1601 = vmatpush.bf16.msra.mxu0 %v1503
      %1602 = vmatpush.bf16.msra.mxu0 %v1500
      %1603 = vmatpush.bf16.msra.mxu0 %v1497
      %1604 = vmatpush.bf16.msra.mxu0 %v1494
      %1605 = vmatpush.bf16.msra.mxu0 %v1491
      %1606 = vmatmul.bf16.gmra.mxu0 %v1396
      %v1607 = vpop.f32.mrf.mxu0
      %v1608 = vadd.f32 0.0, %v1607
      %v1609 = vpop.f32.mrf.mxu0
      %1610 = vdwg.mxu0
      %1611 = vmatpush.bf16.msra.mxu0 0
      %1612 = vmatpush.bf16.msra.mxu0 0
      %1613 = vmatpush.bf16.msra.mxu0 0
      %1614 = vmatpush.bf16.msra.mxu0 0
      %1615 = vmatpush.bf16.msra.mxu0 0
      %1616 = vmatpush.bf16.msra.mxu0 0
      %1617 = vmatpush.bf16.msra.mxu0 0
      %1618 = vmatpush.bf16.msra.mxu0 %v1515
      %1619 = vmatmul.bf16.gmra.mxu0 %v1544
      %v1620 = vpop.f32.mrf.mxu0
      %v1621 = vadd.f32 %v1608, %v1620
      %v1622 = vpop.f32.mrf.mxu0
      %1623 = vdwg.mxu0
      %v1624 = vmul.f32 %v1569, %v993
      %v1625 = vmul.f32 %v1595, %v994
      %v1626 = vmul.f32 %v1621, %v995
      %v1627 = vadd.f32 %v1624, %v1625
      %v1628 = vadd.f32 %v1627, %v1626
      %1629 = vadd.xlane.f32.xlu0 %v1628
      %v1630 = vpop.xlane.xlu0 %1629
      %v1631 = vrot.slane %v1630, 4
      %v1632 = vadd.f32 %v1630, %v1631
      %v1633 = vrot.slane %v1632, 2
      %v1634 = vadd.f32 %v1632, %v1633
      %v1635 = vrot.slane %v1634, 1
      %v1636 = vadd.f32 %v1634, %v1635
      %s1637 = vtos %v1636
      %s1638 = smul.f32 %s1637, 0.00048828125
      %v1639 = vstv %s1638
      %v1640 = vsub.f32 %v1569, %v1639
      %v1641 = vsub.f32 %v1595, %v1639
      %v1642 = vsub.f32 %v1621, %v1639
      %v1643 = vmul.f32 %v1640, %v993
      %v1644 = vmul.f32 %v1641, %v994
      %v1645 = vmul.f32 %v1642, %v995
      %v1646 = vmul.f32 %v1643, %v1643
      %v1647 = vmul.f32 %v1644, %v1644
      %v1648 = vmul.f32 %v1645, %v1645
      %v1649 = vadd.f32 %v1646, %v1647
      %v1650 = vadd.f32 %v1649, %v1648
      %1651 = vadd.xlane.f32.xlu0 %v1650
      %v1652 = vpop.xlane.xlu0 %1651
      %v1653 = vrot.slane %v1652, 4
      %v1654 = vadd.f32 %v1652, %v1653
      %v1655 = vrot.slane %v1654, 2
      %v1656 = vadd.f32 %v1654, %v1655
      %v1657 = vrot.slane %v1656, 1
      %v1658 = vadd.f32 %v1656, %v1657
      %s1659 = vtos %v1658
      %s1660 = smul.f32 %s1659, 0.00048828125
      %s1661 = sadd.f32 %s1660, 1e-05
      %v1662 = vstv %s1661
      %v1663 = vrsqrt.pop %v1662
      %v1664 = vmul.f32 %v1663, %v1662
      %v1665 = vmul.f32 %v1664, %v1663
      %v1666 = vmul.f32 0.5, %v1665
      %v1667 = vsub.f32 1.5, %v1666
      %v1668 = vmul.f32 %v1663, %v1667
      %vm1669 = vweird.f32 %v1662
      %vm1670 = vweird.f32 %v1663
      %vm1671 = vmor %vm1669, %vm1670
      %v1672 = vsel %vm1671, %v1663, %v1668
      %s1673 = vtos %v1672
      %v1674 = vstv %s1673
      %v1675 = vmul.f32 %v1640, %v1674
      %v1676 = vmul.f32 %v1641, %v1674
      %v1677 = vmul.f32 %v1642, %v1674
      %v1678 = vld [vmem:[%s7] sm:$0xff]
      %1680 = vset.pattern.permute.xlu0 0
      %1681 = vperm.xlu0 %1680, %v1678
      %v1682 = vpop.permute.xlu0 %1681
      %v1684 = vmul.f32 %v1675, %v1682
      %v1685 = vmul.f32 %v1676, %v1682
      %v1686 = vmul.f32 %v1677, %v1682
      %1688 = vset.pattern.permute.xlu0 0
      %1689 = vperm.xlu0 %1688, %v1197
      %v1690 = vpop.permute.xlu0 %1689
      %v1692 = vadd.f32 %v1684, %v1690
      %v1693 = vadd.f32 %v1685, %v1690
      %v1694 = vadd.f32 %v1686, %v1690
      %v1695 = vmul.f32 %v1692, %v993
      %v1696 = vmul.f32 %v1693, %v994
      %v1697 = vmul.f32 %v1694, %v995
      %v1698 = vld [vmem:[%s517] sm:$0x3f]
      %v1699 = vunpack.c.l.bf16 %v1698
      %v1700 = vunpack.c.h.bf16 %v1698
      %v1703 = vrot.slane %v1696, 4
      %vm1704 = vcmask 1043456
      %v1705 = vsel %vm1704, %v1695, %v1703
      %v1707 = vadd.f32 %v1699, %v1705
      %v1708 = vadd.f32 %v1700, %v1697
      %v1709 = vmul.f32 %v1707, 0.5
      %v1710 = vmul.f32 %v1708, 0.5
      %v1711 = vmul.f32 %v1707, 0.70710677
      %v1712 = vmul.f32 %v1708, 0.70710677
      %v1713 = vand.u32 2147483647, %v1711
      %v1714 = vand.u32 2147483647, %v1712
      %v1715 = vmul.f32 %v1713, 0.3275911
      %v1716 = vmul.f32 %v1714, 0.3275911
      %v1717 = vadd.f32 %v1715, 1.0
      %v1718 = vadd.f32 %v1716, 1.0
      %v1719 = vrcp.pop %v1717
      %v1720 = vmul.f32 %v1717, %v1719
      %v1721 = vsub.f32 1.0, %v1720
      %v1722 = vmul.f32 %v1719, %v1721
      %v1723 = vadd.f32 %v1719, %v1722
      %vm1724 = vweird.f32 %v1717
      %vm1725 = vweird.f32 %v1719
      %vm1726 = vmor %vm1724, %vm1725
      %v1727 = vsel %vm1726, %v1719, %v1723
      %v1728 = vand.u32 2147483647, %v1717
      %vm1729 = vcmp.eq.f32.partialorder %v1728, 8.507059e+37
      %v1730 = vand.u32 %v1717, 2147483648
      %v1731 = vor.u32 1.1754944e-38, %v1730
      %v1732 = vsel %vm1729, %v1731, %v1727
      %v1733 = vmul.f32 1.0, %v1732
      %v1734 = vrcp.pop %v1718
      %v1735 = vmul.f32 %v1718, %v1734
      %v1736 = vsub.f32 1.0, %v1735
      %v1737 = vmul.f32 %v1734, %v1736
      %v1738 = vadd.f32 %v1734, %v1737
      %vm1739 = vweird.f32 %v1718
      %vm1740 = vweird.f32 %v1734
      %vm1741 = vmor %vm1739, %vm1740
      %v1742 = vsel %vm1741, %v1734, %v1738
      %v1743 = vand.u32 2147483647, %v1718
      %vm1744 = vcmp.eq.f32.partialorder %v1743, 8.507059e+37
      %v1745 = vand.u32 %v1718, 2147483648
      %v1746 = vor.u32 1.1754944e-38, %v1745
      %v1747 = vsel %vm1744, %v1746, %v1742
      %v1748 = vmul.f32 1.0, %v1747
      %v1749 = vmul.f32 %v1733, 1.0614054
      %v1750 = vmul.f32 %v1748, 1.0614054
      %v1751 = vadd.f32 %v1749, -1.4531521
      %v1752 = vadd.f32 %v1750, -1.4531521
      %v1753 = vmul.f32 %v1751, %v1733
      %v1754 = vmul.f32 %v1752, %v1748
      %v1755 = vadd.f32 %v1753, 1.4214138
      %v1756 = vadd.f32 %v1754, 1.4214138
      %v1757 = vmul.f32 %v1755, %v1733
      %v1758 = vmul.f32 %v1756, %v1748
      %v1759 = vadd.f32 %v1757, -0.28449672
      %v1760 = vadd.f32 %v1758, -0.28449672
      %v1761 = vmul.f32 %v1759, %v1733
      %v1762 = vmul.f32 %v1760, %v1748
      %v1763 = vadd.f32 %v1761, 0.2548296
      %v1764 = vadd.f32 %v1762, 0.2548296
      %v1765 = vmul.f32 %v1763, %v1733
      %v1766 = vmul.f32 %v1764, %v1748
      %v1767 = vsub.f32 0.0, %v1713
      %v1768 = vsub.f32 0.0, %v1714
      %v1769 = vmul.f32 %v1767, %v1713
      %v1770 = vmul.f32 %v1768, %v1714
      %v1771 = vmul.f32 %v1769, 1.442695
      %v1772 = vpow.pop %v1771
      %v1773 = vmul.f32 %v1770, 1.442695
      %v1774 = vpow.pop %v1773
      %v1775 = vmul.f32 %v1765, %v1772
      %v1776 = vmul.f32 %v1766, %v1774
      %v1777 = vsub.f32 1.0, %v1775
      %v1778 = vsub.f32 1.0, %v1776
      %vm1779 = vcmp.ge.f32.partialorder %v1711, 0.0
      %vm1780 = vcmp.ge.f32.partialorder %v1712, 0.0
      %v1781 = vsub.f32 0.0, %v1777
      %v1782 = vsub.f32 0.0, %v1778
      %v1783 = vsel %vm1779, %v1777, %v1781
      %v1784 = vsel %vm1780, %v1778, %v1782
      %v1785 = vadd.f32 %v1783, 1.0
      %v1786 = vadd.f32 %v1784, 1.0
      %v1787 = vmul.f32 %v1709, %v1785
      %v1788 = vmul.f32 %v1710, %v1786
      %1791 = vst [vmem:[#allocation1] ss:$2 sm:$0xff] %v1787
      %s1792 = scalar_lea.vmem [#allocation1], 16
      %1793 = vst [vmem:[%s1792] ss:$2 sm:$0xff] %v1788
      %v1794 = vld.sshfl [vmem:[#allocation1] sm:$0xff pattern:$0x75316420]
      %v1795 = vld.sshfl [vmem:[#allocation1 + $0x8] sm:$0xff pattern:$0x75316420]
      %v1796 = vld.sshfl [vmem:[#allocation1 + $0x10] sm:$0xff pattern:$0x75316420]
      %v1800 = vpack.c.bf16 %v1795, %v1794
      %v1801 = vpack.c.bf16 %v1796, %v1796
      %1802 = vst [vmem:[#allocation2 + $0x4] sm:$0x33] %v1800
      %1803 = vst [vmem:[#allocation2 + $0xc] sm:$0x3] %v1801
      %v1804 = vld [vmem:[%s522] sm:$0x3f]
      %v1805 = vunpack.c.l.bf16 %v1804
      %v1806 = vunpack.c.h.bf16 %v1804
      %1808 = vst.sshfl [vmem:[#allocation1] sm:$0xff pattern:$0x75316420] %v1695
      %1809 = vst.sshfl [vmem:[#allocation1 + $0x8] sm:$0xff pattern:$0x75316420] %v1696
      %1810 = vst.sshfl [vmem:[#allocation1 + $0x10] sm:$0xff pattern:$0x75316420] %v1697
      %s1811 = scalar_lea.vmem [#allocation1], 1
      %v1812 = vld [vmem:[%s1811] ss:$2 sm:$0xff]
      %s1813 = scalar_lea.vmem [#allocation1], 17
      %v1814 = vld [vmem:[%s1813] ss:$2 sm:$0xff]
      %v1817 = vadd.f32 %v1805, %v1812
      %v1818 = vadd.f32 %v1806, %v1814
      %v1819 = vmul.f32 %v1817, 0.5
      %v1820 = vmul.f32 %v1818, 0.5
      %v1821 = vmul.f32 %v1817, 0.70710677
      %v1822 = vmul.f32 %v1818, 0.70710677
      %v1823 = vand.u32 2147483647, %v1821
      %v1824 = vand.u32 2147483647, %v1822
      %v1825 = vmul.f32 %v1823, 0.3275911
      %v1826 = vmul.f32 %v1824, 0.3275911
      %v1827 = vadd.f32 %v1825, 1.0
      %v1828 = vadd.f32 %v1826, 1.0
      %v1829 = vrcp.pop %v1827
      %v1830 = vmul.f32 %v1827, %v1829
      %v1831 = vsub.f32 1.0, %v1830
      %v1832 = vmul.f32 %v1829, %v1831
      %v1833 = vadd.f32 %v1829, %v1832
      %vm1834 = vweird.f32 %v1827
      %vm1835 = vweird.f32 %v1829
      %vm1836 = vmor %vm1834, %vm1835
      %v1837 = vsel %vm1836, %v1829, %v1833
      %v1838 = vand.u32 2147483647, %v1827
      %vm1839 = vcmp.eq.f32.partialorder %v1838, 8.507059e+37
      %v1840 = vand.u32 %v1827, 2147483648
      %v1841 = vor.u32 1.1754944e-38, %v1840
      %v1842 = vsel %vm1839, %v1841, %v1837
      %v1843 = vmul.f32 1.0, %v1842
      %v1844 = vrcp.pop %v1828
      %v1845 = vmul.f32 %v1828, %v1844
      %v1846 = vsub.f32 1.0, %v1845
      %v1847 = vmul.f32 %v1844, %v1846
      %v1848 = vadd.f32 %v1844, %v1847
      %vm1849 = vweird.f32 %v1828
      %vm1850 = vweird.f32 %v1844
      %vm1851 = vmor %vm1849, %vm1850
      %v1852 = vsel %vm1851, %v1844, %v1848
      %v1853 = vand.u32 2147483647, %v1828
      %vm1854 = vcmp.eq.f32.partialorder %v1853, 8.507059e+37
      %v1855 = vand.u32 %v1828, 2147483648
      %v1856 = vor.u32 1.1754944e-38, %v1855
      %v1857 = vsel %vm1854, %v1856, %v1852
      %v1858 = vmul.f32 1.0, %v1857
      %v1859 = vmul.f32 %v1843, 1.0614054
      %v1860 = vmul.f32 %v1858, 1.0614054
      %v1861 = vadd.f32 %v1859, -1.4531521
      %v1862 = vadd.f32 %v1860, -1.4531521
      %v1863 = vmul.f32 %v1861, %v1843
      %v1864 = vmul.f32 %v1862, %v1858
      %v1865 = vadd.f32 %v1863, 1.4214138
      %v1866 = vadd.f32 %v1864, 1.4214138
      %v1867 = vmul.f32 %v1865, %v1843
      %v1868 = vmul.f32 %v1866, %v1858
      %v1869 = vadd.f32 %v1867, -0.28449672
      %v1870 = vadd.f32 %v1868, -0.28449672
      %v1871 = vmul.f32 %v1869, %v1843
      %v1872 = vmul.f32 %v1870, %v1858
      %v1873 = vadd.f32 %v1871, 0.2548296
      %v1874 = vadd.f32 %v1872, 0.2548296
      %v1875 = vmul.f32 %v1873, %v1843
      %v1876 = vmul.f32 %v1874, %v1858
      %v1877 = vsub.f32 0.0, %v1823
      %v1878 = vsub.f32 0.0, %v1824
      %v1879 = vmul.f32 %v1877, %v1823
      %v1880 = vmul.f32 %v1878, %v1824
      %v1881 = vmul.f32 %v1879, 1.442695
      %v1882 = vpow.pop %v1881
      %v1883 = vmul.f32 %v1880, 1.442695
      %v1884 = vpow.pop %v1883
      %v1885 = vmul.f32 %v1875, %v1882
      %v1886 = vmul.f32 %v1876, %v1884
      %v1887 = vsub.f32 1.0, %v1885
      %v1888 = vsub.f32 1.0, %v1886
      %vm1889 = vcmp.ge.f32.partialorder %v1821, 0.0
      %vm1890 = vcmp.ge.f32.partialorder %v1822, 0.0
      %v1891 = vsub.f32 0.0, %v1887
      %v1892 = vsub.f32 0.0, %v1888
      %v1893 = vsel %vm1889, %v1887, %v1891
      %v1894 = vsel %vm1890, %v1888, %v1892
      %v1895 = vadd.f32 %v1893, 1.0
      %v1896 = vadd.f32 %v1894, 1.0
      %v1897 = vmul.f32 %v1819, %v1895
      %v1898 = vmul.f32 %v1820, %v1896
      %1901 = vst [vmem:[#allocation1] ss:$2 sm:$0xff] %v1897
      %s1902 = scalar_lea.vmem [#allocation1], 16
      %1903 = vst [vmem:[%s1902] ss:$2 sm:$0xff] %v1898
      %v1904 = vld.sshfl [vmem:[#allocation1] sm:$0xff pattern:$0x75316420]
      %v1905 = vld.sshfl [vmem:[#allocation1 + $0x8] sm:$0xff pattern:$0x75316420]
      %v1906 = vld.sshfl [vmem:[#allocation1 + $0x10] sm:$0xff pattern:$0x75316420]
      %v1910 = vpack.c.bf16 %v1905, %v1904
      %v1911 = vpack.c.bf16 %v1906, %v1906
      %v1914 = vrot.slane %v1910, 6
      %v1915 = vrot.slane %v1911, 6
      %1918 = vst [vmem:[#allocation2 + $0x4] sm:$0xcc] %v1914
      %1919 = vst [vmem:[#allocation2 + $0xc] sm:$0xc] %v1915
      %v1920 = vld [vmem:[%s11] sm:$0xf]
      %1921 = vst [vmem:[#allocation3 + $0xc] sm:$0xff] 0
      %1922 = vst [vmem:[#allocation3 + $0x14] sm:$0xf] 0
      %1923 = vst [vmem:[#allocation3 + $0x24] sm:$0xff] 0
      %1924 = vst [vmem:[#allocation3 + $0x2c] sm:$0xf] 0
      %1925 = vst [vmem:[#allocation3 + $0x3c] sm:$0xff] 0
      %1926 = vst [vmem:[#allocation3 + $0x44] sm:$0xf] 0
      %1927 = vst [vmem:[#allocation3 + $0x54] sm:$0xff] 0
      %1928 = vst [vmem:[#allocation3 + $0x5c] sm:$0xf] 0
      %1929 = vst [vmem:[#allocation3 + $0x6c] sm:$0xff] 0
      %1930 = vst [vmem:[#allocation3 + $0x74] sm:$0xf] 0
      %1931 = vst [vmem:[#allocation3 + $0x84] sm:$0xff] 0
      %1932 = vst [vmem:[#allocation3 + $0x8c] sm:$0xf] 0
      %1933 = vst [vmem:[#allocation3 + $0x9c] sm:$0xff] 0
      %1934 = vst [vmem:[#allocation3 + $0xa4] sm:$0xf] 0
      %1935 = vst [vmem:[#allocation3 + $0xb4] sm:$0xff] 0
      %1936 = vst [vmem:[#allocation3 + $0xbc] sm:$0xf] 0
      %1937 = vst [vmem:[#allocation3 + $0xcc] sm:$0xff] 0
      %1938 = vst [vmem:[#allocation3 + $0xd4] sm:$0xf] 0
      %v1939 = vld [vmem:[#allocation2] sm:$0xff]
      %v1940 = vld [vmem:[#allocation2 + $0x8] sm:$0xff]
      %1943 = vrot.lane.b32.xlu0 %v1939, 19
      %v1944 = vpop.permute.xlu0 %1943
      %1945 = vrot.lane.b32.xlu0 %v1940, 19
      %v1946 = vpop.permute.xlu0 %1945
      %v1947 = vrot.slane %v1944, 4
      %v1948 = vrot.slane %v1946, 4
      %v1949 = vsel %vm584, %v1947, %v1948
      %v1950 = vsel %vm586, %v1944, %v1949
      %v1951 = vsel %vm586, %v1946, %v1948
      %1954 = vst [vmem:[#allocation3] sm:$0xff] %v1950
      %1955 = vst [vmem:[#allocation3 + $0x8] sm:$0xf] %v1951
      %v1956 = vld [vmem:[#allocation2] sm:$0xff]
      %v1957 = vld [vmem:[#allocation2 + $0x8] sm:$0xff]
      %1960 = vrot.lane.b32.xlu0 %v1956, 18
      %v1961 = vpop.permute.xlu0 %1960
      %1962 = vrot.lane.b32.xlu0 %v1957, 18
      %v1963 = vpop.permute.xlu0 %1962
      %v1964 = vrot.slane %v1961, 4
      %v1965 = vrot.slane %v1963, 4
      %v1966 = vsel %vm584, %v1964, %v1965
      %v1967 = vsel %vm604, %v1961, %v1966
      %v1968 = vsel %vm604, %v1963, %v1965
      %1971 = vst [vmem:[#allocation3 + $0x18] sm:$0xff] %v1967
      %1972 = vst [vmem:[#allocation3 + $0x20] sm:$0xf] %v1968
      %v1973 = vld [vmem:[#allocation2] sm:$0xff]
      %v1974 = vld [vmem:[#allocation2 + $0x8] sm:$0xff]
      %1977 = vrot.lane.b32.xlu0 %v1973, 17
      %v1978 = vpop.permute.xlu0 %1977
      %1979 = vrot.lane.b32.xlu0 %v1974, 17
      %v1980 = vpop.permute.xlu0 %1979
      %v1981 = vrot.slane %v1978, 4
      %v1982 = vrot.slane %v1980, 4
      %v1983 = vsel %vm584, %v1981, %v1982
      %v1984 = vsel %vm622, %v1978, %v1983
      %v1985 = vsel %vm622, %v1980, %v1982
      %1988 = vst [vmem:[#allocation3 + $0x30] sm:$0xff] %v1984
      %1989 = vst [vmem:[#allocation3 + $0x38] sm:$0xf] %v1985
      %v1990 = vld [vmem:[#allocation2] sm:$0xff]
      %v1991 = vld [vmem:[#allocation2 + $0x8] sm:$0xff]
      %1994 = vrot.lane.b32.xlu0 %v1990, 1
      %v1995 = vpop.permute.xlu0 %1994
      %1996 = vrot.lane.b32.xlu0 %v1991, 1
      %v1997 = vpop.permute.xlu0 %1996
      %v1998 = vrot.slane %v1995, 4
      %v1999 = vrot.slane %v1997, 4
      %v2000 = vsel %vm584, %v1998, %v1999
      %v2001 = vsel %vm640, %v1995, %v2000
      %v2002 = vsel %vm640, %v1997, %v1999
      %2005 = vst [vmem:[#allocation3 + $0x48] sm:$0xff] %v2001
      %2006 = vst [vmem:[#allocation3 + $0x50] sm:$0xf] %v2002
      %v2007 = vld [vmem:[#allocation2 + $0x4] sm:$0xff]
      %v2008 = vld [vmem:[#allocation2 + $0xc] sm:$0xf]
      %2009 = vst [vmem:[#allocation3 + $0x60] sm:$0xff] %v2007
      %2010 = vst [vmem:[#allocation3 + $0x68] sm:$0xf] %v2008
      %v2011 = vld [vmem:[#allocation2 + $0x4] sm:$0xff]
      %v2012 = vld [vmem:[#allocation2 + $0xc] sm:$0xff]
      %2015 = vrot.lane.b32.xlu0 %v2011, 127
      %v2016 = vpop.permute.xlu0 %2015
      %2017 = vrot.lane.b32.xlu0 %v2012, 127
      %v2018 = vpop.permute.xlu0 %2017
      %v2019 = vrot.slane %v2016, 4
      %v2020 = vrot.slane %v2018, 4
      %v2021 = vsel %vm584, %v2019, %v2020
      %v2022 = vsel %vm662, %v2016, %v2021
      %v2023 = vsel %vm662, %v2018, %v2020
      %2026 = vst [vmem:[#allocation3 + $0x78] sm:$0xff] %v2022
      %2027 = vst [vmem:[#allocation3 + $0x80] sm:$0xf] %v2023
      %v2028 = vld [vmem:[#allocation2 + $0x4] sm:$0xff]
      %v2029 = vld [vmem:[#allocation2 + $0xc] sm:$0xff]
      %2032 = vrot.lane.b32.xlu0 %v2028, 111
      %v2033 = vpop.permute.xlu0 %2032
      %2034 = vrot.lane.b32.xlu0 %v2029, 111
      %v2035 = vpop.permute.xlu0 %2034
      %v2036 = vrot.slane %v2033, 4
      %v2037 = vrot.slane %v2035, 4
      %v2038 = vsel %vm584, %v2036, %v2037
      %v2039 = vsel %vm680, %v2033, %v2038
      %v2040 = vsel %vm680, %v2035, %v2037
      %2043 = vst [vmem:[#allocation3 + $0x90] sm:$0xff] %v2039
      %2044 = vst [vmem:[#allocation3 + $0x98] sm:$0xf] %v2040
      %v2045 = vld [vmem:[#allocation2 + $0x4] sm:$0xff]
      %v2046 = vld [vmem:[#allocation2 + $0xc] sm:$0xff]
      %2049 = vrot.lane.b32.xlu0 %v2045, 110
      %v2050 = vpop.permute.xlu0 %2049
      %2051 = vrot.lane.b32.xlu0 %v2046, 110
      %v2052 = vpop.permute.xlu0 %2051
      %v2053 = vrot.slane %v2050, 4
      %v2054 = vrot.slane %v2052, 4
      %v2055 = vsel %vm584, %v2053, %v2054
      %v2056 = vsel %vm698, %v2050, %v2055
      %v2057 = vsel %vm698, %v2052, %v2054
      %2060 = vst [vmem:[#allocation3 + $0xa8] sm:$0xff] %v2056
      %2061 = vst [vmem:[#allocation3 + $0xb0] sm:$0xf] %v2057
      %v2062 = vld [vmem:[#allocation2 + $0x4] sm:$0xff]
      %v2063 = vld [vmem:[#allocation2 + $0xc] sm:$0xff]
      %2066 = vrot.lane.b32.xlu0 %v2062, 109
      %v2067 = vpop.permute.xlu0 %2066
      %2068 = vrot.lane.b32.xlu0 %v2063, 109
      %v2069 = vpop.permute.xlu0 %2068
      %v2070 = vrot.slane %v2067, 4
      %v2071 = vrot.slane %v2069, 4
      %v2072 = vsel %vm584, %v2070, %v2071
      %v2073 = vsel %vm716, %v2067, %v2072
      %v2074 = vsel %vm716, %v2069, %v2071
      %2077 = vst [vmem:[#allocation3 + $0xc0] sm:$0xff] %v2073
      %2078 = vst [vmem:[#allocation3 + $0xc8] sm:$0xf] %v2074
      %v2079 = vld [vmem:[%s9] sm:$0xf]
      %v2080 = vld [vmem:[#allocation3] sm:$0xff]
      %v2081 = vld [vmem:[#allocation3 + $0x8] sm:$0xf]
      %v2082 = vld [vmem:[#allocation3 + $0xc] sm:$0xff]
      %v2083 = vld [vmem:[#allocation3 + $0x14] sm:$0xf]
      %v2084 = vld [vmem:[#allocation3 + $0x18] sm:$0xff]
      %v2085 = vld [vmem:[#allocation3 + $0x20] sm:$0xf]
      %v2086 = vld [vmem:[#allocation3 + $0x24] sm:$0xff]
      %v2087 = vld [vmem:[#allocation3 + $0x2c] sm:$0xf]
      %v2088 = vld [vmem:[#allocation3 + $0x30] sm:$0xff]
      %v2089 = vld [vmem:[#allocation3 + $0x38] sm:$0xf]
      %v2090 = vld [vmem:[#allocation3 + $0x3c] sm:$0xff]
      %v2091 = vld [vmem:[#allocation3 + $0x44] sm:$0xf]
      %v2092 = vld [vmem:[#allocation3 + $0x48] sm:$0xff]
      %v2093 = vld [vmem:[#allocation3 + $0x50] sm:$0xf]
      %v2094 = vld [vmem:[#allocation3 + $0x54] sm:$0xff]
      %v2095 = vld [vmem:[#allocation3 + $0x5c] sm:$0xf]
      %v2096 = vld [vmem:[#allocation3 + $0x60] sm:$0xff]
      %v2097 = vld [vmem:[#allocation3 + $0x68] sm:$0xf]
      %v2098 = vld [vmem:[#allocation3 + $0x6c] sm:$0xff]
      %v2099 = vld [vmem:[#allocation3 + $0x74] sm:$0xf]
      %v2100 = vld [vmem:[#allocation3 + $0x78] sm:$0xff]
      %v2101 = vld [vmem:[#allocation3 + $0x80] sm:$0xf]
      %v2102 = vld [vmem:[#allocation3 + $0x84] sm:$0xff]
      %v2103 = vld [vmem:[#allocation3 + $0x8c] sm:$0xf]
      %v2104 = vld [vmem:[#allocation3 + $0x90] sm:$0xff]
      %v2105 = vld [vmem:[#allocation3 + $0x98] sm:$0xf]
      %v2106 = vld [vmem:[#allocation3 + $0x9c] sm:$0xff]
      %v2107 = vld [vmem:[#allocation3 + $0xa4] sm:$0xf]
      %v2108 = vld [vmem:[#allocation3 + $0xa8] sm:$0xff]
      %v2109 = vld [vmem:[#allocation3 + $0xb0] sm:$0xf]
      %v2110 = vld [vmem:[#allocation3 + $0xb4] sm:$0xff]
      %v2111 = vld [vmem:[#allocation3 + $0xbc] sm:$0xf]
      %v2112 = vld [vmem:[#allocation3 + $0xc0] sm:$0xff]
      %v2113 = vld [vmem:[#allocation3 + $0xc8] sm:$0xf]
      %v2114 = vld [vmem:[#allocation3 + $0xcc] sm:$0xff]
      %v2115 = vld [vmem:[#allocation3 + $0xd4] sm:$0xf]
      %2117 = vst [vmem:[#allocation1] ss:$4 sm:$0xff] %v2079
      %v2118 = vld.sshfl [vmem:[#allocation1] sm:$0xff pattern:$0x73625140]
      %v2119 = vld.sshfl [vmem:[#allocation1 + $0x8] sm:$0xff pattern:$0x73625140]
      %v2157 = vunpack.c.l.b16 %v2080
      %v2158 = vunpack.c.h.b16 %v2080
      %v2159 = vunpack.c.l.b16 %v2081
      %v2160 = vunpack.c.l.b16 %v2082
      %v2161 = vunpack.c.h.b16 %v2082
      %v2162 = vunpack.c.l.b16 %v2083
      %v2163 = vunpack.c.l.b16 %v2084
      %v2164 = vunpack.c.h.b16 %v2084
      %v2165 = vunpack.c.l.b16 %v2085
      %v2166 = vunpack.c.l.b16 %v2086
      %v2167 = vunpack.c.h.b16 %v2086
      %v2168 = vunpack.c.l.b16 %v2087
      %v2169 = vunpack.c.l.b16 %v2088
      %v2170 = vunpack.c.h.b16 %v2088
      %v2171 = vunpack.c.l.b16 %v2089
      %v2172 = vunpack.c.l.b16 %v2090
      %v2173 = vunpack.c.h.b16 %v2090
      %v2174 = vunpack.c.l.b16 %v2091
      %v2175 = vunpack.c.l.b16 %v2092
      %v2176 = vunpack.c.h.b16 %v2092
      %v2177 = vunpack.c.l.b16 %v2093
      %v2178 = vunpack.c.l.b16 %v2094
      %v2179 = vunpack.c.h.b16 %v2094
      %v2180 = vunpack.c.l.b16 %v2095
      %v2181 = vunpack.c.l.b16 %v2096
      %v2182 = vunpack.c.h.b16 %v2096
      %v2183 = vunpack.c.l.b16 %v2097
      %v2184 = vunpack.c.l.b16 %v2098
      %v2185 = vunpack.c.h.b16 %v2098
      %v2186 = vunpack.c.l.b16 %v2099
      %v2187 = vunpack.c.l.b16 %v2100
      %v2188 = vunpack.c.h.b16 %v2100
      %v2189 = vunpack.c.l.b16 %v2101
      %v2190 = vunpack.c.l.b16 %v2102
      %v2191 = vunpack.c.h.b16 %v2102
      %v2192 = vunpack.c.l.b16 %v2103
      %v2193 = vunpack.c.l.b16 %v2104
      %v2194 = vunpack.c.h.b16 %v2104
      %v2195 = vunpack.c.l.b16 %v2105
      %v2196 = vunpack.c.l.b16 %v2106
      %v2197 = vunpack.c.h.b16 %v2106
      %v2198 = vunpack.c.l.b16 %v2107
      %v2199 = vunpack.c.l.b16 %v2108
      %v2200 = vunpack.c.h.b16 %v2108
      %v2201 = vunpack.c.l.b16 %v2109
      %v2202 = vunpack.c.l.b16 %v2110
      %v2203 = vunpack.c.h.b16 %v2110
      %v2204 = vunpack.c.l.b16 %v2111
      %v2205 = vunpack.c.l.b16 %v2112
      %v2206 = vunpack.c.h.b16 %v2112
      %v2207 = vunpack.c.l.b16 %v2113
      %v2208 = vunpack.c.l.b16 %v2114
      %v2209 = vunpack.c.h.b16 %v2114
      %v2210 = vunpack.c.l.b16 %v2115
      %v2211 = vpack.c.b16 %v2160, %v2157
      %v2212 = vpack.c.b16 %v2161, %v2158
      %v2213 = vpack.c.b16 %v2162, %v2159
      %v2214 = vpack.c.b16 %v2166, %v2163
      %v2215 = vpack.c.b16 %v2167, %v2164
      %v2216 = vpack.c.b16 %v2168, %v2165
      %v2217 = vpack.c.b16 %v2172, %v2169
      %v2218 = vpack.c.b16 %v2173, %v2170
      %v2219 = vpack.c.b16 %v2174, %v2171
      %v2220 = vpack.c.b16 %v2178, %v2175
      %v2221 = vpack.c.b16 %v2179, %v2176
      %v2222 = vpack.c.b16 %v2180, %v2177
      %v2223 = vpack.c.b16 %v2184, %v2181
      %v2224 = vpack.c.b16 %v2185, %v2182
      %v2225 = vpack.c.b16 %v2186, %v2183
      %v2226 = vpack.c.b16 %v2190, %v2187
      %v2227 = vpack.c.b16 %v2191, %v2188
      %v2228 = vpack.c.b16 %v2192, %v2189
      %v2229 = vpack.c.b16 %v2196, %v2193
      %v2230 = vpack.c.b16 %v2197, %v2194
      %v2231 = vpack.c.b16 %v2198, %v2195
      %v2232 = vpack.c.b16 %v2202, %v2199
      %v2233 = vpack.c.b16 %v2203, %v2200
      %v2234 = vpack.c.b16 %v2204, %v2201
      %v2235 = vpack.c.b16 %v2208, %v2205
      %v2236 = vpack.c.b16 %v2209, %v2206
      %v2237 = vpack.c.b16 %v2210, %v2207
      %v2265 = vsel %vm910, %v2119, 0
      %2267 = vmatpush.bf16.msra.mxu0 %v2232
      %2268 = vmatpush.bf16.msra.mxu0 %v2229
      %2269 = vmatpush.bf16.msra.mxu0 %v2226
      %2270 = vmatpush.bf16.msra.mxu0 %v2223
      %2271 = vmatpush.bf16.msra.mxu0 %v2220
      %2272 = vmatpush.bf16.msra.mxu0 %v2217
      %2273 = vmatpush.bf16.msra.mxu0 %v2214
      %2274 = vmatpush.bf16.msra.mxu0 %v2211
      %2275 = vmatmul.bf16.gmra.mxu0 %v2118
      %v2276 = vpop.f32.mrf.mxu0
      %v2277 = vadd.f32 0.0, %v2276
      %v2278 = vpop.f32.mrf.mxu0
      %2279 = vdwg.mxu0
      %2280 = vmatpush.bf16.msra.mxu0 0
      %2281 = vmatpush.bf16.msra.mxu0 0
      %2282 = vmatpush.bf16.msra.mxu0 0
      %2283 = vmatpush.bf16.msra.mxu0 0
      %2284 = vmatpush.bf16.msra.mxu0 0
      %2285 = vmatpush.bf16.msra.mxu0 0
      %2286 = vmatpush.bf16.msra.mxu0 0
      %2287 = vmatpush.bf16.msra.mxu0 %v2235
      %2288 = vmatmul.bf16.gmra.mxu0 %v2265
      %v2289 = vpop.f32.mrf.mxu0
      %v2290 = vadd.f32 %v2277, %v2289
      %v2291 = vpop.f32.mrf.mxu0
      %2292 = vdwg.mxu0
      %2293 = vmatpush.bf16.msra.mxu0 %v2233
      %2294 = vmatpush.bf16.msra.mxu0 %v2230
      %2295 = vmatpush.bf16.msra.mxu0 %v2227
      %2296 = vmatpush.bf16.msra.mxu0 %v2224
      %2297 = vmatpush.bf16.msra.mxu0 %v2221
      %2298 = vmatpush.bf16.msra.mxu0 %v2218
      %2299 = vmatpush.bf16.msra.mxu0 %v2215
      %2300 = vmatpush.bf16.msra.mxu0 %v2212
      %2301 = vmatmul.bf16.gmra.mxu0 %v2118
      %v2302 = vpop.f32.mrf.mxu0
      %v2303 = vadd.f32 0.0, %v2302
      %v2304 = vpop.f32.mrf.mxu0
      %2305 = vdwg.mxu0
      %2306 = vmatpush.bf16.msra.mxu0 0
      %2307 = vmatpush.bf16.msra.mxu0 0
      %2308 = vmatpush.bf16.msra.mxu0 0
      %2309 = vmatpush.bf16.msra.mxu0 0
      %2310 = vmatpush.bf16.msra.mxu0 0
      %2311 = vmatpush.bf16.msra.mxu0 0
      %2312 = vmatpush.bf16.msra.mxu0 0
      %2313 = vmatpush.bf16.msra.mxu0 %v2236
      %2314 = vmatmul.bf16.gmra.mxu0 %v2265
      %v2315 = vpop.f32.mrf.mxu0
      %v2316 = vadd.f32 %v2303, %v2315
      %v2317 = vpop.f32.mrf.mxu0
      %2318 = vdwg.mxu0
      %2319 = vmatpush.bf16.msra.mxu0 %v2234
      %2320 = vmatpush.bf16.msra.mxu0 %v2231
      %2321 = vmatpush.bf16.msra.mxu0 %v2228
      %2322 = vmatpush.bf16.msra.mxu0 %v2225
      %2323 = vmatpush.bf16.msra.mxu0 %v2222
      %2324 = vmatpush.bf16.msra.mxu0 %v2219
      %2325 = vmatpush.bf16.msra.mxu0 %v2216
      %2326 = vmatpush.bf16.msra.mxu0 %v2213
      %2327 = vmatmul.bf16.gmra.mxu0 %v2118
      %v2328 = vpop.f32.mrf.mxu0
      %v2329 = vadd.f32 0.0, %v2328
      %v2330 = vpop.f32.mrf.mxu0
      %2331 = vdwg.mxu0
      %2332 = vmatpush.bf16.msra.mxu0 0
      %2333 = vmatpush.bf16.msra.mxu0 0
      %2334 = vmatpush.bf16.msra.mxu0 0
      %2335 = vmatpush.bf16.msra.mxu0 0
      %2336 = vmatpush.bf16.msra.mxu0 0
      %2337 = vmatpush.bf16.msra.mxu0 0
      %2338 = vmatpush.bf16.msra.mxu0 0
      %2339 = vmatpush.bf16.msra.mxu0 %v2237
      %2340 = vmatmul.bf16.gmra.mxu0 %v2265
      %v2341 = vpop.f32.mrf.mxu0
      %v2342 = vadd.f32 %v2329, %v2341
      %v2343 = vpop.f32.mrf.mxu0
      %2344 = vdwg.mxu0
      %v2345 = vmul.f32 %v2290, %v993
      %v2346 = vmul.f32 %v2316, %v994
      %v2347 = vmul.f32 %v2342, %v995
      %v2348 = vsel %vm1704, %v2345, 0.0
      %v2349 = vsel %vm1704, %v2346, 0.0
      %v2350 = vadd.f32 %v2348, %v2349
      %v2351 = vsel %vm1704, %v2347, 0.0
      %v2352 = vadd.f32 %v2350, %v2351
      %2353 = vadd.xlane.f32.xlu0 %v2352
      %v2354 = vpop.xlane.xlu0 %2353
      %v2355 = vrot.slane %v2354, 4
      %v2356 = vadd.f32 %v2354, %v2355
      %v2357 = vrot.slane %v2356, 2
      %v2358 = vadd.f32 %v2356, %v2357
      %v2359 = vrot.slane %v2358, 1
      %v2360 = vadd.f32 %v2358, %v2359
      %s2361 = vtos %v2360
      %s2362 = smul.f32 %s2361, 0.0009765625
      %v2363 = vstv %s2362
      %v2364 = vsub.f32 %v2290, %v2363
      %v2365 = vsub.f32 %v2316, %v2363
      %v2366 = vsub.f32 %v2342, %v2363
      %v2367 = vmul.f32 %v2364, %v993
      %v2368 = vmul.f32 %v2365, %v994
      %v2369 = vmul.f32 %v2366, %v995
      %v2370 = vmul.f32 %v2367, %v2367
      %v2371 = vmul.f32 %v2368, %v2368
      %v2372 = vmul.f32 %v2369, %v2369
      %v2373 = vsel %vm1704, %v2370, 0.0
      %v2374 = vsel %vm1704, %v2371, 0.0
      %v2375 = vadd.f32 %v2373, %v2374
      %v2376 = vsel %vm1704, %v2372, 0.0
      %v2377 = vadd.f32 %v2375, %v2376
      %2378 = vadd.xlane.f32.xlu0 %v2377
      %v2379 = vpop.xlane.xlu0 %2378
      %v2380 = vrot.slane %v2379, 4
      %v2381 = vadd.f32 %v2379, %v2380
      %v2382 = vrot.slane %v2381, 2
      %v2383 = vadd.f32 %v2381, %v2382
      %v2384 = vrot.slane %v2383, 1
      %v2385 = vadd.f32 %v2383, %v2384
      %s2386 = vtos %v2385
      %s2387 = smul.f32 %s2386, 0.0009765625
      %s2388 = sadd.f32 %s2387, 1e-05
      %v2389 = vstv %s2388
      %v2390 = vrsqrt.pop %v2389
      %v2391 = vmul.f32 %v2390, %v2389
      %v2392 = vmul.f32 %v2391, %v2390
      %v2393 = vmul.f32 0.5, %v2392
      %v2394 = vsub.f32 1.5, %v2393
      %v2395 = vmul.f32 %v2390, %v2394
      %vm2396 = vweird.f32 %v2389
      %vm2397 = vweird.f32 %v2390
      %vm2398 = vmor %vm2396, %vm2397
      %v2399 = vsel %vm2398, %v2390, %v2395
      %s2400 = vtos %v2399
      %v2401 = vstv %s2400
      %v2402 = vmul.f32 %v2364, %v2401
      %v2403 = vmul.f32 %v2365, %v2401
      %v2404 = vmul.f32 %v2366, %v2401
      %v2405 = vld [vmem:[%s10] sm:$0xf]
      %2407 = vset.pattern.permute.xlu0 0
      %2408 = vperm.xlu0 %2407, %v2405
      %v2409 = vpop.permute.xlu0 %2408
      %v2411 = vmul.f32 %v2402, %v2409
      %v2412 = vmul.f32 %v2403, %v2409
      %v2413 = vmul.f32 %v2404, %v2409
      %2415 = vset.pattern.permute.xlu0 0
      %2416 = vperm.xlu0 %2415, %v1920
      %v2417 = vpop.permute.xlu0 %2416
      %v2419 = vadd.f32 %v2411, %v2417
      %v2420 = vadd.f32 %v2412, %v2417
      %v2421 = vadd.f32 %v2413, %v2417
      %v2422 = vmul.f32 %v2419, %v993
      %v2423 = vmul.f32 %v2420, %v994
      %v2424 = vmul.f32 %v2421, %v995
      %v2425 = vmul.f32 %v2422, 0.5
      %v2426 = vmul.f32 %v2423, 0.5
      %v2427 = vmul.f32 %v2424, 0.5
      %v2428 = vmul.f32 %v2422, 0.70710677
      %v2429 = vmul.f32 %v2423, 0.70710677
      %v2430 = vmul.f32 %v2424, 0.70710677
      %v2431 = vand.u32 2147483647, %v2428
      %v2432 = vand.u32 2147483647, %v2429
      %v2433 = vand.u32 2147483647, %v2430
      %v2434 = vmul.f32 %v2431, 0.3275911
      %v2435 = vmul.f32 %v2432, 0.3275911
      %v2436 = vmul.f32 %v2433, 0.3275911
      %v2437 = vadd.f32 %v2434, 1.0
      %v2438 = vadd.f32 %v2435, 1.0
      %v2439 = vadd.f32 %v2436, 1.0
      %v2440 = vrcp.pop %v2437
      %v2441 = vmul.f32 %v2437, %v2440
      %v2442 = vsub.f32 1.0, %v2441
      %v2443 = vmul.f32 %v2440, %v2442
      %v2444 = vadd.f32 %v2440, %v2443
      %vm2445 = vweird.f32 %v2437
      %vm2446 = vweird.f32 %v2440
      %vm2447 = vmor %vm2445, %vm2446
      %v2448 = vsel %vm2447, %v2440, %v2444
      %v2449 = vand.u32 2147483647, %v2437
      %vm2450 = vcmp.eq.f32.partialorder %v2449, 8.507059e+37
      %v2451 = vand.u32 %v2437, 2147483648
      %v2452 = vor.u32 1.1754944e-38, %v2451
      %v2453 = vsel %vm2450, %v2452, %v2448
      %v2454 = vmul.f32 1.0, %v2453
      %v2455 = vrcp.pop %v2438
      %v2456 = vmul.f32 %v2438, %v2455
      %v2457 = vsub.f32 1.0, %v2456
      %v2458 = vmul.f32 %v2455, %v2457
      %v2459 = vadd.f32 %v2455, %v2458
      %vm2460 = vweird.f32 %v2438
      %vm2461 = vweird.f32 %v2455
      %vm2462 = vmor %vm2460, %vm2461
      %v2463 = vsel %vm2462, %v2455, %v2459
      %v2464 = vand.u32 2147483647, %v2438
      %vm2465 = vcmp.eq.f32.partialorder %v2464, 8.507059e+37
      %v2466 = vand.u32 %v2438, 2147483648
      %v2467 = vor.u32 1.1754944e-38, %v2466
      %v2468 = vsel %vm2465, %v2467, %v2463
      %v2469 = vmul.f32 1.0, %v2468
      %v2470 = vrcp.pop %v2439
      %v2471 = vmul.f32 %v2439, %v2470
      %v2472 = vsub.f32 1.0, %v2471
      %v2473 = vmul.f32 %v2470, %v2472
      %v2474 = vadd.f32 %v2470, %v2473
      %vm2475 = vweird.f32 %v2439
      %vm2476 = vweird.f32 %v2470
      %vm2477 = vmor %vm2475, %vm2476
      %v2478 = vsel %vm2477, %v2470, %v2474
      %v2479 = vand.u32 2147483647, %v2439
      %vm2480 = vcmp.eq.f32.partialorder %v2479, 8.507059e+37
      %v2481 = vand.u32 %v2439, 2147483648
      %v2482 = vor.u32 1.1754944e-38, %v2481
      %v2483 = vsel %vm2480, %v2482, %v2478
      %v2484 = vmul.f32 1.0, %v2483
      %v2485 = vmul.f32 %v2454, 1.0614054
      %v2486 = vmul.f32 %v2469, 1.0614054
      %v2487 = vmul.f32 %v2484, 1.0614054
      %v2488 = vadd.f32 %v2485, -1.4531521
      %v2489 = vadd.f32 %v2486, -1.4531521
      %v2490 = vadd.f32 %v2487, -1.4531521
      %v2491 = vmul.f32 %v2488, %v2454
      %v2492 = vmul.f32 %v2489, %v2469
      %v2493 = vmul.f32 %v2490, %v2484
      %v2494 = vadd.f32 %v2491, 1.4214138
      %v2495 = vadd.f32 %v2492, 1.4214138
      %v2496 = vadd.f32 %v2493, 1.4214138
      %v2497 = vmul.f32 %v2494, %v2454
      %v2498 = vmul.f32 %v2495, %v2469
      %v2499 = vmul.f32 %v2496, %v2484
      %v2500 = vadd.f32 %v2497, -0.28449672
      %v2501 = vadd.f32 %v2498, -0.28449672
      %v2502 = vadd.f32 %v2499, -0.28449672
      %v2503 = vmul.f32 %v2500, %v2454
      %v2504 = vmul.f32 %v2501, %v2469
      %v2505 = vmul.f32 %v2502, %v2484
      %v2506 = vadd.f32 %v2503, 0.2548296
      %v2507 = vadd.f32 %v2504, 0.2548296
      %v2508 = vadd.f32 %v2505, 0.2548296
      %v2509 = vmul.f32 %v2506, %v2454
      %v2510 = vmul.f32 %v2507, %v2469
      %v2511 = vmul.f32 %v2508, %v2484
      %v2512 = vsub.f32 0.0, %v2431
      %v2513 = vsub.f32 0.0, %v2432
      %v2514 = vsub.f32 0.0, %v2433
      %v2515 = vmul.f32 %v2512, %v2431
      %v2516 = vmul.f32 %v2513, %v2432
      %v2517 = vmul.f32 %v2514, %v2433
      %v2518 = vmul.f32 %v2515, 1.442695
      %v2519 = vpow.pop %v2518
      %v2520 = vmul.f32 %v2516, 1.442695
      %v2521 = vpow.pop %v2520
      %v2522 = vmul.f32 %v2517, 1.442695
      %v2523 = vpow.pop %v2522
      %v2524 = vmul.f32 %v2509, %v2519
      %v2525 = vmul.f32 %v2510, %v2521
      %v2526 = vmul.f32 %v2511, %v2523
      %v2527 = vsub.f32 1.0, %v2524
      %v2528 = vsub.f32 1.0, %v2525
      %v2529 = vsub.f32 1.0, %v2526
      %vm2530 = vcmp.ge.f32.partialorder %v2428, 0.0
      %vm2531 = vcmp.ge.f32.partialorder %v2429, 0.0
      %vm2532 = vcmp.ge.f32.partialorder %v2430, 0.0
      %v2533 = vsub.f32 0.0, %v2527
      %v2534 = vsub.f32 0.0, %v2528
      %v2535 = vsub.f32 0.0, %v2529
      %v2536 = vsel %vm2530, %v2527, %v2533
      %v2537 = vsel %vm2531, %v2528, %v2534
      %v2538 = vsel %vm2532, %v2529, %v2535
      %v2539 = vadd.f32 %v2536, 1.0
      %v2540 = vadd.f32 %v2537, 1.0
      %v2541 = vadd.f32 %v2538, 1.0
      %v2542 = vmul.f32 %v2425, %v2539
      %v2543 = vmul.f32 %v2426, %v2540
      %v2544 = vmul.f32 %v2427, %v2541
      %v2545 = vpack.c.bf16 %v2543, %v2542
      %v2546 = vpack.c.bf16 %v2544, %v2544
      %2547 = vst [vmem:[#allocation2 + $0x4] sm:$0x33] %v2545
      %2548 = vst [vmem:[#allocation2 + $0xc] sm:$0x3] %v2546
      %v2549 = vld [vmem:[%s526] sm:$0xff]
      %2550 = vst [vmem:[#allocation3] sm:$0xcc] 0
      %2551 = vst [vmem:[#allocation3 + $0x8] sm:$0xc] 0
      %2552 = vst [vmem:[#allocation3 + $0xc] sm:$0xff] 0
      %2553 = vst [vmem:[#allocation3 + $0x14] sm:$0xf] 0
      %2554 = vst [vmem:[#allocation3 + $0x18] sm:$0xcc] 0
      %2555 = vst [vmem:[#allocation3 + $0x20] sm:$0xc] 0
      %2556 = vst [vmem:[#allocation3 + $0x24] sm:$0xff] 0
      %2557 = vst [vmem:[#allocation3 + $0x2c] sm:$0xf] 0
      %2558 = vst [vmem:[#allocation3 + $0x30] sm:$0xcc] 0
      %2559 = vst [vmem:[#allocation3 + $0x38] sm:$0xc] 0
      %2560 = vst [vmem:[#allocation3 + $0x3c] sm:$0xff] 0
      %2561 = vst [vmem:[#allocation3 + $0x44] sm:$0xf] 0
      %2562 = vst [vmem:[#allocation3 + $0x48] sm:$0xcc] 0
      %2563 = vst [vmem:[#allocation3 + $0x50] sm:$0xc] 0
      %2564 = vst [vmem:[#allocation3 + $0x54] sm:$0xff] 0
      %2565 = vst [vmem:[#allocation3 + $0x5c] sm:$0xf] 0
      %2566 = vst [vmem:[#allocation3 + $0x60] sm:$0xcc] 0
      %2567 = vst [vmem:[#allocation3 + $0x68] sm:$0xc] 0
      %2568 = vst [vmem:[#allocation3 + $0x6c] sm:$0xff] 0
      %2569 = vst [vmem:[#allocation3 + $0x74] sm:$0xf] 0
      %2570 = vst [vmem:[#allocation3 + $0x78] sm:$0xcc] 0
      %2571 = vst [vmem:[#allocation3 + $0x80] sm:$0xc] 0
      %2572 = vst [vmem:[#allocation3 + $0x84] sm:$0xff] 0
      %2573 = vst [vmem:[#allocation3 + $0x8c] sm:$0xf] 0
      %2574 = vst [vmem:[#allocation3 + $0x90] sm:$0xcc] 0
      %2575 = vst [vmem:[#allocation3 + $0x98] sm:$0xc] 0
      %2576 = vst [vmem:[#allocation3 + $0x9c] sm:$0xff] 0
      %2577 = vst [vmem:[#allocation3 + $0xa4] sm:$0xf] 0
      %2578 = vst [vmem:[#allocation3 + $0xa8] sm:$0xcc] 0
      %2579 = vst [vmem:[#allocation3 + $0xb0] sm:$0xc] 0
      %2580 = vst [vmem:[#allocation3 + $0xb4] sm:$0xff] 0
      %2581 = vst [vmem:[#allocation3 + $0xbc] sm:$0xf] 0
      %2582 = vst [vmem:[#allocation3 + $0xc0] sm:$0xcc] 0
      %2583 = vst [vmem:[#allocation3 + $0xc8] sm:$0xc] 0
      %2584 = vst [vmem:[#allocation3 + $0xcc] sm:$0xff] 0
      %2585 = vst [vmem:[#allocation3 + $0xd4] sm:$0xf] 0
      %v2586 = vld [vmem:[#allocation2] sm:$0x33]
      %v2587 = vld [vmem:[#allocation2 + $0x8] sm:$0x33]
      %2590 = vrot.lane.b32.xlu0 %v2586, 19
      %v2591 = vpop.permute.xlu0 %2590
      %2592 = vrot.lane.b32.xlu0 %v2587, 19
      %v2593 = vpop.permute.xlu0 %2592
      %v2594 = vrot.slane %v2591, 4
      %v2595 = vrot.slane %v2593, 4
      %v2596 = vsel %vm584, %v2594, %v2595
      %v2597 = vsel %vm586, %v2591, %v2596
      %v2598 = vsel %vm586, %v2593, %v2595
      %2601 = vst [vmem:[#allocation3] sm:$0x33] %v2597
      %2602 = vst [vmem:[#allocation3 + $0x8] sm:$0x3] %v2598
      %v2603 = vld [vmem:[#allocation2] sm:$0x33]
      %v2604 = vld [vmem:[#allocation2 + $0x8] sm:$0x33]
      %2607 = vrot.lane.b32.xlu0 %v2603, 18
      %v2608 = vpop.permute.xlu0 %2607
      %2609 = vrot.lane.b32.xlu0 %v2604, 18
      %v2610 = vpop.permute.xlu0 %2609
      %v2611 = vrot.slane %v2608, 4
      %v2612 = vrot.slane %v2610, 4
      %v2613 = vsel %vm584, %v2611, %v2612
      %v2614 = vsel %vm604, %v2608, %v2613
      %v2615 = vsel %vm604, %v2610, %v2612
      %2618 = vst [vmem:[#allocation3 + $0x18] sm:$0x33] %v2614
      %2619 = vst [vmem:[#allocation3 + $0x20] sm:$0x3] %v2615
      %v2620 = vld [vmem:[#allocation2] sm:$0x33]
      %v2621 = vld [vmem:[#allocation2 + $0x8] sm:$0x33]
      %2624 = vrot.lane.b32.xlu0 %v2620, 17
      %v2625 = vpop.permute.xlu0 %2624
      %2626 = vrot.lane.b32.xlu0 %v2621, 17
      %v2627 = vpop.permute.xlu0 %2626
      %v2628 = vrot.slane %v2625, 4
      %v2629 = vrot.slane %v2627, 4
      %v2630 = vsel %vm584, %v2628, %v2629
      %v2631 = vsel %vm622, %v2625, %v2630
      %v2632 = vsel %vm622, %v2627, %v2629
      %2635 = vst [vmem:[#allocation3 + $0x30] sm:$0x33] %v2631
      %2636 = vst [vmem:[#allocation3 + $0x38] sm:$0x3] %v2632
      %v2637 = vld [vmem:[#allocation2] sm:$0x33]
      %v2638 = vld [vmem:[#allocation2 + $0x8] sm:$0x33]
      %2641 = vrot.lane.b32.xlu0 %v2637, 1
      %v2642 = vpop.permute.xlu0 %2641
      %2643 = vrot.lane.b32.xlu0 %v2638, 1
      %v2644 = vpop.permute.xlu0 %2643
      %v2645 = vrot.slane %v2642, 4
      %v2646 = vrot.slane %v2644, 4
      %v2647 = vsel %vm584, %v2645, %v2646
      %v2648 = vsel %vm640, %v2642, %v2647
      %v2649 = vsel %vm640, %v2644, %v2646
      %2652 = vst [vmem:[#allocation3 + $0x48] sm:$0x33] %v2648
      %2653 = vst [vmem:[#allocation3 + $0x50] sm:$0x3] %v2649
      %v2654 = vld [vmem:[#allocation2 + $0x4] sm:$0x33]
      %v2655 = vld [vmem:[#allocation2 + $0xc] sm:$0x3]
      %2656 = vst [vmem:[#allocation3 + $0x60] sm:$0x33] %v2654
      %2657 = vst [vmem:[#allocation3 + $0x68] sm:$0x3] %v2655
      %v2658 = vld [vmem:[#allocation2 + $0x4] sm:$0x33]
      %v2659 = vld [vmem:[#allocation2 + $0xc] sm:$0x33]
      %2662 = vrot.lane.b32.xlu0 %v2658, 127
      %v2663 = vpop.permute.xlu0 %2662
      %2664 = vrot.lane.b32.xlu0 %v2659, 127
      %v2665 = vpop.permute.xlu0 %2664
      %v2666 = vrot.slane %v2663, 4
      %v2667 = vrot.slane %v2665, 4
      %v2668 = vsel %vm584, %v2666, %v2667
      %v2669 = vsel %vm662, %v2663, %v2668
      %v2670 = vsel %vm662, %v2665, %v2667
      %2673 = vst [vmem:[#allocation3 + $0x78] sm:$0x33] %v2669
      %2674 = vst [vmem:[#allocation3 + $0x80] sm:$0x3] %v2670
      %v2675 = vld [vmem:[#allocation2 + $0x4] sm:$0x33]
      %v2676 = vld [vmem:[#allocation2 + $0xc] sm:$0x33]
      %2679 = vrot.lane.b32.xlu0 %v2675, 111
      %v2680 = vpop.permute.xlu0 %2679
      %2681 = vrot.lane.b32.xlu0 %v2676, 111
      %v2682 = vpop.permute.xlu0 %2681
      %v2683 = vrot.slane %v2680, 4
      %v2684 = vrot.slane %v2682, 4
      %v2685 = vsel %vm584, %v2683, %v2684
      %v2686 = vsel %vm680, %v2680, %v2685
      %v2687 = vsel %vm680, %v2682, %v2684
      %2690 = vst [vmem:[#allocation3 + $0x90] sm:$0x33] %v2686
      %2691 = vst [vmem:[#allocation3 + $0x98] sm:$0x3] %v2687
      %v2692 = vld [vmem:[#allocation2 + $0x4] sm:$0x33]
      %v2693 = vld [vmem:[#allocation2 + $0xc] sm:$0x33]
      %2696 = vrot.lane.b32.xlu0 %v2692, 110
      %v2697 = vpop.permute.xlu0 %2696
      %2698 = vrot.lane.b32.xlu0 %v2693, 110
      %v2699 = vpop.permute.xlu0 %2698
      %v2700 = vrot.slane %v2697, 4
      %v2701 = vrot.slane %v2699, 4
      %v2702 = vsel %vm584, %v2700, %v2701
      %v2703 = vsel %vm698, %v2697, %v2702
      %v2704 = vsel %vm698, %v2699, %v2701
      %2707 = vst [vmem:[#allocation3 + $0xa8] sm:$0x33] %v2703
      %2708 = vst [vmem:[#allocation3 + $0xb0] sm:$0x3] %v2704
      %v2709 = vld [vmem:[#allocation2 + $0x4] sm:$0x33]
      %v2710 = vld [vmem:[#allocation2 + $0xc] sm:$0x33]
      %2713 = vrot.lane.b32.xlu0 %v2709, 109
      %v2714 = vpop.permute.xlu0 %2713
      %2715 = vrot.lane.b32.xlu0 %v2710, 109
      %v2716 = vpop.permute.xlu0 %2715
      %v2717 = vrot.slane %v2714, 4
      %v2718 = vrot.slane %v2716, 4
      %v2719 = vsel %vm584, %v2717, %v2718
      %v2720 = vsel %vm716, %v2714, %v2719
      %v2721 = vsel %vm716, %v2716, %v2718
      %2724 = vst [vmem:[#allocation3 + $0xc0] sm:$0x33] %v2720
      %2725 = vst [vmem:[#allocation3 + $0xc8] sm:$0x3] %v2721
      %v2726 = vld [vmem:[%s12] sm:$0xff]
      %v2727 = vld [vmem:[#allocation3] sm:$0xff]
      %v2728 = vld [vmem:[#allocation3 + $0x8] sm:$0xf]
      %v2729 = vld [vmem:[#allocation3 + $0xc] sm:$0xff]
      %v2730 = vld [vmem:[#allocation3 + $0x14] sm:$0xf]
      %v2731 = vld [vmem:[#allocation3 + $0x18] sm:$0xff]
      %v2732 = vld [vmem:[#allocation3 + $0x20] sm:$0xf]
      %v2733 = vld [vmem:[#allocation3 + $0x24] sm:$0xff]
      %v2734 = vld [vmem:[#allocation3 + $0x2c] sm:$0xf]
      %v2735 = vld [vmem:[#allocation3 + $0x30] sm:$0xff]
      %v2736 = vld [vmem:[#allocation3 + $0x38] sm:$0xf]
      %v2737 = vld [vmem:[#allocation3 + $0x3c] sm:$0xff]
      %v2738 = vld [vmem:[#allocation3 + $0x44] sm:$0xf]
      %v2739 = vld [vmem:[#allocation3 + $0x48] sm:$0xff]
      %v2740 = vld [vmem:[#allocation3 + $0x50] sm:$0xf]
      %v2741 = vld [vmem:[#allocation3 + $0x54] sm:$0xff]
      %v2742 = vld [vmem:[#allocation3 + $0x5c] sm:$0xf]
      %v2743 = vld [vmem:[#allocation3 + $0x60] sm:$0xff]
      %v2744 = vld [vmem:[#allocation3 + $0x68] sm:$0xf]
      %v2745 = vld [vmem:[#allocation3 + $0x6c] sm:$0xff]
      %v2746 = vld [vmem:[#allocation3 + $0x74] sm:$0xf]
      %v2747 = vld [vmem:[#allocation3 + $0x78] sm:$0xff]
      %v2748 = vld [vmem:[#allocation3 + $0x80] sm:$0xf]
      %v2749 = vld [vmem:[#allocation3 + $0x84] sm:$0xff]
      %v2750 = vld [vmem:[#allocation3 + $0x8c] sm:$0xf]
      %v2751 = vld [vmem:[#allocation3 + $0x90] sm:$0xff]
      %v2752 = vld [vmem:[#allocation3 + $0x98] sm:$0xf]
      %v2753 = vld [vmem:[#allocation3 + $0x9c] sm:$0xff]
      %v2754 = vld [vmem:[#allocation3 + $0xa4] sm:$0xf]
      %v2755 = vld [vmem:[#allocation3 + $0xa8] sm:$0xff]
      %v2756 = vld [vmem:[#allocation3 + $0xb0] sm:$0xf]
      %v2757 = vld [vmem:[#allocation3 + $0xb4] sm:$0xff]
      %v2758 = vld [vmem:[#allocation3 + $0xbc] sm:$0xf]
      %v2759 = vld [vmem:[#allocation3 + $0xc0] sm:$0xff]
      %v2760 = vld [vmem:[#allocation3 + $0xc8] sm:$0xf]
      %v2761 = vld [vmem:[#allocation3 + $0xcc] sm:$0xff]
      %v2762 = vld [vmem:[#allocation3 + $0xd4] sm:$0xf]
      %v2764 = vunpack.c.l.b16 %v2726
      %v2765 = vunpack.c.h.b16 %v2726
      %v2766 = vpack.c.b16 %v2764, %v2764
      %v2767 = vpack.c.b16 %v2765, %v2765
      %v2805 = vunpack.c.l.b16 %v2727
      %v2806 = vunpack.c.h.b16 %v2727
      %v2807 = vunpack.c.l.b16 %v2728
      %v2808 = vunpack.c.l.b16 %v2729
      %v2809 = vunpack.c.h.b16 %v2729
      %v2810 = vunpack.c.l.b16 %v2730
      %v2811 = vunpack.c.l.b16 %v2731
      %v2812 = vunpack.c.h.b16 %v2731
      %v2813 = vunpack.c.l.b16 %v2732
      %v2814 = vunpack.c.l.b16 %v2733
      %v2815 = vunpack.c.h.b16 %v2733
      %v2816 = vunpack.c.l.b16 %v2734
      %v2817 = vunpack.c.l.b16 %v2735
      %v2818 = vunpack.c.h.b16 %v2735
      %v2819 = vunpack.c.l.b16 %v2736
      %v2820 = vunpack.c.l.b16 %v2737
      %v2821 = vunpack.c.h.b16 %v2737
      %v2822 = vunpack.c.l.b16 %v2738
      %v2823 = vunpack.c.l.b16 %v2739
      %v2824 = vunpack.c.h.b16 %v2739
      %v2825 = vunpack.c.l.b16 %v2740
      %v2826 = vunpack.c.l.b16 %v2741
      %v2827 = vunpack.c.h.b16 %v2741
      %v2828 = vunpack.c.l.b16 %v2742
      %v2829 = vunpack.c.l.b16 %v2743
      %v2830 = vunpack.c.h.b16 %v2743
      %v2831 = vunpack.c.l.b16 %v2744
      %v2832 = vunpack.c.l.b16 %v2745
      %v2833 = vunpack.c.h.b16 %v2745
      %v2834 = vunpack.c.l.b16 %v2746
      %v2835 = vunpack.c.l.b16 %v2747
      %v2836 = vunpack.c.h.b16 %v2747
      %v2837 = vunpack.c.l.b16 %v2748
      %v2838 = vunpack.c.l.b16 %v2749
      %v2839 = vunpack.c.h.b16 %v2749
      %v2840 = vunpack.c.l.b16 %v2750
      %v2841 = vunpack.c.l.b16 %v2751
      %v2842 = vunpack.c.h.b16 %v2751
      %v2843 = vunpack.c.l.b16 %v2752
      %v2844 = vunpack.c.l.b16 %v2753
      %v2845 = vunpack.c.h.b16 %v2753
      %v2846 = vunpack.c.l.b16 %v2754
      %v2847 = vunpack.c.l.b16 %v2755
      %v2848 = vunpack.c.h.b16 %v2755
      %v2849 = vunpack.c.l.b16 %v2756
      %v2850 = vunpack.c.l.b16 %v2757
      %v2851 = vunpack.c.h.b16 %v2757
      %v2852 = vunpack.c.l.b16 %v2758
      %v2853 = vunpack.c.l.b16 %v2759
      %v2854 = vunpack.c.h.b16 %v2759
      %v2855 = vunpack.c.l.b16 %v2760
      %v2856 = vunpack.c.l.b16 %v2761
      %v2857 = vunpack.c.h.b16 %v2761
      %v2858 = vunpack.c.l.b16 %v2762
      %v2859 = vpack.c.b16 %v2808, %v2805
      %v2860 = vpack.c.b16 %v2809, %v2806
      %v2861 = vpack.c.b16 %v2810, %v2807
      %v2862 = vpack.c.b16 %v2814, %v2811
      %v2863 = vpack.c.b16 %v2815, %v2812
      %v2864 = vpack.c.b16 %v2816, %v2813
      %v2865 = vpack.c.b16 %v2820, %v2817
      %v2866 = vpack.c.b16 %v2821, %v2818
      %v2867 = vpack.c.b16 %v2822, %v2819
      %v2868 = vpack.c.b16 %v2826, %v2823
      %v2869 = vpack.c.b16 %v2827, %v2824
      %v2870 = vpack.c.b16 %v2828, %v2825
      %v2871 = vpack.c.b16 %v2832, %v2829
      %v2872 = vpack.c.b16 %v2833, %v2830
      %v2873 = vpack.c.b16 %v2834, %v2831
      %v2874 = vpack.c.b16 %v2838, %v2835
      %v2875 = vpack.c.b16 %v2839, %v2836
      %v2876 = vpack.c.b16 %v2840, %v2837
      %v2877 = vpack.c.b16 %v2844, %v2841
      %v2878 = vpack.c.b16 %v2845, %v2842
      %v2879 = vpack.c.b16 %v2846, %v2843
      %v2880 = vpack.c.b16 %v2850, %v2847
      %v2881 = vpack.c.b16 %v2851, %v2848
      %v2882 = vpack.c.b16 %v2852, %v2849
      %v2883 = vpack.c.b16 %v2856, %v2853
      %v2884 = vpack.c.b16 %v2857, %v2854
      %v2885 = vpack.c.b16 %v2858, %v2855
      %v2914 = vsel %vm910, %v2767, 0
      %2916 = vmatpush.bf16.msra.mxu0 %v2880
      %2917 = vmatpush.bf16.msra.mxu0 %v2877
      %2918 = vmatpush.bf16.msra.mxu0 %v2874
      %2919 = vmatpush.bf16.msra.mxu0 %v2871
      %2920 = vmatpush.bf16.msra.mxu0 %v2868
      %2921 = vmatpush.bf16.msra.mxu0 %v2865
      %2922 = vmatpush.bf16.msra.mxu0 %v2862
      %2923 = vmatpush.bf16.msra.mxu0 %v2859
      %2924 = vmatmul.bf16.gmra.mxu0 %v2766
      %v2925 = vpop.f32.mrf.mxu0
      %v2926 = vadd.f32 0.0, %v2925
      %v2927 = vpop.f32.mrf.mxu0
      %2928 = vdwg.mxu0
      %2929 = vmatpush.bf16.msra.mxu0 0
      %2930 = vmatpush.bf16.msra.mxu0 0
      %2931 = vmatpush.bf16.msra.mxu0 0
      %2932 = vmatpush.bf16.msra.mxu0 0
      %2933 = vmatpush.bf16.msra.mxu0 0
      %2934 = vmatpush.bf16.msra.mxu0 0
      %2935 = vmatpush.bf16.msra.mxu0 0
      %2936 = vmatpush.bf16.msra.mxu0 %v2883
      %2937 = vmatmul.bf16.gmra.mxu0 %v2914
      %v2938 = vpop.f32.mrf.mxu0
      %v2939 = vadd.f32 %v2926, %v2938
      %v2940 = vpop.f32.mrf.mxu0
      %2941 = vdwg.mxu0
      %2942 = vmatpush.bf16.msra.mxu0 %v2881
      %2943 = vmatpush.bf16.msra.mxu0 %v2878
      %2944 = vmatpush.bf16.msra.mxu0 %v2875
      %2945 = vmatpush.bf16.msra.mxu0 %v2872
      %2946 = vmatpush.bf16.msra.mxu0 %v2869
      %2947 = vmatpush.bf16.msra.mxu0 %v2866
      %2948 = vmatpush.bf16.msra.mxu0 %v2863
      %2949 = vmatpush.bf16.msra.mxu0 %v2860
      %2950 = vmatmul.bf16.gmra.mxu0 %v2766
      %v2951 = vpop.f32.mrf.mxu0
      %v2952 = vadd.f32 0.0, %v2951
      %v2953 = vpop.f32.mrf.mxu0
      %2954 = vdwg.mxu0
      %2955 = vmatpush.bf16.msra.mxu0 0
      %2956 = vmatpush.bf16.msra.mxu0 0
      %2957 = vmatpush.bf16.msra.mxu0 0
      %2958 = vmatpush.bf16.msra.mxu0 0
      %2959 = vmatpush.bf16.msra.mxu0 0
      %2960 = vmatpush.bf16.msra.mxu0 0
      %2961 = vmatpush.bf16.msra.mxu0 0
      %2962 = vmatpush.bf16.msra.mxu0 %v2884
      %2963 = vmatmul.bf16.gmra.mxu0 %v2914
      %v2964 = vpop.f32.mrf.mxu0
      %v2965 = vadd.f32 %v2952, %v2964
      %v2966 = vpop.f32.mrf.mxu0
      %2967 = vdwg.mxu0
      %2968 = vmatpush.bf16.msra.mxu0 %v2882
      %2969 = vmatpush.bf16.msra.mxu0 %v2879
      %2970 = vmatpush.bf16.msra.mxu0 %v2876
      %2971 = vmatpush.bf16.msra.mxu0 %v2873
      %2972 = vmatpush.bf16.msra.mxu0 %v2870
      %2973 = vmatpush.bf16.msra.mxu0 %v2867
      %2974 = vmatpush.bf16.msra.mxu0 %v2864
      %2975 = vmatpush.bf16.msra.mxu0 %v2861
      %2976 = vmatmul.bf16.gmra.mxu0 %v2766
      %v2977 = vpop.f32.mrf.mxu0
      %v2978 = vadd.f32 0.0, %v2977
      %v2979 = vpop.f32.mrf.mxu0
      %2980 = vdwg.mxu0
      %2981 = vmatpush.bf16.msra.mxu0 0
      %2982 = vmatpush.bf16.msra.mxu0 0
      %2983 = vmatpush.bf16.msra.mxu0 0
      %2984 = vmatpush.bf16.msra.mxu0 0
      %2985 = vmatpush.bf16.msra.mxu0 0
      %2986 = vmatpush.bf16.msra.mxu0 0
      %2987 = vmatpush.bf16.msra.mxu0 0
      %2988 = vmatpush.bf16.msra.mxu0 %v2885
      %2989 = vmatmul.bf16.gmra.mxu0 %v2914
      %v2990 = vpop.f32.mrf.mxu0
      %v2991 = vadd.f32 %v2978, %v2990
      %v2992 = vpop.f32.mrf.mxu0
      %2993 = vdwg.mxu0
      %v2994 = vmul.f32 %v2939, %v993
      %v2995 = vmul.f32 %v2965, %v994
      %v2996 = vmul.f32 %v2991, %v995
      %v2997 = vadd.f32 %v2994, %v2995
      %v2998 = vadd.f32 %v2997, %v2996
      %2999 = vadd.xlane.f32.xlu0 %v2998
      %v3000 = vpop.xlane.xlu0 %2999
      %v3001 = vrot.slane %v3000, 4
      %v3002 = vadd.f32 %v3000, %v3001
      %v3003 = vrot.slane %v3002, 2
      %v3004 = vadd.f32 %v3002, %v3003
      %v3005 = vrot.slane %v3004, 1
      %v3006 = vadd.f32 %v3004, %v3005
      %s3007 = vtos %v3006
      %s3008 = smul.f32 %s3007, 0.00048828125
      %v3009 = vstv %s3008
      %v3010 = vsub.f32 %v2939, %v3009
      %v3011 = vsub.f32 %v2965, %v3009
      %v3012 = vsub.f32 %v2991, %v3009
      %v3013 = vmul.f32 %v3010, %v993
      %v3014 = vmul.f32 %v3011, %v994
      %v3015 = vmul.f32 %v3012, %v995
      %v3016 = vmul.f32 %v3013, %v3013
      %v3017 = vmul.f32 %v3014, %v3014
      %v3018 = vmul.f32 %v3015, %v3015
      %v3019 = vadd.f32 %v3016, %v3017
      %v3020 = vadd.f32 %v3019, %v3018
      %3021 = vadd.xlane.f32.xlu0 %v3020
      %v3022 = vpop.xlane.xlu0 %3021
      %v3023 = vrot.slane %v3022, 4
      %v3024 = vadd.f32 %v3022, %v3023
      %v3025 = vrot.slane %v3024, 2
      %v3026 = vadd.f32 %v3024, %v3025
      %v3027 = vrot.slane %v3026, 1
      %v3028 = vadd.f32 %v3026, %v3027
      %s3029 = vtos %v3028
      %s3030 = smul.f32 %s3029, 0.00048828125
      %s3031 = sadd.f32 %s3030, 1e-05
      %v3032 = vstv %s3031
      %v3033 = vrsqrt.pop %v3032
      %v3034 = vmul.f32 %v3033, %v3032
      %v3035 = vmul.f32 %v3034, %v3033
      %v3036 = vmul.f32 0.5, %v3035
      %v3037 = vsub.f32 1.5, %v3036
      %v3038 = vmul.f32 %v3033, %v3037
      %vm3039 = vweird.f32 %v3032
      %vm3040 = vweird.f32 %v3033
      %vm3041 = vmor %vm3039, %vm3040
      %v3042 = vsel %vm3041, %v3033, %v3038
      %s3043 = vtos %v3042
      %v3044 = vstv %s3043
      %v3045 = vmul.f32 %v3010, %v3044
      %v3046 = vmul.f32 %v3011, %v3044
      %v3047 = vmul.f32 %v3012, %v3044
      %v3048 = vld [vmem:[%s13] sm:$0xff]
      %3050 = vset.pattern.permute.xlu0 0
      %3051 = vperm.xlu0 %3050, %v3048
      %v3052 = vpop.permute.xlu0 %3051
      %v3054 = vmul.f32 %v3045, %v3052
      %v3055 = vmul.f32 %v3046, %v3052
      %v3056 = vmul.f32 %v3047, %v3052
      %3058 = vset.pattern.permute.xlu0 0
      %3059 = vperm.xlu0 %3058, %v2549
      %v3060 = vpop.permute.xlu0 %3059
      %v3062 = vadd.f32 %v3054, %v3060
      %v3063 = vadd.f32 %v3055, %v3060
      %v3064 = vadd.f32 %v3056, %v3060
      %3065 = vst [vmem:[%s531] sm:$0xff] %v3062
      %3066 = vst [vmem:[%s531 + $0x8] sm:$0xff] %v3063
      %3067 = vst [vmem:[%s531 + $0x10] sm:$0xff] %v3064
      %p3068 = scmp.lt.s32.totalorder %s26, 1
      %s3069 = scalar_select %p3068, %s26, 1
      %s3070 = smul.addr %s3069, 3
      %s3071 = smul.addr %s3070, 8
      %s3072 = scalar_lea.vmem %s15, %s3071
      // Predicated region
      $region81: #{up_forward.1} parent=79 // pred_check
        %p3073 = pneg %p374
      $region82: #{up_forward.1} parent=79 // pred_check_branch
        %3075 = sbr.rel (%p3073) target = $region84
      $region83: #{up_forward.1} parent=79 // pred_region
        _
      $region84: #{up_forward.1} parent=79 // pred_fallthru
        _
    $region80: #{up_forward.1} parent=5 // pred_fallthru
      _
    %p3076 = scmp.le.s32.totalorder 2, %s21
    // Predicated region
    $region85: #{up_forward.1} parent=5 // pred_check
      %p3077 = pneg %p3076
    $region86: #{up_forward.1} parent=5 // pred_check_branch
      %3079 = sbr.rel (%p3077) target = $region88
    $region87: #{up_forward.1} parent=5 // pred_region
      %s3080 = ssub.s32 %s21, 2
      // Predicated region
      $region89: #{up_forward.1} parent=87 // pred_check
        %p3081 = pneg %p380
      $region90: #{up_forward.1} parent=87 // pred_check_branch
        %3083 = sbr.rel (%p3081) target = $region92
      $region91: #{up_forward.1} parent=87 // pred_region
        %p3084 = scmp.lt.s32.totalorder %s27, 1
        %s3085 = scalar_select %p3084, %s27, 1
        %s3086 = smul.addr %s3085, 3
        %s3087 = smul.addr %s3086, 8
        %s3088 = scalar_lea.vmem %s15, %s3087
      $region92: #{up_forward.1} parent=87 // pred_fallthru
        _
    $region88: #{up_forward.1} parent=5 // pred_fallthru
      _
  $region6: #{up_forward.1} parent=0 // loop_footer
    %s25 = sadd.s32 1, %s21
  $region7: #{up_forward.1} parent=0 // loop_footer_branch
    %20 = sbr.rel target = $region3
  $region8: #{up_forward.1} parent=0 // loop_exit
    _

</llo_original>
